<compile_context>
chip_gen: v7x
topology: tpu7x:2x2x1
jax: 0.10.0
libtpu: 0.0.40
codegen_flags: <defaults>
</compile_context>

<pallas_src>
import functools
import math

import jax
import jax.numpy as jnp
from jax import lax
from jax.experimental import pallas as pl
from jax.experimental.pallas import tpu as pltpu


_NEG_INF = -1e30          # online-softmax running-max init (never reaches output)
_MASK_VALUE = -1e10       # matches PyTorch: w = w*b - 1e10*(1-b)
_GELU_C = math.sqrt(2.0 / math.pi)


# ----------------------------- kernel helpers ------------------------------ #

def _layernorm(h, w, b, eps):
    # GPT-2 LayerNorm: biased variance, eps inside sqrt; rsqrt -> EUP slot.
    u = jnp.mean(h, axis=-1, keepdims=True)
    d = h - u
    s = jnp.mean(d * d, axis=-1, keepdims=True)
    return d * lax.rsqrt(s + eps) * w + b


def _gelu(x):
    return 0.5 * x * (1.0 + jnp.tanh(_GELU_C * (x + 0.044715 * x * x * x)))


# ------------------------------- block kernel ------------------------------ #

def block_kernel(x_ref,
                 ln1_w, ln1_b, w_qkv, b_qkv, w_ap, b_ap,
                 ln2_w, ln2_b, w_fc, b_fc, w_mp, b_mp,
                 *rest,
                 n_head, eps, seq_tile, mlp_chunk, apply_final_ln):
    if apply_final_ln:
        (lnf_w, lnf_b, out_ref, pres_ref,
         q_scr, k_scr, v_scr, acc_scr, m_scr, l_scr) = rest
    else:
        (out_ref, pres_ref,
         q_scr, k_scr, v_scr, acc_scr, m_scr, l_scr) = rest

    qi = pl.program_id(1)
    T, C = x_ref.shape[1], x_ref.shape[2]
    H = n_head
    Dh = C // H
    TQ = seq_tile
    TK = seq_tile                       # KV streaming chunk == query tile

    # ---- once per batch element: ln_1 + full QKV projection ---------------- #
    @pl.when(qi == 0)
    def _():
        x_all = x_ref[0]                                            # (T, C) f32
        h1 = _layernorm(x_all, ln1_w[...], ln1_b[...], eps)
        qkv = jnp.dot(h1.astype(jnp.bfloat16), w_qkv[...],
                      preferred_element_type=jnp.float32) + b_qkv[...]
        q_all = qkv[:, 0 * C:1 * C] * (float(Dh) ** -0.5)           # scale=True
        k_all = qkv[:, 1 * C:2 * C]
        v_all = qkv[:, 2 * C:3 * C]
        # present (K, V) written lane-dense as (T, C) fp32 slabs; the wrapper
        # reshapes to the PyTorch (2, B, H, T, Dh) layout.
        pres_ref[0, 0] = k_all
        pres_ref[1, 0] = v_all
        # head-major bf16 scratch feeding the streaming attention matmuls
        q_scr[...] = jnp.transpose(q_all.reshape(T, H, Dh), (1, 0, 2)).astype(jnp.bfloat16)
        k_scr[...] = jnp.transpose(k_all.reshape(T, H, Dh), (1, 0, 2)).astype(jnp.bfloat16)
        v_scr[...] = jnp.transpose(v_all.reshape(T, H, Dh), (1, 0, 2)).astype(jnp.bfloat16)

    # ---- streaming (online-softmax) causal attention for this q-tile ------- #
    m_scr[...] = jnp.full(m_scr.shape, _NEG_INF, dtype=jnp.float32)
    l_scr[...] = jnp.zeros(l_scr.shape, jnp.float32)
    acc_scr[...] = jnp.zeros(acc_scr.shape, jnp.float32)

    row0 = pl.multiple_of(qi * TQ, TQ)
    q_t = q_scr[:, pl.ds(row0, TQ), :]                              # (H, TQ, Dh)

    @pl.loop(0, qi + 1)                 # causal: only chunks 0..qi contribute
    def _(ki):
        ks = pl.multiple_of(ki * TK, TK)
        k_c = k_scr[:, pl.ds(ks, TK), :]                            # (H, TK, Dh)
        v_c = v_scr[:, pl.ds(ks, TK), :]
        s = jnp.einsum('hqd,hkd->hqk', q_t, k_c,
                       preferred_element_type=jnp.float32)          # (H, TQ, TK)
        r_idx = lax.broadcasted_iota(jnp.int32, (TQ, TK), 0) + row0
        c_idx = lax.broadcasted_iota(jnp.int32, (TQ, TK), 1) + ks
        s = jnp.where((c_idx <= r_idx)[None, :, :], s, _MASK_VALUE)

        m_prev = m_scr[...]
        m_new = jnp.maximum(m_prev, jnp.max(s, axis=-1, keepdims=True))
        alpha = jnp.exp(m_prev - m_new)
        p = jnp.exp(s - m_new)
        l_scr[...] = alpha * l_scr[...] + jnp.sum(p, axis=-1, keepdims=True)
        acc_scr[...] = alpha * acc_scr[...] + jnp.einsum(
            'hqk,hkd->hqd', p.astype(jnp.bfloat16), v_c,
            preferred_element_type=jnp.float32)
        m_scr[...] = m_new

    ctx = acc_scr[...] * pl.reciprocal(l_scr[...], approx=True)     # (H, TQ, Dh)
    ctx = jnp.transpose(ctx, (1, 0, 2)).reshape(TQ, C)              # merge heads

    # ---- attention output projection + residual ---------------------------- #
    a_out = jnp.dot(ctx.astype(jnp.bfloat16), w_ap[...],
                    preferred_element_type=jnp.float32) + b_ap[...]
    x_q = x_ref[0, pl.ds(row0, TQ), :]                              # (TQ, C) f32
    x_attn = x_q + a_out

    # ---- ln_2 + MLP (gelu), chunked over the 4C inner dimension ------------ #
    h2 = _layernorm(x_attn, ln2_w[...], ln2_b[...], eps).astype(jnp.bfloat16)
    mlp = jnp.zeros((TQ, C), jnp.float32)
    n_inner = w_fc.shape[1]
    for c0 in range(0, n_inner, mlp_chunk):
        fc = jnp.dot(h2, w_fc[:, c0:c0 + mlp_chunk],
                     preferred_element_type=jnp.float32) + b_fc[:, c0:c0 + mlp_chunk]
        g = _gelu(fc)
        mlp = mlp + jnp.dot(g.astype(jnp.bfloat16), w_mp[c0:c0 + mlp_chunk, :],
                            preferred_element_type=jnp.float32)
    y = x_attn + mlp + b_mp[...]

    if apply_final_ln:                  # ln_f fused into the last block
        y = _layernorm(y, lnf_w[...], lnf_b[...], eps)
    out_ref[0] = y


# ----------------------------- host-side wrappers --------------------------- #

def _full_spec(shape):
    zeros = (0,) * len(shape)
    return pl.BlockSpec(shape, lambda b, q, z=zeros: z)


def _pick_seq_tile(T, target=128):
    if T <= target:
        return T
    for t in range(target, 7, -1):
        if T % t == 0 and t % 8 == 0:
            return t
    return T


def _pick_mlp_chunk(n_inner, target=512):
    if n_inner <= target:
        return n_inner
    for t in range(target, 127, -1):
        if n_inner % t == 0 and t % 128 == 0:
            return t
    return n_inner


def _vmem_limit_bytes():
    try:
        cap = pltpu.get_tpu_info().vmem_capacity_bytes
        return int(cap) * 3 // 4        # leave pipeline headroom
    except Exception:
        return 48 * 1024 * 1024


def gpt2_block(x, p, *, n_head, eps, final_ln=None):
    B, T, C = x.shape
    dh = C // n_head
    TQ = _pick_seq_tile(T)
    NQ = T // TQ
    MK = _pick_mlp_chunk(p['w_fc'].shape[1])

    bf16 = jnp.bfloat16
    # bf16 matmul operands (MXU-native); LN params & biases stay fp32.
    weights = [p['ln1_w'], p['ln1_b'],
               p['w_qkv'].astype(bf16), p['b_qkv'],
               p['w_ap'].astype(bf16), p['b_ap'],
               p['ln2_w'], p['ln2_b'],
               p['w_fc'].astype(bf16), p['b_fc'],
               p['w_mp'].astype(bf16), p['b_mp']]
    if final_ln is not None:
        weights += [final_ln[0], final_ln[1]]

    kernel = functools.partial(block_kernel, n_head=n_head, eps=eps,
                               seq_tile=TQ, mlp_chunk=MK,
                               apply_final_ln=final_ln is not None)

    flops = int(B * (2 * T * C * 3 * C + 4 * T * T * C
                     + 2 * T * C * C + 16 * T * C * C))
    transcendentals = int(B * (n_head * T * T + 4 * T * C))
    bytes_accessed = int(4 * B * T * C * 4 + 2 * 12 * C * C)

    # NOTE: weight blocks have constant index_maps so they are DMA'd only once
    # per call; at full GPT-2 sizes they would additionally benefit from
    # single-buffering (pl.Buffered(1) pipeline_mode) to halve weight VMEM.
    out, present = pl.pallas_call(
        kernel,
        grid=(B, NQ),
        in_specs=[pl.BlockSpec((1, T, C), lambda b, q: (b, 0, 0))]
                 + [_full_spec(w.shape) for w in weights],
        out_specs=(pl.BlockSpec((1, TQ, C), lambda b, q: (b, q, 0)),
                   pl.BlockSpec((2, 1, T, C), lambda b, q: (0, b, 0, 0))),
        out_shape=(jax.ShapeDtypeStruct((B, T, C), jnp.float32),
                   jax.ShapeDtypeStruct((2, B, T, C), jnp.float32)),
        scratch_shapes=[
            pltpu.VMEM((n_head, T, dh), jnp.bfloat16),   # Q (head-major)
            pltpu.VMEM((n_head, T, dh), jnp.bfloat16),   # K
            pltpu.VMEM((n_head, T, dh), jnp.bfloat16),   # V
            pltpu.VMEM((n_head, TQ, dh), jnp.float32),   # softmax accumulator
            pltpu.VMEM((n_head, TQ, 1), jnp.float32),    # running max
            pltpu.VMEM((n_head, TQ, 1), jnp.float32),    # running denom
        ],
        compiler_params=pltpu.CompilerParams(
            dimension_semantics=("parallel", "arbitrary"),
            vmem_limit_bytes=_vmem_limit_bytes()),
        cost_estimate=pl.CostEstimate(flops=flops,
                                      transcendentals=transcendentals,
                                      bytes_accessed=bytes_accessed),
    )(x, *weights)

    # lane-dense (2, B, T, C) -> PyTorch present layout (2, B, H, T, Dh),
    # identical to torch.stack((key.transpose(-2, -1), value)).
    present = jnp.transpose(present.reshape(2, B, T, n_head, dh),
                            (0, 1, 3, 2, 4))
    return out, present


def gpt2_forward(input_ids, params, *, n_head, eps):
    B, T = input_ids.shape
    # Embedding lookups (plain JAX glue): wte[input_ids] + wpe[position_ids]
    position_ids = jnp.arange(T, dtype=jnp.int32)
    h = (jnp.take(params['wte'], input_ids, axis=0)
         + jnp.take(params['wpe'], position_ids, axis=0)[None, :, :])
    h = h.astype(jnp.float32)

    n_layer = len(params['blocks'])
    presents = []
    for li, blk in enumerate(params['blocks']):
        fl = ((params['ln_f_w'], params['ln_f_b'])
              if li == n_layer - 1 else None)
        h, present = gpt2_block(h, blk, n_head=n_head, eps=eps, final_ln=fl)
        presents.append(present)

    if n_layer == 0:                    # degenerate config: ln_f in plain JAX
        u = jnp.mean(h, -1, keepdims=True)
        s = jnp.mean((h - u) ** 2, -1, keepdims=True)
        h = (h - u) / jnp.sqrt(s + eps) * params['ln_f_w'] + params['ln_f_b']
    return h, presents


# ------------------------- parameter construction --------------------------- #

def init_params(key, *, vocab_size, n_positions, n_embd, n_layer):
    C = n_embd
    std = 0.02
    keys = jax.random.split(key, 2 + 4 * n_layer)
    params = {
        'wte': std * jax.random.normal(keys[0], (vocab_size, C), jnp.float32),
        'wpe': std * jax.random.normal(keys[1], (n_positions, C), jnp.float32),
        'ln_f_w': jnp.ones((1, C), jnp.float32),
        'ln_f_b': jnp.zeros((1, C), jnp.float32),
        'blocks': [],
    }
    for l in range(n_layer):
        k0, k1, k2, k3 = keys[2 + 4 * l: 6 + 4 * l]
        params['blocks'].append({
            'ln1_w': jnp.ones((1, C), jnp.float32),
            'ln1_b': jnp.zeros((1, C), jnp.float32),
            'w_qkv': std * jax.random.normal(k0, (C, 3 * C), jnp.float32),
            'b_qkv': jnp.zeros((1, 3 * C), jnp.float32),
            'w_ap': std * jax.random.normal(k1, (C, C), jnp.float32),
            'b_ap': jnp.zeros((1, C), jnp.float32),
            'ln2_w': jnp.ones((1, C), jnp.float32),
            'ln2_b': jnp.zeros((1, C), jnp.float32),
            'w_fc': std * jax.random.normal(k2, (C, 4 * C), jnp.float32),
            'b_fc': jnp.zeros((1, 4 * C), jnp.float32),
            'w_mp': std * jax.random.normal(k3, (4 * C, C), jnp.float32),
            'b_mp': jnp.zeros((1, C), jnp.float32),
        })
    return params


# ----------------------------------- main ----------------------------------- #

if __name__ == "__main__":
    # Small GPT-2 config: vocab=64, n_positions=n_ctx=16, n_embd=32, n_head=4,
    # n_layer=2, layer_norm_epsilon=1e-5.  Inputs: batch=2, seq=8.
    VOCAB, N_POS, C, N_HEAD, N_LAYER, EPS = 64, 16, 32, 4, 2, 1e-5
    B, T = 2, 8

    key = jax.random.PRNGKey(0)
    k_param, k_ids = jax.random.split(key)
    params = init_params(k_param, vocab_size=VOCAB, n_positions=N_POS,
                         n_embd=C, n_layer=N_LAYER)
    input_ids = jax.random.randint(k_ids, (B, T), 0, VOCAB, dtype=jnp.int32)

    fwd = jax.jit(functools.partial(gpt2_forward, n_head=N_HEAD, eps=EPS))
    hidden, presents = fwd(input_ids, params)
    hidden = jax.block_until_ready(hidden)
    presents = [jax.block_until_ready(p) for p in presents]

    assert hidden.shape == (B, T, C)
    assert all(p.shape == (2, B, N_HEAD, T, C // N_HEAD) for p in presents)
    # TODO(synk): the `past` (KV-cache) branch of the PyTorch forward is not
    # exercised (past=None), matching the default call signature.
    print("KERNEL_OK")
</pallas_src>

<mosaic_0001>
module attributes {stable_mosaic.version = 11 : i64} {
  func.func @block_kernel(%arg0: i32, %arg1: i32, %arg2: memref<1x8x32xf32, #tpu.memory_space<vmem>>, %arg3: memref<1x32xf32, #tpu.memory_space<vmem>>, %arg4: memref<1x32xf32, #tpu.memory_space<vmem>>, %arg5: memref<32x96xbf16, #tpu.memory_space<vmem>>, %arg6: memref<1x96xf32, #tpu.memory_space<vmem>>, %arg7: memref<32x32xbf16, #tpu.memory_space<vmem>>, %arg8: memref<1x32xf32, #tpu.memory_space<vmem>>, %arg9: memref<1x32xf32, #tpu.memory_space<vmem>>, %arg10: memref<1x32xf32, #tpu.memory_space<vmem>>, %arg11: memref<32x128xbf16, #tpu.memory_space<vmem>>, %arg12: memref<1x128xf32, #tpu.memory_space<vmem>>, %arg13: memref<128x32xbf16, #tpu.memory_space<vmem>>, %arg14: memref<1x32xf32, #tpu.memory_space<vmem>>, %arg15: memref<1x8x32xf32, #tpu.memory_space<vmem>>, %arg16: memref<2x1x8x32xf32, #tpu.memory_space<vmem>>, %arg17: memref<4x8x8xbf16, #tpu.memory_space<vmem>>, %arg18: memref<4x8x8xbf16, #tpu.memory_space<vmem>>, %arg19: memref<4x8x8xbf16, #tpu.memory_space<vmem>>, %arg20: memref<4x8x8xf32, #tpu.memory_space<vmem>>, %arg21: memref<4x8x1xf32, #tpu.memory_space<vmem>>, %arg22: memref<4x8x1xf32, #tpu.memory_space<vmem>>) attributes {dimension_semantics = [#tpu.dimension_semantics<parallel>, #tpu.dimension_semantics<arbitrary>], iteration_bounds = array<i64: 2, 1>, scalar_prefetch = 0 : i64, scratch_operands = 6 : i64, tpu.core_type = #tpu.core_type<tc>, window_params = [{transform_indices = @transform_0, window_bounds = array<i64: 1, 8, 32>}, {pipeline_mode = #tpu.pipeline_mode<synchronous>, transform_indices = @transform_1, window_bounds = array<i64: 1, 32>}, {pipeline_mode = #tpu.pipeline_mode<synchronous>, transform_indices = @transform_2, window_bounds = array<i64: 1, 32>}, {pipeline_mode = #tpu.pipeline_mode<synchronous>, transform_indices = @transform_3, window_bounds = array<i64: 32, 96>}, {pipeline_mode = #tpu.pipeline_mode<synchronous>, transform_indices = @transform_4, window_bounds = array<i64: 1, 96>}, {pipeline_mode = #tpu.pipeline_mode<synchronous>, transform_indices = @transform_5, window_bounds = array<i64: 32, 32>}, {pipeline_mode = #tpu.pipeline_mode<synchronous>, transform_indices = @transform_6, window_bounds = array<i64: 1, 32>}, {pipeline_mode = #tpu.pipeline_mode<synchronous>, transform_indices = @transform_7, window_bounds = array<i64: 1, 32>}, {pipeline_mode = #tpu.pipeline_mode<synchronous>, transform_indices = @transform_8, window_bounds = array<i64: 1, 32>}, {pipeline_mode = #tpu.pipeline_mode<synchronous>, transform_indices = @transform_9, window_bounds = array<i64: 32, 128>}, {pipeline_mode = #tpu.pipeline_mode<synchronous>, transform_indices = @transform_10, window_bounds = array<i64: 1, 128>}, {pipeline_mode = #tpu.pipeline_mode<synchronous>, transform_indices = @transform_11, window_bounds = array<i64: 128, 32>}, {pipeline_mode = #tpu.pipeline_mode<synchronous>, transform_indices = @transform_12, window_bounds = array<i64: 1, 32>}, {transform_indices = @transform_13, window_bounds = array<i64: 1, 8, 32>}, {transform_indices = @transform_14, window_bounds = array<i64: 2, 1, 8, 32>}]} {
    %c0_i32 = arith.constant 0 : i32
    %0 = arith.cmpi eq, %arg1, %c0_i32 : i32
    %1 = arith.extui %0 : i1 to i32
    %c0_i32_0 = arith.constant 0 : i32
    %2 = arith.cmpi ne, %1, %c0_i32_0 : i32
    scf.if %2 {
      %c0_61 = arith.constant 0 : index
      %c0_62 = arith.constant 0 : index
      %c0_63 = arith.constant 0 : index
      %90 = vector.load %arg2[%c0_61, %c0_62, %c0_63] : memref<1x8x32xf32, #tpu.memory_space<vmem>>, vector<1x8x32xf32>
      %91 = vector.shape_cast %90 : vector<1x8x32xf32> to vector<8x32xf32>
      %c0_64 = arith.constant 0 : index
      %c0_65 = arith.constant 0 : index
      %92 = vector.load %arg3[%c0_64, %c0_65] : memref<1x32xf32, #tpu.memory_space<vmem>>, vector<1x32xf32>
      %c0_66 = arith.constant 0 : index
      %c0_67 = arith.constant 0 : index
      %93 = vector.load %arg4[%c0_66, %c0_67] : memref<1x32xf32, #tpu.memory_space<vmem>>, vector<1x32xf32>
      %cst_68 = arith.constant dense<0.000000e+00> : vector<8xf32>
      %94 = vector.multi_reduction <add>, %91, %cst_68 [1] : vector<8x32xf32> to vector<8xf32>
      %95 = vector.shape_cast %94 : vector<8xf32> to vector<8x1xf32>
      %cst_69 = arith.constant 3.200000e+01 : f32
      %96 = vector.broadcast %cst_69 : f32 to vector<8x1xf32>
      %97 = arith.divf %95, %96 : vector<8x1xf32>
      %98 = vector.broadcast %97 : vector<8x1xf32> to vector<8x32xf32>
      %99 = arith.subf %91, %98 : vector<8x32xf32>
      %100 = arith.mulf %99, %99 : vector<8x32xf32>
      %cst_70 = arith.constant dense<0.000000e+00> : vector<8xf32>
      %101 = vector.multi_reduction <add>, %100, %cst_70 [1] : vector<8x32xf32> to vector<8xf32>
      %102 = vector.shape_cast %101 : vector<8xf32> to vector<8x1xf32>
      %cst_71 = arith.constant 3.200000e+01 : f32
      %103 = vector.broadcast %cst_71 : f32 to vector<8x1xf32>
      %104 = arith.divf %102, %103 : vector<8x1xf32>
      %cst_72 = arith.constant 9.99999974E-6 : f32
      %105 = vector.broadcast %cst_72 : f32 to vector<8x1xf32>
      %106 = arith.addf %104, %105 : vector<8x1xf32>
      %107 = math.rsqrt %106 : vector<8x1xf32>
      %108 = vector.broadcast %107 : vector<8x1xf32> to vector<8x32xf32>
      %109 = arith.mulf %99, %108 : vector<8x32xf32>
      %110 = vector.broadcast %92 : vector<1x32xf32> to vector<8x32xf32>
      %111 = arith.mulf %109, %110 : vector<8x32xf32>
      %112 = vector.broadcast %93 : vector<1x32xf32> to vector<8x32xf32>
      %113 = arith.addf %111, %112 : vector<8x32xf32>
      %114 = arith.truncf %113 : vector<8x32xf32> to vector<8x32xbf16>
      %c0_73 = arith.constant 0 : index
      %c0_74 = arith.constant 0 : index
      %115 = vector.load %arg5[%c0_73, %c0_74] : memref<32x96xbf16, #tpu.memory_space<vmem>>, vector<32x96xbf16>
      %cst_75 = arith.constant dense<0.000000e+00> : vector<8x96xf32>
      %116 = tpu.matmul %114, %115, %cst_75 {dimension_numbers = #tpu.dot_dimension_numbers<[1], [0], [0], [1], [0, 0, 1, 1], [], []>} : vector<8x32xbf16>, vector<32x96xbf16>, vector<8x96xf32> -> vector<8x96xf32>
      %c0_76 = arith.constant 0 : index
      %c0_77 = arith.constant 0 : index
      %117 = vector.load %arg6[%c0_76, %c0_77] : memref<1x96xf32, #tpu.memory_space<vmem>>, vector<1x96xf32>
      %118 = vector.broadcast %117 : vector<1x96xf32> to vector<8x96xf32>
      %119 = arith.addf %116, %118 : vector<8x96xf32>
      %120 = vector.extract_strided_slice %119 {offsets = [0, 0], sizes = [8, 32], strides = [1, 1]} : vector<8x96xf32> to vector<8x32xf32>
      %cst_78 = arith.constant 0.353553385 : f32
      %121 = vector.broadcast %cst_78 : f32 to vector<8x32xf32>
      %122 = arith.mulf %120, %121 : vector<8x32xf32>
      %123 = vector.extract_strided_slice %119 {offsets = [0, 32], sizes = [8, 32], strides = [1, 1]} : vector<8x96xf32> to vector<8x32xf32>
      %124 = vector.extract_strided_slice %119 {offsets = [0, 64], sizes = [8, 32], strides = [1, 1]} : vector<8x96xf32> to vector<8x32xf32>
      %c0_79 = arith.constant 0 : index
      %c0_80 = arith.constant 0 : index
      %c0_81 = arith.constant 0 : index
      %c0_82 = arith.constant 0 : index
      %125 = vector.load %arg16[%c0_79, %c0_80, %c0_81, %c0_82] : memref<2x1x8x32xf32, #tpu.memory_space<vmem>>, vector<1x1x8x32xf32>
      %126 = vector.shape_cast %125 : vector<1x1x8x32xf32> to vector<8x32xf32>
      %127 = vector.shape_cast %123 : vector<8x32xf32> to vector<1x1x8x32xf32>
      tpu.vector_store %arg16[%c0_79, %c0_80, %c0_81, %c0_82], %127 {strides = array<i32>} : memref<2x1x8x32xf32, #tpu.memory_space<vmem>>, vector<1x1x8x32xf32>,
      %c1 = arith.constant 1 : index
      %c0_83 = arith.constant 0 : index
      %c0_84 = arith.constant 0 : index
      %c0_85 = arith.constant 0 : index
      %128 = vector.load %arg16[%c1, %c0_83, %c0_84, %c0_85] : memref<2x1x8x32xf32, #tpu.memory_space<vmem>>, vector<1x1x8x32xf32>
      %129 = vector.shape_cast %128 : vector<1x1x8x32xf32> to vector<8x32xf32>
      %130 = vector.shape_cast %124 : vector<8x32xf32> to vector<1x1x8x32xf32>
      tpu.vector_store %arg16[%c1, %c0_83, %c0_84, %c0_85], %130 {strides = array<i32>} : memref<2x1x8x32xf32, #tpu.memory_space<vmem>>, vector<1x1x8x32xf32>,
      %131 = vector.shape_cast %122 : vector<8x32xf32> to vector<8x4x8xf32>
      %132 = tpu.transpose %131, [1, 0, 2] : vector<8x4x8xf32> -> vector<4x8x8xf32>
      %133 = arith.truncf %132 : vector<4x8x8xf32> to vector<4x8x8xbf16>
      %c0_86 = arith.constant 0 : index
      %c0_87 = arith.constant 0 : index
      %c0_88 = arith.constant 0 : index
      %134 = vector.load %arg17[%c0_86, %c0_87, %c0_88] : memref<4x8x8xbf16, #tpu.memory_space<vmem>>, vector<4x8x8xbf16>
      tpu.vector_store %arg17[%c0_86, %c0_87, %c0_88], %133 {strides = array<i32>} : memref<4x8x8xbf16, #tpu.memory_space<vmem>>, vector<4x8x8xbf16>,
      %135 = vector.shape_cast %123 : vector<8x32xf32> to vector<8x4x8xf32>
      %136 = tpu.transpose %135, [1, 0, 2] : vector<8x4x8xf32> -> vector<4x8x8xf32>
      %137 = arith.truncf %136 : vector<4x8x8xf32> to vector<4x8x8xbf16>
      %c0_89 = arith.constant 0 : index
      %c0_90 = arith.constant 0 : index
      %c0_91 = arith.constant 0 : index
      %138 = vector.load %arg18[%c0_89, %c0_90, %c0_91] : memref<4x8x8xbf16, #tpu.memory_space<vmem>>, vector<4x8x8xbf16>
      tpu.vector_store %arg18[%c0_89, %c0_90, %c0_91], %137 {strides = array<i32>} : memref<4x8x8xbf16, #tpu.memory_space<vmem>>, vector<4x8x8xbf16>,
      %139 = vector.shape_cast %124 : vector<8x32xf32> to vector<8x4x8xf32>
      %140 = tpu.transpose %139, [1, 0, 2] : vector<8x4x8xf32> -> vector<4x8x8xf32>
      %141 = arith.truncf %140 : vector<4x8x8xf32> to vector<4x8x8xbf16>
      %c0_92 = arith.constant 0 : index
      %c0_93 = arith.constant 0 : index
      %c0_94 = arith.constant 0 : index
      %142 = vector.load %arg19[%c0_92, %c0_93, %c0_94] : memref<4x8x8xbf16, #tpu.memory_space<vmem>>, vector<4x8x8xbf16>
      tpu.vector_store %arg19[%c0_92, %c0_93, %c0_94], %141 {strides = array<i32>} : memref<4x8x8xbf16, #tpu.memory_space<vmem>>, vector<4x8x8xbf16>,
    } else {
    }
    %cst = arith.constant -1.000000e+30 : f32
    %3 = vector.broadcast %cst : f32 to vector<4x8x1xf32>
    %c0 = arith.constant 0 : index
    %c0_1 = arith.constant 0 : index
    %c0_2 = arith.constant 0 : index
    %4 = vector.load %arg21[%c0, %c0_1, %c0_2] : memref<4x8x1xf32, #tpu.memory_space<vmem>>, vector<4x8x1xf32>
    tpu.vector_store %arg21[%c0, %c0_1, %c0_2], %3 {strides = array<i32>} : memref<4x8x1xf32, #tpu.memory_space<vmem>>, vector<4x8x1xf32>,
    %cst_3 = arith.constant 0.000000e+00 : f32
    %5 = vector.broadcast %cst_3 : f32 to vector<4x8x1xf32>
    %c0_4 = arith.constant 0 : index
    %c0_5 = arith.constant 0 : index
    %c0_6 = arith.constant 0 : index
    %6 = vector.load %arg22[%c0_4, %c0_5, %c0_6] : memref<4x8x1xf32, #tpu.memory_space<vmem>>, vector<4x8x1xf32>
    tpu.vector_store %arg22[%c0_4, %c0_5, %c0_6], %5 {strides = array<i32>} : memref<4x8x1xf32, #tpu.memory_space<vmem>>, vector<4x8x1xf32>,
    %cst_7 = arith.constant 0.000000e+00 : f32
    %7 = vector.broadcast %cst_7 : f32 to vector<4x8x8xf32>
    %c0_8 = arith.constant 0 : index
    %c0_9 = arith.constant 0 : index
    %c0_10 = arith.constant 0 : index
    %8 = vector.load %arg20[%c0_8, %c0_9, %c0_10] : memref<4x8x8xf32, #tpu.memory_space<vmem>>, vector<4x8x8xf32>
    tpu.vector_store %arg20[%c0_8, %c0_9, %c0_10], %7 {strides = array<i32>} : memref<4x8x8xf32, #tpu.memory_space<vmem>>, vector<4x8x8xf32>,
    %c8_i32 = arith.constant 8 : i32
    %9 = arith.muli %arg1, %c8_i32 : i32
    %10 = tpu.assume_multiple %9, 8 : i32
    %c0_11 = arith.constant 0 : index
    %11 = arith.index_cast %10 : i32 to index
    %c0_12 = arith.constant 0 : index
    %12 = vector.load %arg17[%c0_11, %11, %c0_12] : memref<4x8x8xbf16, #tpu.memory_space<vmem>>, vector<4x8x8xbf16>
    %c1_i32 = arith.constant 1 : i32
    %13 = arith.addi %arg1, %c1_i32 : i32
    %c0_i32_13 = arith.constant 0 : i32
    %14 = arith.subi %13, %c0_i32_13 : i32
    %c1_i32_14 = arith.constant 1 : i32
    %c1_i32_15 = arith.constant 1 : i32
    %15 = arith.subi %c1_i32_14, %c1_i32_15 : i32
    %16 = arith.addi %14, %15 : i32
    %c1_i32_16 = arith.constant 1 : i32
    %17 = arith.divsi %16, %c1_i32_16 : i32
    %c1_i32_17 = arith.constant 1 : i32
    %c0_i32_18 = arith.constant 0 : i32
    %c0_i32_19 = arith.constant 0 : i32
    %18 = arith.subi %17, %c0_i32_19 : i32
    %19 = arith.addi %c0_i32_19, %18 : i32
    %c1_i32_20 = arith.constant 1 : i32
    scf.for %arg23 = %c0_i32_19 to %19 step %c1_i32_20  : i32 {
      %90 = arith.muli %arg23, %c1_i32_17 : i32
      %91 = arith.addi %c0_i32_18, %90 : i32
      %c8_i32_61 = arith.constant 8 : i32
      %92 = arith.muli %91, %c8_i32_61 : i32
      %93 = tpu.assume_multiple %92, 8 : i32
      %c0_62 = arith.constant 0 : index
      %94 = arith.index_cast %93 : i32 to index
      %c0_63 = arith.constant 0 : index
      %95 = vector.load %arg18[%c0_62, %94, %c0_63] : memref<4x8x8xbf16, #tpu.memory_space<vmem>>, vector<4x8x8xbf16>
      %c0_64 = arith.constant 0 : index
      %96 = arith.index_cast %93 : i32 to index
      %c0_65 = arith.constant 0 : index
      %97 = vector.load %arg19[%c0_64, %96, %c0_65] : memref<4x8x8xbf16, #tpu.memory_space<vmem>>, vector<4x8x8xbf16>
      "tpu.trace_start"() <{level = 10 : i32, message = "hqd,hkd->hqk"}> : () -> ()
      %cst_66 = arith.constant dense<0.000000e+00> : vector<4x8x8xf32>
      %98 = tpu.matmul %12, %95, %cst_66 {dimension_numbers = #tpu.dot_dimension_numbers<[2], [2], [1], [1], [0, 0, 0, 1, 1, 1], [0], [0]>} : vector<4x8x8xbf16>, vector<4x8x8xbf16>, vector<4x8x8xf32> -> vector<4x8x8xf32>
      "tpu.trace_stop"() : () -> ()
      %99 = tpu.iota {dimensions = array<i32: 0>} : vector<8x8xi32>
      %100 = vector.broadcast %10 : i32 to vector<8x8xi32>
      %101 = arith.addi %99, %100 : vector<8x8xi32>
      %102 = tpu.iota {dimensions = array<i32: 1>} : vector<8x8xi32>
      %103 = vector.broadcast %93 : i32 to vector<8x8xi32>
      %104 = arith.addi %102, %103 : vector<8x8xi32>
      %105 = arith.cmpi sle, %104, %101 : vector<8x8xi32>
      %106 = vector.shape_cast %105 : vector<8x8xi1> to vector<1x8x8xi1>
      %cst_67 = arith.constant -1.000000e+10 : f32
      %107 = vector.shape_cast %106 : vector<1x8x8xi1> to vector<1x8x8xi1>
      %108 = vector.broadcast %107 : vector<1x8x8xi1> to vector<4x8x8xi1>
      %109 = vector.broadcast %cst_67 : f32 to vector<4x8x8xf32>
      %110 = arith.select %108, %98, %109 : vector<4x8x8xi1>, vector<4x8x8xf32>
      %c0_68 = arith.constant 0 : index
      %c0_69 = arith.constant 0 : index
      %c0_70 = arith.constant 0 : index
      %111 = vector.load %arg21[%c0_68, %c0_69, %c0_70] : memref<4x8x1xf32, #tpu.memory_space<vmem>>, vector<4x8x1xf32>
      %cst_71 = arith.constant dense<0xFF800000> : vector<4x8xf32>
      %112 = vector.multi_reduction <maximumf>, %110, %cst_71 [2] : vector<4x8x8xf32> to vector<4x8xf32>
      %113 = vector.shape_cast %112 : vector<4x8xf32> to vector<4x8x1xf32>
      %114 = arith.maximumf %111, %113 : vector<4x8x1xf32>
      %115 = arith.subf %111, %114 : vector<4x8x1xf32>
      %116 = math.exp %115 : vector<4x8x1xf32>
      %117 = vector.broadcast %114 : vector<4x8x1xf32> to vector<4x8x8xf32>
      %118 = arith.subf %110, %117 : vector<4x8x8xf32>
      %119 = math.exp %118 : vector<4x8x8xf32>
      %c0_72 = arith.constant 0 : index
      %c0_73 = arith.constant 0 : index
      %c0_74 = arith.constant 0 : index
      %120 = vector.load %arg22[%c0_72, %c0_73, %c0_74] : memref<4x8x1xf32, #tpu.memory_space<vmem>>, vector<4x8x1xf32>
      %121 = arith.mulf %116, %120 : vector<4x8x1xf32>
      %cst_75 = arith.constant dense<0.000000e+00> : vector<4x8xf32>
      %122 = vector.multi_reduction <add>, %119, %cst_75 [2] : vector<4x8x8xf32> to vector<4x8xf32>
      %123 = vector.shape_cast %122 : vector<4x8xf32> to vector<4x8x1xf32>
      %124 = arith.addf %121, %123 : vector<4x8x1xf32>
      %c0_76 = arith.constant 0 : index
      %c0_77 = arith.constant 0 : index
      %c0_78 = arith.constant 0 : index
      %125 = vector.load %arg22[%c0_76, %c0_77, %c0_78] : memref<4x8x1xf32, #tpu.memory_space<vmem>>, vector<4x8x1xf32>
      tpu.vector_store %arg22[%c0_76, %c0_77, %c0_78], %124 {strides = array<i32>} : memref<4x8x1xf32, #tpu.memory_space<vmem>>, vector<4x8x1xf32>,
      %c0_79 = arith.constant 0 : index
      %c0_80 = arith.constant 0 : index
      %c0_81 = arith.constant 0 : index
      %126 = vector.load %arg20[%c0_79, %c0_80, %c0_81] : memref<4x8x8xf32, #tpu.memory_space<vmem>>, vector<4x8x8xf32>
      %127 = vector.broadcast %116 : vector<4x8x1xf32> to vector<4x8x8xf32>
      %128 = arith.mulf %127, %126 : vector<4x8x8xf32>
      %129 = arith.truncf %119 : vector<4x8x8xf32> to vector<4x8x8xbf16>
      "tpu.trace_start"() <{level = 10 : i32, message = "hqk,hkd->hqd"}> : () -> ()
      %cst_82 = arith.constant dense<0.000000e+00> : vector<4x8x8xf32>
      %130 = tpu.matmul %129, %97, %cst_82 {dimension_numbers = #tpu.dot_dimension_numbers<[2], [1], [1], [2], [0, 0, 0, 1, 1, 2], [0], [0]>} : vector<4x8x8xbf16>, vector<4x8x8xbf16>, vector<4x8x8xf32> -> vector<4x8x8xf32>
      "tpu.trace_stop"() : () -> ()
      %131 = arith.addf %128, %130 : vector<4x8x8xf32>
      %c0_83 = arith.constant 0 : index
      %c0_84 = arith.constant 0 : index
      %c0_85 = arith.constant 0 : index
      %132 = vector.load %arg20[%c0_83, %c0_84, %c0_85] : memref<4x8x8xf32, #tpu.memory_space<vmem>>, vector<4x8x8xf32>
      tpu.vector_store %arg20[%c0_83, %c0_84, %c0_85], %131 {strides = array<i32>} : memref<4x8x8xf32, #tpu.memory_space<vmem>>, vector<4x8x8xf32>,
      %c0_86 = arith.constant 0 : index
      %c0_87 = arith.constant 0 : index
      %c0_88 = arith.constant 0 : index
      %133 = vector.load %arg21[%c0_86, %c0_87, %c0_88] : memref<4x8x1xf32, #tpu.memory_space<vmem>>, vector<4x8x1xf32>
      tpu.vector_store %arg21[%c0_86, %c0_87, %c0_88], %114 {strides = array<i32>} : memref<4x8x1xf32, #tpu.memory_space<vmem>>, vector<4x8x1xf32>,
    }
    %c0_21 = arith.constant 0 : index
    %c0_22 = arith.constant 0 : index
    %c0_23 = arith.constant 0 : index
    %20 = vector.load %arg20[%c0_21, %c0_22, %c0_23] : memref<4x8x8xf32, #tpu.memory_space<vmem>>, vector<4x8x8xf32>
    %c0_24 = arith.constant 0 : index
    %c0_25 = arith.constant 0 : index
    %c0_26 = arith.constant 0 : index
    %21 = vector.load %arg22[%c0_24, %c0_25, %c0_26] : memref<4x8x1xf32, #tpu.memory_space<vmem>>, vector<4x8x1xf32>
    %22 = tpu.reciprocal %21 {approx = true} : vector<4x8x1xf32> -> vector<4x8x1xf32>
    %23 = vector.broadcast %22 : vector<4x8x1xf32> to vector<4x8x8xf32>
    %24 = arith.mulf %20, %23 : vector<4x8x8xf32>
    %25 = tpu.transpose %24, [1, 0, 2] : vector<4x8x8xf32> -> vector<8x4x8xf32>
    %26 = vector.shape_cast %25 : vector<8x4x8xf32> to vector<8x32xf32>
    %27 = arith.truncf %26 : vector<8x32xf32> to vector<8x32xbf16>
    %c0_27 = arith.constant 0 : index
    %c0_28 = arith.constant 0 : index
    %28 = vector.load %arg7[%c0_27, %c0_28] : memref<32x32xbf16, #tpu.memory_space<vmem>>, vector<32x32xbf16>
    %cst_29 = arith.constant dense<0.000000e+00> : vector<8x32xf32>
    %29 = tpu.matmul %27, %28, %cst_29 {dimension_numbers = #tpu.dot_dimension_numbers<[1], [0], [0], [1], [0, 0, 1, 1], [], []>} : vector<8x32xbf16>, vector<32x32xbf16>, vector<8x32xf32> -> vector<8x32xf32>
    %c0_30 = arith.constant 0 : index
    %c0_31 = arith.constant 0 : index
    %30 = vector.load %arg8[%c0_30, %c0_31] : memref<1x32xf32, #tpu.memory_space<vmem>>, vector<1x32xf32>
    %31 = vector.broadcast %30 : vector<1x32xf32> to vector<8x32xf32>
    %32 = arith.addf %29, %31 : vector<8x32xf32>
    %c0_32 = arith.constant 0 : index
    %33 = arith.index_cast %10 : i32 to index
    %c0_33 = arith.constant 0 : index
    %34 = vector.load %arg2[%c0_32, %33, %c0_33] : memref<1x8x32xf32, #tpu.memory_space<vmem>>, vector<1x8x32xf32>
    %35 = vector.shape_cast %34 : vector<1x8x32xf32> to vector<8x32xf32>
    %36 = arith.addf %35, %32 : vector<8x32xf32>
    %c0_34 = arith.constant 0 : index
    %c0_35 = arith.constant 0 : index
    %37 = vector.load %arg9[%c0_34, %c0_35] : memref<1x32xf32, #tpu.memory_space<vmem>>, vector<1x32xf32>
    %c0_36 = arith.constant 0 : index
    %c0_37 = arith.constant 0 : index
    %38 = vector.load %arg10[%c0_36, %c0_37] : memref<1x32xf32, #tpu.memory_space<vmem>>, vector<1x32xf32>
    %cst_38 = arith.constant dense<0.000000e+00> : vector<8xf32>
    %39 = vector.multi_reduction <add>, %36, %cst_38 [1] : vector<8x32xf32> to vector<8xf32>
    %40 = vector.shape_cast %39 : vector<8xf32> to vector<8x1xf32>
    %cst_39 = arith.constant 3.200000e+01 : f32
    %41 = vector.broadcast %cst_39 : f32 to vector<8x1xf32>
    %42 = arith.divf %40, %41 : vector<8x1xf32>
    %43 = vector.broadcast %42 : vector<8x1xf32> to vector<8x32xf32>
    %44 = arith.subf %36, %43 : vector<8x32xf32>
    %45 = arith.mulf %44, %44 : vector<8x32xf32>
    %cst_40 = arith.constant dense<0.000000e+00> : vector<8xf32>
    %46 = vector.multi_reduction <add>, %45, %cst_40 [1] : vector<8x32xf32> to vector<8xf32>
    %47 = vector.shape_cast %46 : vector<8xf32> to vector<8x1xf32>
    %cst_41 = arith.constant 3.200000e+01 : f32
    %48 = vector.broadcast %cst_41 : f32 to vector<8x1xf32>
    %49 = arith.divf %47, %48 : vector<8x1xf32>
    %cst_42 = arith.constant 9.99999974E-6 : f32
    %50 = vector.broadcast %cst_42 : f32 to vector<8x1xf32>
    %51 = arith.addf %49, %50 : vector<8x1xf32>
    %52 = math.rsqrt %51 : vector<8x1xf32>
    %53 = vector.broadcast %52 : vector<8x1xf32> to vector<8x32xf32>
    %54 = arith.mulf %44, %53 : vector<8x32xf32>
    %55 = vector.broadcast %37 : vector<1x32xf32> to vector<8x32xf32>
    %56 = arith.mulf %54, %55 : vector<8x32xf32>
    %57 = vector.broadcast %38 : vector<1x32xf32> to vector<8x32xf32>
    %58 = arith.addf %56, %57 : vector<8x32xf32>
    %59 = arith.truncf %58 : vector<8x32xf32> to vector<8x32xbf16>
    %cst_43 = arith.constant 0.000000e+00 : f32
    %60 = vector.broadcast %cst_43 : f32 to vector<8x32xf32>
    %c0_44 = arith.constant 0 : index
    %c0_45 = arith.constant 0 : index
    %61 = vector.load %arg11[%c0_44, %c0_45] : memref<32x128xbf16, #tpu.memory_space<vmem>>, vector<32x128xbf16>
    %cst_46 = arith.constant dense<0.000000e+00> : vector<8x128xf32>
    %62 = tpu.matmul %59, %61, %cst_46 {dimension_numbers = #tpu.dot_dimension_numbers<[1], [0], [0], [1], [0, 0, 1, 1], [], []>} : vector<8x32xbf16>, vector<32x128xbf16>, vector<8x128xf32> -> vector<8x128xf32>
    %c0_47 = arith.constant 0 : index
    %c0_48 = arith.constant 0 : index
    %63 = vector.load %arg12[%c0_47, %c0_48] : memref<1x128xf32, #tpu.memory_space<vmem>>, vector<1x128xf32>
    %64 = vector.broadcast %63 : vector<1x128xf32> to vector<8x128xf32>
    %65 = arith.addf %62, %64 : vector<8x128xf32>
    %cst_49 = arith.constant 5.000000e-01 : f32
    %66 = vector.broadcast %cst_49 : f32 to vector<8x128xf32>
    %67 = arith.mulf %66, %65 : vector<8x128xf32>
    %cst_50 = arith.constant 4.471500e-02 : f32
    %68 = vector.broadcast %cst_50 : f32 to vector<8x128xf32>
    %69 = arith.mulf %68, %65 : vector<8x128xf32>
    %70 = arith.mulf %69, %65 : vector<8x128xf32>
    %71 = arith.mulf %70, %65 : vector<8x128xf32>
    %72 = arith.addf %65, %71 : vector<8x128xf32>
    %cst_51 = arith.constant 0.797884583 : f32
    %73 = vector.broadcast %cst_51 : f32 to vector<8x128xf32>
    %74 = arith.mulf %73, %72 : vector<8x128xf32>
    %75 = math.tanh %74 : vector<8x128xf32>
    %cst_52 = arith.constant 1.000000e+00 : f32
    %76 = vector.broadcast %cst_52 : f32 to vector<8x128xf32>
    %77 = arith.addf %76, %75 : vector<8x128xf32>
    %78 = arith.mulf %67, %77 : vector<8x128xf32>
    %79 = arith.truncf %78 : vector<8x128xf32> to vector<8x128xbf16>
    %c0_53 = arith.constant 0 : index
    %c0_54 = arith.constant 0 : index
    %80 = vector.load %arg13[%c0_53, %c0_54] : memref<128x32xbf16, #tpu.memory_space<vmem>>, vector<128x32xbf16>
    %cst_55 = arith.constant dense<0.000000e+00> : vector<8x32xf32>
    %81 = tpu.matmul %79, %80, %cst_55 {dimension_numbers = #tpu.dot_dimension_numbers<[1], [0], [0], [1], [0, 0, 1, 1], [], []>} : vector<8x128xbf16>, vector<128x32xbf16>, vector<8x32xf32> -> vector<8x32xf32>
    %82 = arith.addf %60, %81 : vector<8x32xf32>
    %83 = arith.addf %36, %82 : vector<8x32xf32>
    %c0_56 = arith.constant 0 : index
    %c0_57 = arith.constant 0 : index
    %84 = vector.load %arg14[%c0_56, %c0_57] : memref<1x32xf32, #tpu.memory_space<vmem>>, vector<1x32xf32>
    %85 = vector.broadcast %84 : vector<1x32xf32> to vector<8x32xf32>
    %86 = arith.addf %83, %85 : vector<8x32xf32>
    %c0_58 = arith.constant 0 : index
    %c0_59 = arith.constant 0 : index
    %c0_60 = arith.constant 0 : index
    %87 = vector.load %arg15[%c0_58, %c0_59, %c0_60] : memref<1x8x32xf32, #tpu.memory_space<vmem>>, vector<1x8x32xf32>
    %88 = vector.shape_cast %87 : vector<1x8x32xf32> to vector<8x32xf32>
    %89 = vector.shape_cast %86 : vector<8x32xf32> to vector<1x8x32xf32>
    tpu.vector_store %arg15[%c0_58, %c0_59, %c0_60], %89 {strides = array<i32>} : memref<1x8x32xf32, #tpu.memory_space<vmem>>, vector<1x8x32xf32>,
    return
  }
  func.func @transform_0(%arg0: i32, %arg1: i32) -> (i32, i32, i32) {
    %c0_i32 = arith.constant 0 : i32
    %c0_i32_0 = arith.constant 0 : i32
    %c0_i32_1 = arith.constant 0 : i32
    return %arg0, %c0_i32, %c0_i32_0 : i32, i32, i32
  }
  func.func @transform_1(%arg0: i32, %arg1: i32) -> (i32, i32) {
    %c0_i32 = arith.constant 0 : i32
    %c0_i32_0 = arith.constant 0 : i32
    %c0_i32_1 = arith.constant 0 : i32
    return %c0_i32, %c0_i32_0 : i32, i32
  }
  func.func @transform_2(%arg0: i32, %arg1: i32) -> (i32, i32) {
    %c0_i32 = arith.constant 0 : i32
    %c0_i32_0 = arith.constant 0 : i32
    %c0_i32_1 = arith.constant 0 : i32
    return %c0_i32, %c0_i32_0 : i32, i32
  }
  func.func @transform_3(%arg0: i32, %arg1: i32) -> (i32, i32) {
    %c0_i32 = arith.constant 0 : i32
    %c0_i32_0 = arith.constant 0 : i32
    %c0_i32_1 = arith.constant 0 : i32
    return %c0_i32, %c0_i32_0 : i32, i32
  }
  func.func @transform_4(%arg0: i32, %arg1: i32) -> (i32, i32) {
    %c0_i32 = arith.constant 0 : i32
    %c0_i32_0 = arith.constant 0 : i32
    %c0_i32_1 = arith.constant 0 : i32
    return %c0_i32, %c0_i32_0 : i32, i32
  }
  func.func @transform_5(%arg0: i32, %arg1: i32) -> (i32, i32) {
    %c0_i32 = arith.constant 0 : i32
    %c0_i32_0 = arith.constant 0 : i32
    %c0_i32_1 = arith.constant 0 : i32
    return %c0_i32, %c0_i32_0 : i32, i32
  }
  func.func @transform_6(%arg0: i32, %arg1: i32) -> (i32, i32) {
    %c0_i32 = arith.constant 0 : i32
    %c0_i32_0 = arith.constant 0 : i32
    %c0_i32_1 = arith.constant 0 : i32
    return %c0_i32, %c0_i32_0 : i32, i32
  }
  func.func @transform_7(%arg0: i32, %arg1: i32) -> (i32, i32) {
    %c0_i32 = arith.constant 0 : i32
    %c0_i32_0 = arith.constant 0 : i32
    %c0_i32_1 = arith.constant 0 : i32
    return %c0_i32, %c0_i32_0 : i32, i32
  }
  func.func @transform_8(%arg0: i32, %arg1: i32) -> (i32, i32) {
    %c0_i32 = arith.constant 0 : i32
    %c0_i32_0 = arith.constant 0 : i32
    %c0_i32_1 = arith.constant 0 : i32
    return %c0_i32, %c0_i32_0 : i32, i32
  }
  func.func @transform_9(%arg0: i32, %arg1: i32) -> (i32, i32) {
    %c0_i32 = arith.constant 0 : i32
    %c0_i32_0 = arith.constant 0 : i32
    %c0_i32_1 = arith.constant 0 : i32
    return %c0_i32, %c0_i32_0 : i32, i32
  }
  func.func @transform_10(%arg0: i32, %arg1: i32) -> (i32, i32) {
    %c0_i32 = arith.constant 0 : i32
    %c0_i32_0 = arith.constant 0 : i32
    %c0_i32_1 = arith.constant 0 : i32
    return %c0_i32, %c0_i32_0 : i32, i32
  }
  func.func @transform_11(%arg0: i32, %arg1: i32) -> (i32, i32) {
    %c0_i32 = arith.constant 0 : i32
    %c0_i32_0 = arith.constant 0 : i32
    %c0_i32_1 = arith.constant 0 : i32
    return %c0_i32, %c0_i32_0 : i32, i32
  }
  func.func @transform_12(%arg0: i32, %arg1: i32) -> (i32, i32) {
    %c0_i32 = arith.constant 0 : i32
    %c0_i32_0 = arith.constant 0 : i32
    %c0_i32_1 = arith.constant 0 : i32
    return %c0_i32, %c0_i32_0 : i32, i32
  }
  func.func @transform_13(%arg0: i32, %arg1: i32) -> (i32, i32, i32) {
    %c0_i32 = arith.constant 0 : i32
    %c0_i32_0 = arith.constant 0 : i32
    return %arg0, %arg1, %c0_i32 : i32, i32, i32
  }
  func.func @transform_14(%arg0: i32, %arg1: i32) -> (i32, i32, i32, i32) {
    %c0_i32 = arith.constant 0 : i32
    %c0_i32_0 = arith.constant 0 : i32
    %c0_i32_1 = arith.constant 0 : i32
    %c0_i32_2 = arith.constant 0 : i32
    return %c0_i32, %arg0, %c0_i32_0, %c0_i32_1 : i32, i32, i32, i32
  }
}

module attributes {stable_mosaic.version = 11 : i64} {
  func.func @block_kernel(%arg0: i32, %arg1: i32, %arg2: memref<1x8x32xf32, #tpu.memory_space<vmem>>, %arg3: memref<1x32xf32, #tpu.memory_space<vmem>>, %arg4: memref<1x32xf32, #tpu.memory_space<vmem>>, %arg5: memref<32x96xbf16, #tpu.memory_space<vmem>>, %arg6: memref<1x96xf32, #tpu.memory_space<vmem>>, %arg7: memref<32x32xbf16, #tpu.memory_space<vmem>>, %arg8: memref<1x32xf32, #tpu.memory_space<vmem>>, %arg9: memref<1x32xf32, #tpu.memory_space<vmem>>, %arg10: memref<1x32xf32, #tpu.memory_space<vmem>>, %arg11: memref<32x128xbf16, #tpu.memory_space<vmem>>, %arg12: memref<1x128xf32, #tpu.memory_space<vmem>>, %arg13: memref<128x32xbf16, #tpu.memory_space<vmem>>, %arg14: memref<1x32xf32, #tpu.memory_space<vmem>>, %arg15: memref<1x32xf32, #tpu.memory_space<vmem>>, %arg16: memref<1x32xf32, #tpu.memory_space<vmem>>, %arg17: memref<1x8x32xf32, #tpu.memory_space<vmem>>, %arg18: memref<2x1x8x32xf32, #tpu.memory_space<vmem>>, %arg19: memref<4x8x8xbf16, #tpu.memory_space<vmem>>, %arg20: memref<4x8x8xbf16, #tpu.memory_space<vmem>>, %arg21: memref<4x8x8xbf16, #tpu.memory_space<vmem>>, %arg22: memref<4x8x8xf32, #tpu.memory_space<vmem>>, %arg23: memref<4x8x1xf32, #tpu.memory_space<vmem>>, %arg24: memref<4x8x1xf32, #tpu.memory_space<vmem>>) attributes {dimension_semantics = [#tpu.dimension_semantics<parallel>, #tpu.dimension_semantics<arbitrary>], iteration_bounds = array<i64: 2, 1>, scalar_prefetch = 0 : i64, scratch_operands = 6 : i64, tpu.core_type = #tpu.core_type<tc>, window_params = [{transform_indices = @transform_0, window_bounds = array<i64: 1, 8, 32>}, {pipeline_mode = #tpu.pipeline_mode<synchronous>, transform_indices = @transform_1, window_bounds = array<i64: 1, 32>}, {pipeline_mode = #tpu.pipeline_mode<synchronous>, transform_indices = @transform_2, window_bounds = array<i64: 1, 32>}, {pipeline_mode = #tpu.pipeline_mode<synchronous>, transform_indices = @transform_3, window_bounds = array<i64: 32, 96>}, {pipeline_mode = #tpu.pipeline_mode<synchronous>, transform_indices = @transform_4, window_bounds = array<i64: 1, 96>}, {pipeline_mode = #tpu.pipeline_mode<synchronous>, transform_indices = @transform_5, window_bounds = array<i64: 32, 32>}, {pipeline_mode = #tpu.pipeline_mode<synchronous>, transform_indices = @transform_6, window_bounds = array<i64: 1, 32>}, {pipeline_mode = #tpu.pipeline_mode<synchronous>, transform_indices = @transform_7, window_bounds = array<i64: 1, 32>}, {pipeline_mode = #tpu.pipeline_mode<synchronous>, transform_indices = @transform_8, window_bounds = array<i64: 1, 32>}, {pipeline_mode = #tpu.pipeline_mode<synchronous>, transform_indices = @transform_9, window_bounds = array<i64: 32, 128>}, {pipeline_mode = #tpu.pipeline_mode<synchronous>, transform_indices = @transform_10, window_bounds = array<i64: 1, 128>}, {pipeline_mode = #tpu.pipeline_mode<synchronous>, transform_indices = @transform_11, window_bounds = array<i64: 128, 32>}, {pipeline_mode = #tpu.pipeline_mode<synchronous>, transform_indices = @transform_12, window_bounds = array<i64: 1, 32>}, {pipeline_mode = #tpu.pipeline_mode<synchronous>, transform_indices = @transform_13, window_bounds = array<i64: 1, 32>}, {pipeline_mode = #tpu.pipeline_mode<synchronous>, transform_indices = @transform_14, window_bounds = array<i64: 1, 32>}, {transform_indices = @transform_15, window_bounds = array<i64: 1, 8, 32>}, {transform_indices = @transform_16, window_bounds = array<i64: 2, 1, 8, 32>}]} {
    %c0_i32 = arith.constant 0 : i32
    %0 = arith.cmpi eq, %arg1, %c0_i32 : i32
    %1 = arith.extui %0 : i1 to i32
    %c0_i32_0 = arith.constant 0 : i32
    %2 = arith.cmpi ne, %1, %c0_i32_0 : i32
    scf.if %2 {
      %c0_70 = arith.constant 0 : index
      %c0_71 = arith.constant 0 : index
      %c0_72 = arith.constant 0 : index
      %112 = vector.load %arg2[%c0_70, %c0_71, %c0_72] : memref<1x8x32xf32, #tpu.memory_space<vmem>>, vector<1x8x32xf32>
      %113 = vector.shape_cast %112 : vector<1x8x32xf32> to vector<8x32xf32>
      %c0_73 = arith.constant 0 : index
      %c0_74 = arith.constant 0 : index
      %114 = vector.load %arg3[%c0_73, %c0_74] : memref<1x32xf32, #tpu.memory_space<vmem>>, vector<1x32xf32>
      %c0_75 = arith.constant 0 : index
      %c0_76 = arith.constant 0 : index
      %115 = vector.load %arg4[%c0_75, %c0_76] : memref<1x32xf32, #tpu.memory_space<vmem>>, vector<1x32xf32>
      %cst_77 = arith.constant dense<0.000000e+00> : vector<8xf32>
      %116 = vector.multi_reduction <add>, %113, %cst_77 [1] : vector<8x32xf32> to vector<8xf32>
      %117 = vector.shape_cast %116 : vector<8xf32> to vector<8x1xf32>
      %cst_78 = arith.constant 3.200000e+01 : f32
      %118 = vector.broadcast %cst_78 : f32 to vector<8x1xf32>
      %119 = arith.divf %117, %118 : vector<8x1xf32>
      %120 = vector.broadcast %119 : vector<8x1xf32> to vector<8x32xf32>
      %121 = arith.subf %113, %120 : vector<8x32xf32>
      %122 = arith.mulf %121, %121 : vector<8x32xf32>
      %cst_79 = arith.constant dense<0.000000e+00> : vector<8xf32>
      %123 = vector.multi_reduction <add>, %122, %cst_79 [1] : vector<8x32xf32> to vector<8xf32>
      %124 = vector.shape_cast %123 : vector<8xf32> to vector<8x1xf32>
      %cst_80 = arith.constant 3.200000e+01 : f32
      %125 = vector.broadcast %cst_80 : f32 to vector<8x1xf32>
      %126 = arith.divf %124, %125 : vector<8x1xf32>
      %cst_81 = arith.constant 9.99999974E-6 : f32
      %127 = vector.broadcast %cst_81 : f32 to vector<8x1xf32>
      %128 = arith.addf %126, %127 : vector<8x1xf32>
      %129 = math.rsqrt %128 : vector<8x1xf32>
      %130 = vector.broadcast %129 : vector<8x1xf32> to vector<8x32xf32>
      %131 = arith.mulf %121, %130 : vector<8x32xf32>
      %132 = vector.broadcast %114 : vector<1x32xf32> to vector<8x32xf32>
      %133 = arith.mulf %131, %132 : vector<8x32xf32>
      %134 = vector.broadcast %115 : vector<1x32xf32> to vector<8x32xf32>
      %135 = arith.addf %133, %134 : vector<8x32xf32>
      %136 = arith.truncf %135 : vector<8x32xf32> to vector<8x32xbf16>
      %c0_82 = arith.constant 0 : index
      %c0_83 = arith.constant 0 : index
      %137 = vector.load %arg5[%c0_82, %c0_83] : memref<32x96xbf16, #tpu.memory_space<vmem>>, vector<32x96xbf16>
      %cst_84 = arith.constant dense<0.000000e+00> : vector<8x96xf32>
      %138 = tpu.matmul %136, %137, %cst_84 {dimension_numbers = #tpu.dot_dimension_numbers<[1], [0], [0], [1], [0, 0, 1, 1], [], []>} : vector<8x32xbf16>, vector<32x96xbf16>, vector<8x96xf32> -> vector<8x96xf32>
      %c0_85 = arith.constant 0 : index
      %c0_86 = arith.constant 0 : index
      %139 = vector.load %arg6[%c0_85, %c0_86] : memref<1x96xf32, #tpu.memory_space<vmem>>, vector<1x96xf32>
      %140 = vector.broadcast %139 : vector<1x96xf32> to vector<8x96xf32>
      %141 = arith.addf %138, %140 : vector<8x96xf32>
      %142 = vector.extract_strided_slice %141 {offsets = [0, 0], sizes = [8, 32], strides = [1, 1]} : vector<8x96xf32> to vector<8x32xf32>
      %cst_87 = arith.constant 0.353553385 : f32
      %143 = vector.broadcast %cst_87 : f32 to vector<8x32xf32>
      %144 = arith.mulf %142, %143 : vector<8x32xf32>
      %145 = vector.extract_strided_slice %141 {offsets = [0, 32], sizes = [8, 32], strides = [1, 1]} : vector<8x96xf32> to vector<8x32xf32>
      %146 = vector.extract_strided_slice %141 {offsets = [0, 64], sizes = [8, 32], strides = [1, 1]} : vector<8x96xf32> to vector<8x32xf32>
      %c0_88 = arith.constant 0 : index
      %c0_89 = arith.constant 0 : index
      %c0_90 = arith.constant 0 : index
      %c0_91 = arith.constant 0 : index
      %147 = vector.load %arg18[%c0_88, %c0_89, %c0_90, %c0_91] : memref<2x1x8x32xf32, #tpu.memory_space<vmem>>, vector<1x1x8x32xf32>
      %148 = vector.shape_cast %147 : vector<1x1x8x32xf32> to vector<8x32xf32>
      %149 = vector.shape_cast %145 : vector<8x32xf32> to vector<1x1x8x32xf32>
      tpu.vector_store %arg18[%c0_88, %c0_89, %c0_90, %c0_91], %149 {strides = array<i32>} : memref<2x1x8x32xf32, #tpu.memory_space<vmem>>, vector<1x1x8x32xf32>,
      %c1 = arith.constant 1 : index
      %c0_92 = arith.constant 0 : index
      %c0_93 = arith.constant 0 : index
      %c0_94 = arith.constant 0 : index
      %150 = vector.load %arg18[%c1, %c0_92, %c0_93, %c0_94] : memref<2x1x8x32xf32, #tpu.memory_space<vmem>>, vector<1x1x8x32xf32>
      %151 = vector.shape_cast %150 : vector<1x1x8x32xf32> to vector<8x32xf32>
      %152 = vector.shape_cast %146 : vector<8x32xf32> to vector<1x1x8x32xf32>
      tpu.vector_store %arg18[%c1, %c0_92, %c0_93, %c0_94], %152 {strides = array<i32>} : memref<2x1x8x32xf32, #tpu.memory_space<vmem>>, vector<1x1x8x32xf32>,
      %153 = vector.shape_cast %144 : vector<8x32xf32> to vector<8x4x8xf32>
      %154 = tpu.transpose %153, [1, 0, 2] : vector<8x4x8xf32> -> vector<4x8x8xf32>
      %155 = arith.truncf %154 : vector<4x8x8xf32> to vector<4x8x8xbf16>
      %c0_95 = arith.constant 0 : index
      %c0_96 = arith.constant 0 : index
      %c0_97 = arith.constant 0 : index
      %156 = vector.load %arg19[%c0_95, %c0_96, %c0_97] : memref<4x8x8xbf16, #tpu.memory_space<vmem>>, vector<4x8x8xbf16>
      tpu.vector_store %arg19[%c0_95, %c0_96, %c0_97], %155 {strides = array<i32>} : memref<4x8x8xbf16, #tpu.memory_space<vmem>>, vector<4x8x8xbf16>,
      %157 = vector.shape_cast %145 : vector<8x32xf32> to vector<8x4x8xf32>
      %158 = tpu.transpose %157, [1, 0, 2] : vector<8x4x8xf32> -> vector<4x8x8xf32>
      %159 = arith.truncf %158 : vector<4x8x8xf32> to vector<4x8x8xbf16>
      %c0_98 = arith.constant 0 : index
      %c0_99 = arith.constant 0 : index
      %c0_100 = arith.constant 0 : index
      %160 = vector.load %arg20[%c0_98, %c0_99, %c0_100] : memref<4x8x8xbf16, #tpu.memory_space<vmem>>, vector<4x8x8xbf16>
      tpu.vector_store %arg20[%c0_98, %c0_99, %c0_100], %159 {strides = array<i32>} : memref<4x8x8xbf16, #tpu.memory_space<vmem>>, vector<4x8x8xbf16>,
      %161 = vector.shape_cast %146 : vector<8x32xf32> to vector<8x4x8xf32>
      %162 = tpu.transpose %161, [1, 0, 2] : vector<8x4x8xf32> -> vector<4x8x8xf32>
      %163 = arith.truncf %162 : vector<4x8x8xf32> to vector<4x8x8xbf16>
      %c0_101 = arith.constant 0 : index
      %c0_102 = arith.constant 0 : index
      %c0_103 = arith.constant 0 : index
      %164 = vector.load %arg21[%c0_101, %c0_102, %c0_103] : memref<4x8x8xbf16, #tpu.memory_space<vmem>>, vector<4x8x8xbf16>
      tpu.vector_store %arg21[%c0_101, %c0_102, %c0_103], %163 {strides = array<i32>} : memref<4x8x8xbf16, #tpu.memory_space<vmem>>, vector<4x8x8xbf16>,
    } else {
    }
    %cst = arith.constant -1.000000e+30 : f32
    %3 = vector.broadcast %cst : f32 to vector<4x8x1xf32>
    %c0 = arith.constant 0 : index
    %c0_1 = arith.constant 0 : index
    %c0_2 = arith.constant 0 : index
    %4 = vector.load %arg23[%c0, %c0_1, %c0_2] : memref<4x8x1xf32, #tpu.memory_space<vmem>>, vector<4x8x1xf32>
    tpu.vector_store %arg23[%c0, %c0_1, %c0_2], %3 {strides = array<i32>} : memref<4x8x1xf32, #tpu.memory_space<vmem>>, vector<4x8x1xf32>,
    %cst_3 = arith.constant 0.000000e+00 : f32
    %5 = vector.broadcast %cst_3 : f32 to vector<4x8x1xf32>
    %c0_4 = arith.constant 0 : index
    %c0_5 = arith.constant 0 : index
    %c0_6 = arith.constant 0 : index
    %6 = vector.load %arg24[%c0_4, %c0_5, %c0_6] : memref<4x8x1xf32, #tpu.memory_space<vmem>>, vector<4x8x1xf32>
    tpu.vector_store %arg24[%c0_4, %c0_5, %c0_6], %5 {strides = array<i32>} : memref<4x8x1xf32, #tpu.memory_space<vmem>>, vector<4x8x1xf32>,
    %cst_7 = arith.constant 0.000000e+00 : f32
    %7 = vector.broadcast %cst_7 : f32 to vector<4x8x8xf32>
    %c0_8 = arith.constant 0 : index
    %c0_9 = arith.constant 0 : index
    %c0_10 = arith.constant 0 : index
    %8 = vector.load %arg22[%c0_8, %c0_9, %c0_10] : memref<4x8x8xf32, #tpu.memory_space<vmem>>, vector<4x8x8xf32>
    tpu.vector_store %arg22[%c0_8, %c0_9, %c0_10], %7 {strides = array<i32>} : memref<4x8x8xf32, #tpu.memory_space<vmem>>, vector<4x8x8xf32>,
    %c8_i32 = arith.constant 8 : i32
    %9 = arith.muli %arg1, %c8_i32 : i32
    %10 = tpu.assume_multiple %9, 8 : i32
    %c0_11 = arith.constant 0 : index
    %11 = arith.index_cast %10 : i32 to index
    %c0_12 = arith.constant 0 : index
    %12 = vector.load %arg19[%c0_11, %11, %c0_12] : memref<4x8x8xbf16, #tpu.memory_space<vmem>>, vector<4x8x8xbf16>
    %c1_i32 = arith.constant 1 : i32
    %13 = arith.addi %arg1, %c1_i32 : i32
    %c0_i32_13 = arith.constant 0 : i32
    %14 = arith.subi %13, %c0_i32_13 : i32
    %c1_i32_14 = arith.constant 1 : i32
    %c1_i32_15 = arith.constant 1 : i32
    %15 = arith.subi %c1_i32_14, %c1_i32_15 : i32
    %16 = arith.addi %14, %15 : i32
    %c1_i32_16 = arith.constant 1 : i32
    %17 = arith.divsi %16, %c1_i32_16 : i32
    %c1_i32_17 = arith.constant 1 : i32
    %c0_i32_18 = arith.constant 0 : i32
    %c0_i32_19 = arith.constant 0 : i32
    %18 = arith.subi %17, %c0_i32_19 : i32
    %19 = arith.addi %c0_i32_19, %18 : i32
    %c1_i32_20 = arith.constant 1 : i32
    scf.for %arg25 = %c0_i32_19 to %19 step %c1_i32_20  : i32 {
      %112 = arith.muli %arg25, %c1_i32_17 : i32
      %113 = arith.addi %c0_i32_18, %112 : i32
      %c8_i32_70 = arith.constant 8 : i32
      %114 = arith.muli %113, %c8_i32_70 : i32
      %115 = tpu.assume_multiple %114, 8 : i32
      %c0_71 = arith.constant 0 : index
      %116 = arith.index_cast %115 : i32 to index
      %c0_72 = arith.constant 0 : index
      %117 = vector.load %arg20[%c0_71, %116, %c0_72] : memref<4x8x8xbf16, #tpu.memory_space<vmem>>, vector<4x8x8xbf16>
      %c0_73 = arith.constant 0 : index
      %118 = arith.index_cast %115 : i32 to index
      %c0_74 = arith.constant 0 : index
      %119 = vector.load %arg21[%c0_73, %118, %c0_74] : memref<4x8x8xbf16, #tpu.memory_space<vmem>>, vector<4x8x8xbf16>
      "tpu.trace_start"() <{level = 10 : i32, message = "hqd,hkd->hqk"}> : () -> ()
      %cst_75 = arith.constant dense<0.000000e+00> : vector<4x8x8xf32>
      %120 = tpu.matmul %12, %117, %cst_75 {dimension_numbers = #tpu.dot_dimension_numbers<[2], [2], [1], [1], [0, 0, 0, 1, 1, 1], [0], [0]>} : vector<4x8x8xbf16>, vector<4x8x8xbf16>, vector<4x8x8xf32> -> vector<4x8x8xf32>
      "tpu.trace_stop"() : () -> ()
      %121 = tpu.iota {dimensions = array<i32: 0>} : vector<8x8xi32>
      %122 = vector.broadcast %10 : i32 to vector<8x8xi32>
      %123 = arith.addi %121, %122 : vector<8x8xi32>
      %124 = tpu.iota {dimensions = array<i32: 1>} : vector<8x8xi32>
      %125 = vector.broadcast %115 : i32 to vector<8x8xi32>
      %126 = arith.addi %124, %125 : vector<8x8xi32>
      %127 = arith.cmpi sle, %126, %123 : vector<8x8xi32>
      %128 = vector.shape_cast %127 : vector<8x8xi1> to vector<1x8x8xi1>
      %cst_76 = arith.constant -1.000000e+10 : f32
      %129 = vector.shape_cast %128 : vector<1x8x8xi1> to vector<1x8x8xi1>
      %130 = vector.broadcast %129 : vector<1x8x8xi1> to vector<4x8x8xi1>
      %131 = vector.broadcast %cst_76 : f32 to vector<4x8x8xf32>
      %132 = arith.select %130, %120, %131 : vector<4x8x8xi1>, vector<4x8x8xf32>
      %c0_77 = arith.constant 0 : index
      %c0_78 = arith.constant 0 : index
      %c0_79 = arith.constant 0 : index
      %133 = vector.load %arg23[%c0_77, %c0_78, %c0_79] : memref<4x8x1xf32, #tpu.memory_space<vmem>>, vector<4x8x1xf32>
      %cst_80 = arith.constant dense<0xFF800000> : vector<4x8xf32>
      %134 = vector.multi_reduction <maximumf>, %132, %cst_80 [2] : vector<4x8x8xf32> to vector<4x8xf32>
      %135 = vector.shape_cast %134 : vector<4x8xf32> to vector<4x8x1xf32>
      %136 = arith.maximumf %133, %135 : vector<4x8x1xf32>
      %137 = arith.subf %133, %136 : vector<4x8x1xf32>
      %138 = math.exp %137 : vector<4x8x1xf32>
      %139 = vector.broadcast %136 : vector<4x8x1xf32> to vector<4x8x8xf32>
      %140 = arith.subf %132, %139 : vector<4x8x8xf32>
      %141 = math.exp %140 : vector<4x8x8xf32>
      %c0_81 = arith.constant 0 : index
      %c0_82 = arith.constant 0 : index
      %c0_83 = arith.constant 0 : index
      %142 = vector.load %arg24[%c0_81, %c0_82, %c0_83] : memref<4x8x1xf32, #tpu.memory_space<vmem>>, vector<4x8x1xf32>
      %143 = arith.mulf %138, %142 : vector<4x8x1xf32>
      %cst_84 = arith.constant dense<0.000000e+00> : vector<4x8xf32>
      %144 = vector.multi_reduction <add>, %141, %cst_84 [2] : vector<4x8x8xf32> to vector<4x8xf32>
      %145 = vector.shape_cast %144 : vector<4x8xf32> to vector<4x8x1xf32>
      %146 = arith.addf %143, %145 : vector<4x8x1xf32>
      %c0_85 = arith.constant 0 : index
      %c0_86 = arith.constant 0 : index
      %c0_87 = arith.constant 0 : index
      %147 = vector.load %arg24[%c0_85, %c0_86, %c0_87] : memref<4x8x1xf32, #tpu.memory_space<vmem>>, vector<4x8x1xf32>
      tpu.vector_store %arg24[%c0_85, %c0_86, %c0_87], %146 {strides = array<i32>} : memref<4x8x1xf32, #tpu.memory_space<vmem>>, vector<4x8x1xf32>,
      %c0_88 = arith.constant 0 : index
      %c0_89 = arith.constant 0 : index
      %c0_90 = arith.constant 0 : index
      %148 = vector.load %arg22[%c0_88, %c0_89, %c0_90] : memref<4x8x8xf32, #tpu.memory_space<vmem>>, vector<4x8x8xf32>
      %149 = vector.broadcast %138 : vector<4x8x1xf32> to vector<4x8x8xf32>
      %150 = arith.mulf %149, %148 : vector<4x8x8xf32>
      %151 = arith.truncf %141 : vector<4x8x8xf32> to vector<4x8x8xbf16>
      "tpu.trace_start"() <{level = 10 : i32, message = "hqk,hkd->hqd"}> : () -> ()
      %cst_91 = arith.constant dense<0.000000e+00> : vector<4x8x8xf32>
      %152 = tpu.matmul %151, %119, %cst_91 {dimension_numbers = #tpu.dot_dimension_numbers<[2], [1], [1], [2], [0, 0, 0, 1, 1, 2], [0], [0]>} : vector<4x8x8xbf16>, vector<4x8x8xbf16>, vector<4x8x8xf32> -> vector<4x8x8xf32>
      "tpu.trace_stop"() : () -> ()
      %153 = arith.addf %150, %152 : vector<4x8x8xf32>
      %c0_92 = arith.constant 0 : index
      %c0_93 = arith.constant 0 : index
      %c0_94 = arith.constant 0 : index
      %154 = vector.load %arg22[%c0_92, %c0_93, %c0_94] : memref<4x8x8xf32, #tpu.memory_space<vmem>>, vector<4x8x8xf32>
      tpu.vector_store %arg22[%c0_92, %c0_93, %c0_94], %153 {strides = array<i32>} : memref<4x8x8xf32, #tpu.memory_space<vmem>>, vector<4x8x8xf32>,
      %c0_95 = arith.constant 0 : index
      %c0_96 = arith.constant 0 : index
      %c0_97 = arith.constant 0 : index
      %155 = vector.load %arg23[%c0_95, %c0_96, %c0_97] : memref<4x8x1xf32, #tpu.memory_space<vmem>>, vector<4x8x1xf32>
      tpu.vector_store %arg23[%c0_95, %c0_96, %c0_97], %136 {strides = array<i32>} : memref<4x8x1xf32, #tpu.memory_space<vmem>>, vector<4x8x1xf32>,
    }
    %c0_21 = arith.constant 0 : index
    %c0_22 = arith.constant 0 : index
    %c0_23 = arith.constant 0 : index
    %20 = vector.load %arg22[%c0_21, %c0_22, %c0_23] : memref<4x8x8xf32, #tpu.memory_space<vmem>>, vector<4x8x8xf32>
    %c0_24 = arith.constant 0 : index
    %c0_25 = arith.constant 0 : index
    %c0_26 = arith.constant 0 : index
    %21 = vector.load %arg24[%c0_24, %c0_25, %c0_26] : memref<4x8x1xf32, #tpu.memory_space<vmem>>, vector<4x8x1xf32>
    %22 = tpu.reciprocal %21 {approx = true} : vector<4x8x1xf32> -> vector<4x8x1xf32>
    %23 = vector.broadcast %22 : vector<4x8x1xf32> to vector<4x8x8xf32>
    %24 = arith.mulf %20, %23 : vector<4x8x8xf32>
    %25 = tpu.transpose %24, [1, 0, 2] : vector<4x8x8xf32> -> vector<8x4x8xf32>
    %26 = vector.shape_cast %25 : vector<8x4x8xf32> to vector<8x32xf32>
    %27 = arith.truncf %26 : vector<8x32xf32> to vector<8x32xbf16>
    %c0_27 = arith.constant 0 : index
    %c0_28 = arith.constant 0 : index
    %28 = vector.load %arg7[%c0_27, %c0_28] : memref<32x32xbf16, #tpu.memory_space<vmem>>, vector<32x32xbf16>
    %cst_29 = arith.constant dense<0.000000e+00> : vector<8x32xf32>
    %29 = tpu.matmul %27, %28, %cst_29 {dimension_numbers = #tpu.dot_dimension_numbers<[1], [0], [0], [1], [0, 0, 1, 1], [], []>} : vector<8x32xbf16>, vector<32x32xbf16>, vector<8x32xf32> -> vector<8x32xf32>
    %c0_30 = arith.constant 0 : index
    %c0_31 = arith.constant 0 : index
    %30 = vector.load %arg8[%c0_30, %c0_31] : memref<1x32xf32, #tpu.memory_space<vmem>>, vector<1x32xf32>
    %31 = vector.broadcast %30 : vector<1x32xf32> to vector<8x32xf32>
    %32 = arith.addf %29, %31 : vector<8x32xf32>
    %c0_32 = arith.constant 0 : index
    %33 = arith.index_cast %10 : i32 to index
    %c0_33 = arith.constant 0 : index
    %34 = vector.load %arg2[%c0_32, %33, %c0_33] : memref<1x8x32xf32, #tpu.memory_space<vmem>>, vector<1x8x32xf32>
    %35 = vector.shape_cast %34 : vector<1x8x32xf32> to vector<8x32xf32>
    %36 = arith.addf %35, %32 : vector<8x32xf32>
    %c0_34 = arith.constant 0 : index
    %c0_35 = arith.constant 0 : index
    %37 = vector.load %arg9[%c0_34, %c0_35] : memref<1x32xf32, #tpu.memory_space<vmem>>, vector<1x32xf32>
    %c0_36 = arith.constant 0 : index
    %c0_37 = arith.constant 0 : index
    %38 = vector.load %arg10[%c0_36, %c0_37] : memref<1x32xf32, #tpu.memory_space<vmem>>, vector<1x32xf32>
    %cst_38 = arith.constant dense<0.000000e+00> : vector<8xf32>
    %39 = vector.multi_reduction <add>, %36, %cst_38 [1] : vector<8x32xf32> to vector<8xf32>
    %40 = vector.shape_cast %39 : vector<8xf32> to vector<8x1xf32>
    %cst_39 = arith.constant 3.200000e+01 : f32
    %41 = vector.broadcast %cst_39 : f32 to vector<8x1xf32>
    %42 = arith.divf %40, %41 : vector<8x1xf32>
    %43 = vector.broadcast %42 : vector<8x1xf32> to vector<8x32xf32>
    %44 = arith.subf %36, %43 : vector<8x32xf32>
    %45 = arith.mulf %44, %44 : vector<8x32xf32>
    %cst_40 = arith.constant dense<0.000000e+00> : vector<8xf32>
    %46 = vector.multi_reduction <add>, %45, %cst_40 [1] : vector<8x32xf32> to vector<8xf32>
    %47 = vector.shape_cast %46 : vector<8xf32> to vector<8x1xf32>
    %cst_41 = arith.constant 3.200000e+01 : f32
    %48 = vector.broadcast %cst_41 : f32 to vector<8x1xf32>
    %49 = arith.divf %47, %48 : vector<8x1xf32>
    %cst_42 = arith.constant 9.99999974E-6 : f32
    %50 = vector.broadcast %cst_42 : f32 to vector<8x1xf32>
    %51 = arith.addf %49, %50 : vector<8x1xf32>
    %52 = math.rsqrt %51 : vector<8x1xf32>
    %53 = vector.broadcast %52 : vector<8x1xf32> to vector<8x32xf32>
    %54 = arith.mulf %44, %53 : vector<8x32xf32>
    %55 = vector.broadcast %37 : vector<1x32xf32> to vector<8x32xf32>
    %56 = arith.mulf %54, %55 : vector<8x32xf32>
    %57 = vector.broadcast %38 : vector<1x32xf32> to vector<8x32xf32>
    %58 = arith.addf %56, %57 : vector<8x32xf32>
    %59 = arith.truncf %58 : vector<8x32xf32> to vector<8x32xbf16>
    %cst_43 = arith.constant 0.000000e+00 : f32
    %60 = vector.broadcast %cst_43 : f32 to vector<8x32xf32>
    %c0_44 = arith.constant 0 : index
    %c0_45 = arith.constant 0 : index
    %61 = vector.load %arg11[%c0_44, %c0_45] : memref<32x128xbf16, #tpu.memory_space<vmem>>, vector<32x128xbf16>
    %cst_46 = arith.constant dense<0.000000e+00> : vector<8x128xf32>
    %62 = tpu.matmul %59, %61, %cst_46 {dimension_numbers = #tpu.dot_dimension_numbers<[1], [0], [0], [1], [0, 0, 1, 1], [], []>} : vector<8x32xbf16>, vector<32x128xbf16>, vector<8x128xf32> -> vector<8x128xf32>
    %c0_47 = arith.constant 0 : index
    %c0_48 = arith.constant 0 : index
    %63 = vector.load %arg12[%c0_47, %c0_48] : memref<1x128xf32, #tpu.memory_space<vmem>>, vector<1x128xf32>
    %64 = vector.broadcast %63 : vector<1x128xf32> to vector<8x128xf32>
    %65 = arith.addf %62, %64 : vector<8x128xf32>
    %cst_49 = arith.constant 5.000000e-01 : f32
    %66 = vector.broadcast %cst_49 : f32 to vector<8x128xf32>
    %67 = arith.mulf %66, %65 : vector<8x128xf32>
    %cst_50 = arith.constant 4.471500e-02 : f32
    %68 = vector.broadcast %cst_50 : f32 to vector<8x128xf32>
    %69 = arith.mulf %68, %65 : vector<8x128xf32>
    %70 = arith.mulf %69, %65 : vector<8x128xf32>
    %71 = arith.mulf %70, %65 : vector<8x128xf32>
    %72 = arith.addf %65, %71 : vector<8x128xf32>
    %cst_51 = arith.constant 0.797884583 : f32
    %73 = vector.broadcast %cst_51 : f32 to vector<8x128xf32>
    %74 = arith.mulf %73, %72 : vector<8x128xf32>
    %75 = math.tanh %74 : vector<8x128xf32>
    %cst_52 = arith.constant 1.000000e+00 : f32
    %76 = vector.broadcast %cst_52 : f32 to vector<8x128xf32>
    %77 = arith.addf %76, %75 : vector<8x128xf32>
    %78 = arith.mulf %67, %77 : vector<8x128xf32>
    %79 = arith.truncf %78 : vector<8x128xf32> to vector<8x128xbf16>
    %c0_53 = arith.constant 0 : index
    %c0_54 = arith.constant 0 : index
    %80 = vector.load %arg13[%c0_53, %c0_54] : memref<128x32xbf16, #tpu.memory_space<vmem>>, vector<128x32xbf16>
    %cst_55 = arith.constant dense<0.000000e+00> : vector<8x32xf32>
    %81 = tpu.matmul %79, %80, %cst_55 {dimension_numbers = #tpu.dot_dimension_numbers<[1], [0], [0], [1], [0, 0, 1, 1], [], []>} : vector<8x128xbf16>, vector<128x32xbf16>, vector<8x32xf32> -> vector<8x32xf32>
    %82 = arith.addf %60, %81 : vector<8x32xf32>
    %83 = arith.addf %36, %82 : vector<8x32xf32>
    %c0_56 = arith.constant 0 : index
    %c0_57 = arith.constant 0 : index
    %84 = vector.load %arg14[%c0_56, %c0_57] : memref<1x32xf32, #tpu.memory_space<vmem>>, vector<1x32xf32>
    %85 = vector.broadcast %84 : vector<1x32xf32> to vector<8x32xf32>
    %86 = arith.addf %83, %85 : vector<8x32xf32>
    %c0_58 = arith.constant 0 : index
    %c0_59 = arith.constant 0 : index
    %87 = vector.load %arg15[%c0_58, %c0_59] : memref<1x32xf32, #tpu.memory_space<vmem>>, vector<1x32xf32>
    %c0_60 = arith.constant 0 : index
    %c0_61 = arith.constant 0 : index
    %88 = vector.load %arg16[%c0_60, %c0_61] : memref<1x32xf32, #tpu.memory_space<vmem>>, vector<1x32xf32>
    %cst_62 = arith.constant dense<0.000000e+00> : vector<8xf32>
    %89 = vector.multi_reduction <add>, %86, %cst_62 [1] : vector<8x32xf32> to vector<8xf32>
    %90 = vector.shape_cast %89 : vector<8xf32> to vector<8x1xf32>
    %cst_63 = arith.constant 3.200000e+01 : f32
    %91 = vector.broadcast %cst_63 : f32 to vector<8x1xf32>
    %92 = arith.divf %90, %91 : vector<8x1xf32>
    %93 = vector.broadcast %92 : vector<8x1xf32> to vector<8x32xf32>
    %94 = arith.subf %86, %93 : vector<8x32xf32>
    %95 = arith.mulf %94, %94 : vector<8x32xf32>
    %cst_64 = arith.constant dense<0.000000e+00> : vector<8xf32>
    %96 = vector.multi_reduction <add>, %95, %cst_64 [1] : vector<8x32xf32> to vector<8xf32>
    %97 = vector.shape_cast %96 : vector<8xf32> to vector<8x1xf32>
    %cst_65 = arith.constant 3.200000e+01 : f32
    %98 = vector.broadcast %cst_65 : f32 to vector<8x1xf32>
    %99 = arith.divf %97, %98 : vector<8x1xf32>
    %cst_66 = arith.constant 9.99999974E-6 : f32
    %100 = vector.broadcast %cst_66 : f32 to vector<8x1xf32>
    %101 = arith.addf %99, %100 : vector<8x1xf32>
    %102 = math.rsqrt %101 : vector<8x1xf32>
    %103 = vector.broadcast %102 : vector<8x1xf32> to vector<8x32xf32>
    %104 = arith.mulf %94, %103 : vector<8x32xf32>
    %105 = vector.broadcast %87 : vector<1x32xf32> to vector<8x32xf32>
    %106 = arith.mulf %104, %105 : vector<8x32xf32>
    %107 = vector.broadcast %88 : vector<1x32xf32> to vector<8x32xf32>
    %108 = arith.addf %106, %107 : vector<8x32xf32>
    %c0_67 = arith.constant 0 : index
    %c0_68 = arith.constant 0 : index
    %c0_69 = arith.constant 0 : index
    %109 = vector.load %arg17[%c0_67, %c0_68, %c0_69] : memref<1x8x32xf32, #tpu.memory_space<vmem>>, vector<1x8x32xf32>
    %110 = vector.shape_cast %109 : vector<1x8x32xf32> to vector<8x32xf32>
    %111 = vector.shape_cast %108 : vector<8x32xf32> to vector<1x8x32xf32>
    tpu.vector_store %arg17[%c0_67, %c0_68, %c0_69], %111 {strides = array<i32>} : memref<1x8x32xf32, #tpu.memory_space<vmem>>, vector<1x8x32xf32>,
    return
  }
  func.func @transform_0(%arg0: i32, %arg1: i32) -> (i32, i32, i32) {
    %c0_i32 = arith.constant 0 : i32
    %c0_i32_0 = arith.constant 0 : i32
    %c0_i32_1 = arith.constant 0 : i32
    return %arg0, %c0_i32, %c0_i32_0 : i32, i32, i32
  }
  func.func @transform_1(%arg0: i32, %arg1: i32) -> (i32, i32) {
    %c0_i32 = arith.constant 0 : i32
    %c0_i32_0 = arith.constant 0 : i32
    %c0_i32_1 = arith.constant 0 : i32
    return %c0_i32, %c0_i32_0 : i32, i32
  }
  func.func @transform_2(%arg0: i32, %arg1: i32) -> (i32, i32) {
    %c0_i32 = arith.constant 0 : i32
    %c0_i32_0 = arith.constant 0 : i32
    %c0_i32_1 = arith.constant 0 : i32
    return %c0_i32, %c0_i32_0 : i32, i32
  }
  func.func @transform_3(%arg0: i32, %arg1: i32) -> (i32, i32) {
    %c0_i32 = arith.constant 0 : i32
    %c0_i32_0 = arith.constant 0 : i32
    %c0_i32_1 = arith.constant 0 : i32
    return %c0_i32, %c0_i32_0 : i32, i32
  }
  func.func @transform_4(%arg0: i32, %arg1: i32) -> (i32, i32) {
    %c0_i32 = arith.constant 0 : i32
    %c0_i32_0 = arith.constant 0 : i32
    %c0_i32_1 = arith.constant 0 : i32
    return %c0_i32, %c0_i32_0 : i32, i32
  }
  func.func @transform_5(%arg0: i32, %arg1: i32) -> (i32, i32) {
    %c0_i32 = arith.constant 0 : i32
    %c0_i32_0 = arith.constant 0 : i32
    %c0_i32_1 = arith.constant 0 : i32
    return %c0_i32, %c0_i32_0 : i32, i32
  }
  func.func @transform_6(%arg0: i32, %arg1: i32) -> (i32, i32) {
    %c0_i32 = arith.constant 0 : i32
    %c0_i32_0 = arith.constant 0 : i32
    %c0_i32_1 = arith.constant 0 : i32
    return %c0_i32, %c0_i32_0 : i32, i32
  }
  func.func @transform_7(%arg0: i32, %arg1: i32) -> (i32, i32) {
    %c0_i32 = arith.constant 0 : i32
    %c0_i32_0 = arith.constant 0 : i32
    %c0_i32_1 = arith.constant 0 : i32
    return %c0_i32, %c0_i32_0 : i32, i32
  }
  func.func @transform_8(%arg0: i32, %arg1: i32) -> (i32, i32) {
    %c0_i32 = arith.constant 0 : i32
    %c0_i32_0 = arith.constant 0 : i32
    %c0_i32_1 = arith.constant 0 : i32
    return %c0_i32, %c0_i32_0 : i32, i32
  }
  func.func @transform_9(%arg0: i32, %arg1: i32) -> (i32, i32) {
    %c0_i32 = arith.constant 0 : i32
    %c0_i32_0 = arith.constant 0 : i32
    %c0_i32_1 = arith.constant 0 : i32
    return %c0_i32, %c0_i32_0 : i32, i32
  }
  func.func @transform_10(%arg0: i32, %arg1: i32) -> (i32, i32) {
    %c0_i32 = arith.constant 0 : i32
    %c0_i32_0 = arith.constant 0 : i32
    %c0_i32_1 = arith.constant 0 : i32
    return %c0_i32, %c0_i32_0 : i32, i32
  }
  func.func @transform_11(%arg0: i32, %arg1: i32) -> (i32, i32) {
    %c0_i32 = arith.constant 0 : i32
    %c0_i32_0 = arith.constant 0 : i32
    %c0_i32_1 = arith.constant 0 : i32
    return %c0_i32, %c0_i32_0 : i32, i32
  }
  func.func @transform_12(%arg0: i32, %arg1: i32) -> (i32, i32) {
    %c0_i32 = arith.constant 0 : i32
    %c0_i32_0 = arith.constant 0 : i32
    %c0_i32_1 = arith.constant 0 : i32
    return %c0_i32, %c0_i32_0 : i32, i32
  }
  func.func @transform_13(%arg0: i32, %arg1: i32) -> (i32, i32) {
    %c0_i32 = arith.constant 0 : i32
    %c0_i32_0 = arith.constant 0 : i32
    %c0_i32_1 = arith.constant 0 : i32
    return %c0_i32, %c0_i32_0 : i32, i32
  }
  func.func @transform_14(%arg0: i32, %arg1: i32) -> (i32, i32) {
    %c0_i32 = arith.constant 0 : i32
    %c0_i32_0 = arith.constant 0 : i32
    %c0_i32_1 = arith.constant 0 : i32
    return %c0_i32, %c0_i32_0 : i32, i32
  }
  func.func @transform_15(%arg0: i32, %arg1: i32) -> (i32, i32, i32) {
    %c0_i32 = arith.constant 0 : i32
    %c0_i32_0 = arith.constant 0 : i32
    return %arg0, %arg1, %c0_i32 : i32, i32, i32
  }
  func.func @transform_16(%arg0: i32, %arg1: i32) -> (i32, i32, i32, i32) {
    %c0_i32 = arith.constant 0 : i32
    %c0_i32_0 = arith.constant 0 : i32
    %c0_i32_1 = arith.constant 0 : i32
    %c0_i32_2 = arith.constant 0 : i32
    return %c0_i32, %arg0, %c0_i32_0, %c0_i32_1 : i32, i32, i32, i32
  }
}

</mosaic_0001>

<llo_original>
// kernel: gpt2_forward.2
$region0: #{gpt2_forward.2}
  #allocation0 [shape = 'u32[]', space=smem, size = 0x4, offset = 0x4, fixed_abs, tag = 'smem constant byte address 0x4 - core index']
  #allocation1 [shape = 'u32[144,128]{1,0:T(1,128)}', space=vmem, size = 0x12000, scoped, tag = 'internal scratch']
  #allocation2 [shape = 'bf16[4,8,8]{2,1,0:T(8,128)(2,1)}', space=vmem, size = 0x2000, scoped, tag = 'scratch operand']
  #allocation3 [shape = 'bf16[4,8,8]{2,1,0:T(8,128)(2,1)}', space=vmem, size = 0x2000, scoped, tag = 'scratch operand']
  #allocation4 [shape = 'bf16[4,8,8]{2,1,0:T(8,128)(2,1)}', space=vmem, size = 0x2000, scoped, tag = 'scratch operand']
  #allocation5 [shape = 'f32[4,8,8]{2,1,0:T(8,128)}', space=vmem, size = 0x4000, scoped, tag = 'scratch operand']
  #allocation6 [shape = 'f32[4,8,1]{2,1,0:T(8,128)}', space=vmem, size = 0x4000, scoped, tag = 'scratch operand']
  #allocation7 [shape = 'f32[4,8,1]{2,1,0:T(8,128)}', space=vmem, size = 0x4000, scoped, tag = 'scratch operand']
  %s0 = inlined_call_operand.vmem [shape: f32[2,8,32], index: 0, kind: input, shape index: {}]
  %s1 = inlined_call_operand.vmem [shape: f32[1,32], index: 1, kind: input, shape index: {}]
  %s2 = inlined_call_operand.vmem [shape: f32[1,32], index: 2, kind: input, shape index: {}]
  %s3 = inlined_call_operand.vmem [shape: bf16[32,96], index: 3, kind: input, shape index: {}]
  %s4 = inlined_call_operand.vmem [shape: f32[1,96], index: 4, kind: input, shape index: {}]
  %s5 = inlined_call_operand.vmem [shape: bf16[32,32], index: 5, kind: input, shape index: {}]
  %s6 = inlined_call_operand.vmem [shape: f32[1,32], index: 6, kind: input, shape index: {}]
  %s7 = inlined_call_operand.vmem [shape: f32[1,32], index: 7, kind: input, shape index: {}]
  %s8 = inlined_call_operand.vmem [shape: f32[1,32], index: 8, kind: input, shape index: {}]
  %s9 = inlined_call_operand.vmem [shape: bf16[32,128], index: 9, kind: input, shape index: {}]
  %s10 = inlined_call_operand.vmem [shape: f32[1,128], index: 10, kind: input, shape index: {}]
  %s11 = inlined_call_operand.vmem [shape: bf16[128,32], index: 11, kind: input, shape index: {}]
  %s12 = inlined_call_operand.vmem [shape: f32[1,32], index: 12, kind: input, shape index: {}]
  %s13 = inlined_call_operand.vmem [shape: f32[2,8,32], index: 13, kind: output, shape index: {0}]
  %s14 = inlined_call_operand.vmem [shape: f32[2,2,8,32], index: 14, kind: output, shape index: {1}]
  %15 = xla_tuple %s13, %s14
  %s16 = sld [smem:[#allocation0]]
  $region138: #{gpt2_forward.2} parent=0
    _
  %s18 = ssub.s32 1, %s16
  %s19 = scalar_select 0, %s18, %s16
  $region1: #{gpt2_forward.2} parent=0
    #allocation8 [shape = 'u8[16384]{0}', space=vmem, size = 0x4000, scoped, tag = 'output window, operand 1']
    loop: start=0, step=1, limit=4
    $region2: #{gpt2_forward.2} parent=1 // loop_pre_header
      _
    $region3: #{gpt2_forward.2} parent=1 // loop_header
      %s21 = sphi 0, %s25
      %p22 = scmp.ge.s32.totalorder %s21, 4
      %s28 = sphi 0, %s40
      %s29 = sphi 0, %s36
      %s30 = sphi 0, %s28
      %s31 = sphi 0, %s29
      %s32 = sphi 0, %s30
      %s33 = sphi 0, %s31
      %s43 = sphi 0, %s45
      %s46 = sphi 0, %s43
      %s47 = sphi 0, %s46
      %s63 = sphi 0, %s47
      %s67 = sphi 0, %s67
      %s69 = sphi 0, %s67
      %s70 = sphi 0, %s69
      %s84 = sphi 0, %s70
      %s88 = sphi 0, %s88
      %s90 = sphi 0, %s88
      %s91 = sphi 0, %s90
      %s105 = sphi 0, %s91
      %s109 = sphi 0, %s109
      %s111 = sphi 0, %s109
      %s112 = sphi 0, %s111
      %s126 = sphi 0, %s112
      %s130 = sphi 0, %s130
      %s132 = sphi 0, %s130
      %s133 = sphi 0, %s132
      %s147 = sphi 0, %s133
      %s151 = sphi 0, %s151
      %s153 = sphi 0, %s151
      %s154 = sphi 0, %s153
      %s168 = sphi 0, %s154
      %s172 = sphi 0, %s172
      %s174 = sphi 0, %s172
      %s175 = sphi 0, %s174
      %s189 = sphi 0, %s175
      %s193 = sphi 0, %s193
      %s195 = sphi 0, %s193
      %s196 = sphi 0, %s195
      %s210 = sphi 0, %s196
      %s214 = sphi 0, %s214
      %s216 = sphi 0, %s214
      %s217 = sphi 0, %s216
      %s231 = sphi 0, %s217
      %s235 = sphi 0, %s235
      %s237 = sphi 0, %s235
      %s238 = sphi 0, %s237
      %s252 = sphi 0, %s238
      %s256 = sphi 0, %s256
      %s258 = sphi 0, %s256
      %s259 = sphi 0, %s258
      %s273 = sphi 0, %s259
      %s277 = sphi 0, %s277
      %s279 = sphi 0, %s277
      %s280 = sphi 0, %s279
      %s294 = sphi 0, %s280
      %s298 = sphi 0, %s298
      %s300 = sphi 0, %s298
      %s301 = sphi 0, %s300
      %s315 = sphi 0, %s301
      %s323 = sphi 0, %s325
      %s326 = sphi 0, %s323
      %s327 = sphi 0, %s326
      %s343 = sphi 0, %s327
      %s349 = sphi 0, %s351
      %s352 = sphi 0, %s349
      %s353 = sphi 0, %s352
      %s369 = sphi 0, %s353
    $region4: #{gpt2_forward.2} parent=1 // loop_header_branch
      %24 = sbr.rel (%p22) target = $region8
    $region5: #{gpt2_forward.2} parent=1 // loop_body
      %s26 = ssub.s32 %s21, 1
      %s27 = ssub.s32 %s21, 2
      %s34 = sadd.s32 1, %s29
      %p35 = scmp.ge.s32.totalorder %s34, 1
      %s36 = scalar_select %p35, 0, %s34
      %s37 = sadd.s32 1, %s28
      %s38 = scalar_select %p35, %s37, %s28
      %p39 = scmp.ge.s32.totalorder %s38, 2
      %s40 = scalar_select %p39, 0, %s38
      %s41 = ssub.s32 %s28, %s40
      %p42 = scmp.eq.s32.totalorder %s41, 0
      %s44 = sadd.s32 %s43, 1
      %s45 = scalar_select %p42, %s43, %s44
      %p48 = pneg %p42
      %p49 = scmp.eq.s32.totalorder %s21, 1
      %p50 = por %p48, %p49
      %p51 = scmp.ne.s32.totalorder %s43, %s46
      %p52 = scmp.eq.s32.totalorder %s21, 0
      %p53 = por %p51, %p52
      %p54 = scmp.ne.s32.totalorder %s43, %s46
      %p55 = scmp.eq.s32.totalorder %s26, 1
      %p56 = por %p54, %p55
      %p57 = scmp.ne.s32.totalorder %s46, %s47
      %p58 = scmp.eq.s32.totalorder %s26, 0
      %p59 = por %p57, %p58
      %p60 = scmp.ne.s32.totalorder %s46, %s47
      %p61 = scmp.eq.s32.totalorder %s27, 1
      %p62 = por %p60, %p61
      %p64 = scmp.ne.s32.totalorder %s47, %s63
      %p65 = scmp.eq.s32.totalorder %s27, 0
      %p66 = por %p64, %p65
      %s68 = sadd.s32 %s67, 1
      %p71 = scmp.eq.s32.totalorder %s21, 1
      %p72 = scmp.ne.s32.totalorder %s67, %s69
      %p73 = scmp.eq.s32.totalorder %s21, 0
      %p74 = por %p72, %p73
      %p75 = scmp.ne.s32.totalorder %s67, %s69
      %p76 = scmp.eq.s32.totalorder %s26, 1
      %p77 = por %p75, %p76
      %p78 = scmp.ne.s32.totalorder %s69, %s70
      %p79 = scmp.eq.s32.totalorder %s26, 0
      %p80 = por %p78, %p79
      %p81 = scmp.ne.s32.totalorder %s69, %s70
      %p82 = scmp.eq.s32.totalorder %s27, 1
      %p83 = por %p81, %p82
      %p85 = scmp.ne.s32.totalorder %s70, %s84
      %p86 = scmp.eq.s32.totalorder %s27, 0
      %p87 = por %p85, %p86
      %s89 = sadd.s32 %s88, 1
      %p92 = scmp.eq.s32.totalorder %s21, 1
      %p93 = scmp.ne.s32.totalorder %s88, %s90
      %p94 = scmp.eq.s32.totalorder %s21, 0
      %p95 = por %p93, %p94
      %p96 = scmp.ne.s32.totalorder %s88, %s90
      %p97 = scmp.eq.s32.totalorder %s26, 1
      %p98 = por %p96, %p97
      %p99 = scmp.ne.s32.totalorder %s90, %s91
      %p100 = scmp.eq.s32.totalorder %s26, 0
      %p101 = por %p99, %p100
      %p102 = scmp.ne.s32.totalorder %s90, %s91
      %p103 = scmp.eq.s32.totalorder %s27, 1
      %p104 = por %p102, %p103
      %p106 = scmp.ne.s32.totalorder %s91, %s105
      %p107 = scmp.eq.s32.totalorder %s27, 0
      %p108 = por %p106, %p107
      %s110 = sadd.s32 %s109, 1
      %p113 = scmp.eq.s32.totalorder %s21, 1
      %p114 = scmp.ne.s32.totalorder %s109, %s111
      %p115 = scmp.eq.s32.totalorder %s21, 0
      %p116 = por %p114, %p115
      %p117 = scmp.ne.s32.totalorder %s109, %s111
      %p118 = scmp.eq.s32.totalorder %s26, 1
      %p119 = por %p117, %p118
      %p120 = scmp.ne.s32.totalorder %s111, %s112
      %p121 = scmp.eq.s32.totalorder %s26, 0
      %p122 = por %p120, %p121
      %p123 = scmp.ne.s32.totalorder %s111, %s112
      %p124 = scmp.eq.s32.totalorder %s27, 1
      %p125 = por %p123, %p124
      %p127 = scmp.ne.s32.totalorder %s112, %s126
      %p128 = scmp.eq.s32.totalorder %s27, 0
      %p129 = por %p127, %p128
      %s131 = sadd.s32 %s130, 1
      %p134 = scmp.eq.s32.totalorder %s21, 1
      %p135 = scmp.ne.s32.totalorder %s130, %s132
      %p136 = scmp.eq.s32.totalorder %s21, 0
      %p137 = por %p135, %p136
      %p138 = scmp.ne.s32.totalorder %s130, %s132
      %p139 = scmp.eq.s32.totalorder %s26, 1
      %p140 = por %p138, %p139
      %p141 = scmp.ne.s32.totalorder %s132, %s133
      %p142 = scmp.eq.s32.totalorder %s26, 0
      %p143 = por %p141, %p142
      %p144 = scmp.ne.s32.totalorder %s132, %s133
      %p145 = scmp.eq.s32.totalorder %s27, 1
      %p146 = por %p144, %p145
      %p148 = scmp.ne.s32.totalorder %s133, %s147
      %p149 = scmp.eq.s32.totalorder %s27, 0
      %p150 = por %p148, %p149
      %s152 = sadd.s32 %s151, 1
      %p155 = scmp.eq.s32.totalorder %s21, 1
      %p156 = scmp.ne.s32.totalorder %s151, %s153
      %p157 = scmp.eq.s32.totalorder %s21, 0
      %p158 = por %p156, %p157
      %p159 = scmp.ne.s32.totalorder %s151, %s153
      %p160 = scmp.eq.s32.totalorder %s26, 1
      %p161 = por %p159, %p160
      %p162 = scmp.ne.s32.totalorder %s153, %s154
      %p163 = scmp.eq.s32.totalorder %s26, 0
      %p164 = por %p162, %p163
      %p165 = scmp.ne.s32.totalorder %s153, %s154
      %p166 = scmp.eq.s32.totalorder %s27, 1
      %p167 = por %p165, %p166
      %p169 = scmp.ne.s32.totalorder %s154, %s168
      %p170 = scmp.eq.s32.totalorder %s27, 0
      %p171 = por %p169, %p170
      %s173 = sadd.s32 %s172, 1
      %p176 = scmp.eq.s32.totalorder %s21, 1
      %p177 = scmp.ne.s32.totalorder %s172, %s174
      %p178 = scmp.eq.s32.totalorder %s21, 0
      %p179 = por %p177, %p178
      %p180 = scmp.ne.s32.totalorder %s172, %s174
      %p181 = scmp.eq.s32.totalorder %s26, 1
      %p182 = por %p180, %p181
      %p183 = scmp.ne.s32.totalorder %s174, %s175
      %p184 = scmp.eq.s32.totalorder %s26, 0
      %p185 = por %p183, %p184
      %p186 = scmp.ne.s32.totalorder %s174, %s175
      %p187 = scmp.eq.s32.totalorder %s27, 1
      %p188 = por %p186, %p187
      %p190 = scmp.ne.s32.totalorder %s175, %s189
      %p191 = scmp.eq.s32.totalorder %s27, 0
      %p192 = por %p190, %p191
      %s194 = sadd.s32 %s193, 1
      %p197 = scmp.eq.s32.totalorder %s21, 1
      %p198 = scmp.ne.s32.totalorder %s193, %s195
      %p199 = scmp.eq.s32.totalorder %s21, 0
      %p200 = por %p198, %p199
      %p201 = scmp.ne.s32.totalorder %s193, %s195
      %p202 = scmp.eq.s32.totalorder %s26, 1
      %p203 = por %p201, %p202
      %p204 = scmp.ne.s32.totalorder %s195, %s196
      %p205 = scmp.eq.s32.totalorder %s26, 0
      %p206 = por %p204, %p205
      %p207 = scmp.ne.s32.totalorder %s195, %s196
      %p208 = scmp.eq.s32.totalorder %s27, 1
      %p209 = por %p207, %p208
      %p211 = scmp.ne.s32.totalorder %s196, %s210
      %p212 = scmp.eq.s32.totalorder %s27, 0
      %p213 = por %p211, %p212
      %s215 = sadd.s32 %s214, 1
      %p218 = scmp.eq.s32.totalorder %s21, 1
      %p219 = scmp.ne.s32.totalorder %s214, %s216
      %p220 = scmp.eq.s32.totalorder %s21, 0
      %p221 = por %p219, %p220
      %p222 = scmp.ne.s32.totalorder %s214, %s216
      %p223 = scmp.eq.s32.totalorder %s26, 1
      %p224 = por %p222, %p223
      %p225 = scmp.ne.s32.totalorder %s216, %s217
      %p226 = scmp.eq.s32.totalorder %s26, 0
      %p227 = por %p225, %p226
      %p228 = scmp.ne.s32.totalorder %s216, %s217
      %p229 = scmp.eq.s32.totalorder %s27, 1
      %p230 = por %p228, %p229
      %p232 = scmp.ne.s32.totalorder %s217, %s231
      %p233 = scmp.eq.s32.totalorder %s27, 0
      %p234 = por %p232, %p233
      %s236 = sadd.s32 %s235, 1
      %p239 = scmp.eq.s32.totalorder %s21, 1
      %p240 = scmp.ne.s32.totalorder %s235, %s237
      %p241 = scmp.eq.s32.totalorder %s21, 0
      %p242 = por %p240, %p241
      %p243 = scmp.ne.s32.totalorder %s235, %s237
      %p244 = scmp.eq.s32.totalorder %s26, 1
      %p245 = por %p243, %p244
      %p246 = scmp.ne.s32.totalorder %s237, %s238
      %p247 = scmp.eq.s32.totalorder %s26, 0
      %p248 = por %p246, %p247
      %p249 = scmp.ne.s32.totalorder %s237, %s238
      %p250 = scmp.eq.s32.totalorder %s27, 1
      %p251 = por %p249, %p250
      %p253 = scmp.ne.s32.totalorder %s238, %s252
      %p254 = scmp.eq.s32.totalorder %s27, 0
      %p255 = por %p253, %p254
      %s257 = sadd.s32 %s256, 1
      %p260 = scmp.eq.s32.totalorder %s21, 1
      %p261 = scmp.ne.s32.totalorder %s256, %s258
      %p262 = scmp.eq.s32.totalorder %s21, 0
      %p263 = por %p261, %p262
      %p264 = scmp.ne.s32.totalorder %s256, %s258
      %p265 = scmp.eq.s32.totalorder %s26, 1
      %p266 = por %p264, %p265
      %p267 = scmp.ne.s32.totalorder %s258, %s259
      %p268 = scmp.eq.s32.totalorder %s26, 0
      %p269 = por %p267, %p268
      %p270 = scmp.ne.s32.totalorder %s258, %s259
      %p271 = scmp.eq.s32.totalorder %s27, 1
      %p272 = por %p270, %p271
      %p274 = scmp.ne.s32.totalorder %s259, %s273
      %p275 = scmp.eq.s32.totalorder %s27, 0
      %p276 = por %p274, %p275
      %s278 = sadd.s32 %s277, 1
      %p281 = scmp.eq.s32.totalorder %s21, 1
      %p282 = scmp.ne.s32.totalorder %s277, %s279
      %p283 = scmp.eq.s32.totalorder %s21, 0
      %p284 = por %p282, %p283
      %p285 = scmp.ne.s32.totalorder %s277, %s279
      %p286 = scmp.eq.s32.totalorder %s26, 1
      %p287 = por %p285, %p286
      %p288 = scmp.ne.s32.totalorder %s279, %s280
      %p289 = scmp.eq.s32.totalorder %s26, 0
      %p290 = por %p288, %p289
      %p291 = scmp.ne.s32.totalorder %s279, %s280
      %p292 = scmp.eq.s32.totalorder %s27, 1
      %p293 = por %p291, %p292
      %p295 = scmp.ne.s32.totalorder %s280, %s294
      %p296 = scmp.eq.s32.totalorder %s27, 0
      %p297 = por %p295, %p296
      %s299 = sadd.s32 %s298, 1
      %p302 = scmp.eq.s32.totalorder %s21, 1
      %p303 = scmp.ne.s32.totalorder %s298, %s300
      %p304 = scmp.eq.s32.totalorder %s21, 0
      %p305 = por %p303, %p304
      %p306 = scmp.ne.s32.totalorder %s298, %s300
      %p307 = scmp.eq.s32.totalorder %s26, 1
      %p308 = por %p306, %p307
      %p309 = scmp.ne.s32.totalorder %s300, %s301
      %p310 = scmp.eq.s32.totalorder %s26, 0
      %p311 = por %p309, %p310
      %p312 = scmp.ne.s32.totalorder %s300, %s301
      %p313 = scmp.eq.s32.totalorder %s27, 1
      %p314 = por %p312, %p313
      %p316 = scmp.ne.s32.totalorder %s301, %s315
      %p317 = scmp.eq.s32.totalorder %s27, 0
      %p318 = por %p316, %p317
      %s319 = ssub.s32 %s28, %s40
      %s320 = ssub.s32 %s29, %s36
      %s321 = sor.u32 %s319, %s320
      %p322 = scmp.eq.s32.totalorder %s321, 0
      %s324 = sadd.s32 %s323, 1
      %s325 = scalar_select %p322, %s323, %s324
      %p328 = pneg %p322
      %p329 = scmp.eq.s32.totalorder %s21, 1
      %p330 = por %p328, %p329
      %p331 = scmp.ne.s32.totalorder %s323, %s326
      %p332 = scmp.eq.s32.totalorder %s21, 0
      %p333 = por %p331, %p332
      %p334 = scmp.ne.s32.totalorder %s323, %s326
      %p335 = scmp.eq.s32.totalorder %s26, 1
      %p336 = por %p334, %p335
      %p337 = scmp.ne.s32.totalorder %s326, %s327
      %p338 = scmp.eq.s32.totalorder %s26, 0
      %p339 = por %p337, %p338
      %p340 = scmp.ne.s32.totalorder %s326, %s327
      %p341 = scmp.eq.s32.totalorder %s27, 1
      %p342 = por %p340, %p341
      %p344 = scmp.ne.s32.totalorder %s327, %s343
      %p345 = scmp.eq.s32.totalorder %s27, 0
      %p346 = por %p344, %p345
      %s347 = ssub.s32 %s28, %s40
      %p348 = scmp.eq.s32.totalorder %s347, 0
      %s350 = sadd.s32 %s349, 1
      %s351 = scalar_select %p348, %s349, %s350
      %p354 = pneg %p348
      %p355 = scmp.eq.s32.totalorder %s21, 1
      %p356 = por %p354, %p355
      %p357 = scmp.ne.s32.totalorder %s349, %s352
      %p358 = scmp.eq.s32.totalorder %s21, 0
      %p359 = por %p357, %p358
      %p360 = scmp.ne.s32.totalorder %s349, %s352
      %p361 = scmp.eq.s32.totalorder %s26, 1
      %p362 = por %p360, %p361
      %p363 = scmp.ne.s32.totalorder %s352, %s353
      %p364 = scmp.eq.s32.totalorder %s26, 0
      %p365 = por %p363, %p364
      %p366 = scmp.ne.s32.totalorder %s352, %s353
      %p367 = scmp.eq.s32.totalorder %s27, 1
      %p368 = por %p366, %p367
      %p370 = scmp.ne.s32.totalorder %s353, %s369
      %p371 = scmp.eq.s32.totalorder %s27, 0
      %p372 = por %p370, %p371
      %p373 = scmp.le.s32.totalorder 1, %s21
      %p374 = scmp.lt.s32.totalorder %s21, 3
      %p375 = pnand %p373, %p374
      %p376 = pneg %p375
      // Predicated region
      $region9: #{gpt2_forward.2} parent=5 // pred_check
        _
      $region10: #{gpt2_forward.2} parent=5 // pred_check_branch
        %378 = sbr.rel (%p375) target = $region12
      $region11: #{gpt2_forward.2} parent=5 // pred_region
        %s379 = ssub.s32 %s21, 1
        // Predicated region
        $region13: #{gpt2_forward.2} parent=11 // pred_check
          %p380 = pneg %p80
        $region14: #{gpt2_forward.2} parent=11 // pred_check_branch
          %382 = sbr.rel (%p380) target = $region16
        $region15: #{gpt2_forward.2} parent=11 // pred_region
          _
        $region16: #{gpt2_forward.2} parent=11 // pred_fallthru
          _
        // Predicated region
        $region17: #{gpt2_forward.2} parent=11 // pred_check
          %p383 = pneg %p101
        $region18: #{gpt2_forward.2} parent=11 // pred_check_branch
          %385 = sbr.rel (%p383) target = $region20
        $region19: #{gpt2_forward.2} parent=11 // pred_region
          _
        $region20: #{gpt2_forward.2} parent=11 // pred_fallthru
          _
        // Predicated region
        $region21: #{gpt2_forward.2} parent=11 // pred_check
          %p386 = pneg %p122
        $region22: #{gpt2_forward.2} parent=11 // pred_check_branch
          %388 = sbr.rel (%p386) target = $region24
        $region23: #{gpt2_forward.2} parent=11 // pred_region
          _
        $region24: #{gpt2_forward.2} parent=11 // pred_fallthru
          _
        // Predicated region
        $region25: #{gpt2_forward.2} parent=11 // pred_check
          %p389 = pneg %p143
        $region26: #{gpt2_forward.2} parent=11 // pred_check_branch
          %391 = sbr.rel (%p389) target = $region28
        $region27: #{gpt2_forward.2} parent=11 // pred_region
          _
        $region28: #{gpt2_forward.2} parent=11 // pred_fallthru
          _
        // Predicated region
        $region29: #{gpt2_forward.2} parent=11 // pred_check
          %p392 = pneg %p164
        $region30: #{gpt2_forward.2} parent=11 // pred_check_branch
          %394 = sbr.rel (%p392) target = $region32
        $region31: #{gpt2_forward.2} parent=11 // pred_region
          _
        $region32: #{gpt2_forward.2} parent=11 // pred_fallthru
          _
        // Predicated region
        $region33: #{gpt2_forward.2} parent=11 // pred_check
          %p395 = pneg %p185
        $region34: #{gpt2_forward.2} parent=11 // pred_check_branch
          %397 = sbr.rel (%p395) target = $region36
        $region35: #{gpt2_forward.2} parent=11 // pred_region
          _
        $region36: #{gpt2_forward.2} parent=11 // pred_fallthru
          _
        // Predicated region
        $region37: #{gpt2_forward.2} parent=11 // pred_check
          %p398 = pneg %p206
        $region38: #{gpt2_forward.2} parent=11 // pred_check_branch
          %400 = sbr.rel (%p398) target = $region40
        $region39: #{gpt2_forward.2} parent=11 // pred_region
          _
        $region40: #{gpt2_forward.2} parent=11 // pred_fallthru
          _
        // Predicated region
        $region41: #{gpt2_forward.2} parent=11 // pred_check
          %p401 = pneg %p227
        $region42: #{gpt2_forward.2} parent=11 // pred_check_branch
          %403 = sbr.rel (%p401) target = $region44
        $region43: #{gpt2_forward.2} parent=11 // pred_region
          _
        $region44: #{gpt2_forward.2} parent=11 // pred_fallthru
          _
        // Predicated region
        $region45: #{gpt2_forward.2} parent=11 // pred_check
          %p404 = pneg %p248
        $region46: #{gpt2_forward.2} parent=11 // pred_check_branch
          %406 = sbr.rel (%p404) target = $region48
        $region47: #{gpt2_forward.2} parent=11 // pred_region
          _
        $region48: #{gpt2_forward.2} parent=11 // pred_fallthru
          _
        // Predicated region
        $region49: #{gpt2_forward.2} parent=11 // pred_check
          %p407 = pneg %p269
        $region50: #{gpt2_forward.2} parent=11 // pred_check_branch
          %409 = sbr.rel (%p407) target = $region52
        $region51: #{gpt2_forward.2} parent=11 // pred_region
          _
        $region52: #{gpt2_forward.2} parent=11 // pred_fallthru
          _
        // Predicated region
        $region53: #{gpt2_forward.2} parent=11 // pred_check
          %p410 = pneg %p290
        $region54: #{gpt2_forward.2} parent=11 // pred_check_branch
          %412 = sbr.rel (%p410) target = $region56
        $region55: #{gpt2_forward.2} parent=11 // pred_region
          _
        $region56: #{gpt2_forward.2} parent=11 // pred_fallthru
          _
        // Predicated region
        $region57: #{gpt2_forward.2} parent=11 // pred_check
          %p413 = pneg %p311
        $region58: #{gpt2_forward.2} parent=11 // pred_check_branch
          %415 = sbr.rel (%p413) target = $region60
        $region59: #{gpt2_forward.2} parent=11 // pred_region
          _
        $region60: #{gpt2_forward.2} parent=11 // pred_fallthru
          _
      $region12: #{gpt2_forward.2} parent=5 // pred_fallthru
        _
      %p416 = scmp.lt.s32.totalorder %s21, 2
      // Predicated region
      $region61: #{gpt2_forward.2} parent=5 // pred_check
        %p417 = pneg %p416
      $region62: #{gpt2_forward.2} parent=5 // pred_check_branch
        %419 = sbr.rel (%p417) target = $region64
      $region63: #{gpt2_forward.2} parent=5 // pred_region
        // Predicated region
        $region65: #{gpt2_forward.2} parent=63 // pred_check
          %p420 = pneg %p53
        $region66: #{gpt2_forward.2} parent=63 // pred_check_branch
          %422 = sbr.rel (%p420) target = $region68
        $region67: #{gpt2_forward.2} parent=63 // pred_region
          %p423 = scmp.lt.s32.totalorder %s28, 1
          %s424 = scalar_select %p423, %s28, 1
          %s425 = smul.addr %s424, 8
          %s426 = scalar_lea.vmem %s0, %s425
        $region68: #{gpt2_forward.2} parent=63 // pred_fallthru
          _
      $region64: #{gpt2_forward.2} parent=5 // pred_fallthru
        _
      %p427 = scmp.le.s32.totalorder 1, %s21
      %p428 = scmp.lt.s32.totalorder %s21, 3
      %p429 = pnand %p427, %p428
      %p430 = pneg %p429
      // Predicated region
      $region69: #{gpt2_forward.2} parent=5 // pred_check
        _
      $region70: #{gpt2_forward.2} parent=5 // pred_check_branch
        %432 = sbr.rel (%p429) target = $region72
      $region71: #{gpt2_forward.2} parent=5 // pred_region
        %s433 = ssub.s32 %s21, 1
        %p434 = scmp.lt.s32.totalorder %s30, 1
        %s435 = scalar_select %p434, %s30, 1
        %s436 = smul.addr %s435, 8
        %s437 = scalar_lea.vmem %s0, %s436
        %p438 = pneg %p59
        %p439 = pneg %p56
        %p440 = pneg %p80
        %p441 = pneg %p77
        %p442 = pneg %p101
        %p443 = pneg %p98
        %p444 = pneg %p122
        %p445 = pneg %p119
        %p446 = pneg %p143
        %p447 = pneg %p140
        %p448 = pneg %p164
        %p449 = pneg %p161
        %p450 = pneg %p185
        %p451 = pneg %p182
        %p452 = pneg %p206
        %p453 = pneg %p203
        %p454 = pneg %p227
        %p455 = pneg %p224
        %p456 = pneg %p248
        %p457 = pneg %p245
        %p458 = pneg %p269
        %p459 = pneg %p266
        %p460 = pneg %p290
        %p461 = pneg %p287
        %p462 = pneg %p311
        %p463 = pneg %p308
        %p464 = pneg %p339
        %p465 = pneg %p336
        %p466 = scmp.lt.s32.totalorder %s30, 1
        %s467 = scalar_select %p466, %s30, 1
        %p468 = scmp.lt.s32.totalorder %s31, 0
        %s469 = scalar_select %p468, %s31, 0
        %s470 = sadd.s32 %s469, %s467
        %s471 = smul.addr %s470, 8
        %s472 = scalar_lea.vmem %s13, %s471
        %p473 = pneg %p365
        %p474 = pneg %p362
        %s475 = sand.u32 %s352, 1
        %s476 = sand.u32 %s352, 1
        %s477 = smul.addr %s476, 16
        %s478 = scalar_lea.vmem [#allocation8], %s477
        %p479 = scmp.lt.s32.totalorder %s30, 1
        %s480 = scalar_select %p479, %s30, 1
        %s481 = smul.addr %s480, 8
        %s482 = scalar_lea.vmem %s0, %s481
        %p483 = scmp.lt.s32.totalorder %s30, 1
        %s484 = scalar_select %p483, %s30, 1
        %p485 = scmp.lt.s32.totalorder %s31, 0
        %s486 = scalar_select %p485, %s31, 0
        %s487 = sadd.s32 %s486, %s484
        %s488 = smul.addr %s487, 8
        %s489 = scalar_lea.vmem %s13, %s488
        %p491 = scmp.eq.s32.totalorder %s31, 0
        // Predicated region
        $region73: #{gpt2_forward.2} parent=71 // pred_check
          %p492 = pneg %p491
        $region74: #{gpt2_forward.2} parent=71 // pred_check_branch
          %494 = sbr.rel (%p492) target = $region76
        $region75: #{gpt2_forward.2} parent=71 // pred_region
          %v495 = vld [vmem:[%s482] sm:$0xff]
          %v496 = vld [vmem:[%s1] sm:$0x1]
          %v497 = vld [vmem:[%s2] sm:$0x1]
          %vm498 = vcmask 261120
          %v499 = vsel %vm498, %v495, 0.0
          %500 = vadd.xlane.f32.xlu0 %v499
          %v501 = vpop.xlane.xlu0 %500
          %v502 = vrcp.pop 32.0
          %v503 = vmul.f32 %v501, %v502
          %v504 = vsub.f32 %v495, %v503
          %v505 = vmul.f32 %v504, %v504
          %v506 = vsel %vm498, %v505, 0.0
          %507 = vadd.xlane.f32.xlu0 %v506
          %v508 = vpop.xlane.xlu0 %507
          %v509 = vmul.f32 %v508, %v502
          %v510 = vadd.f32 %v509, 1e-05
          %v511 = vrsqrt.pop %v510
          %v512 = vmul.f32 %v504, %v511
          %v514 = vlaneseq
          %v515 = vshrl.u32 %v514, 7
          %v516 = vsub.s32 0, %v515
          %v517 = vrot.slane %v496, %v516
          %v519 = vmul.f32 %v512, %v517
          %v521 = vlaneseq
          %v522 = vshrl.u32 %v521, 7
          %v523 = vsub.s32 0, %v522
          %v524 = vrot.slane %v497, %v523
          %v526 = vadd.f32 %v519, %v524
          %v527 = vpack.c.bf16 %v526, %v526
          %v528 = vld [vmem:[%s3] sm:$0xf]
          %v529 = vld [vmem:[%s3 + $0x4] sm:$0xf]
          %v530 = vld [vmem:[%s3 + $0x8] sm:$0xf]
          %v531 = vld [vmem:[%s3 + $0xc] sm:$0xf]
          %v532 = vld [vmem:[%s4] sm:$0x1]
          %v534 = vlaneseq
          %v535 = vshrl.u32 %v534, 7
          %v536 = vsub.s32 0, %v535
          %v537 = vrot.slane %v532, %v536
          %v543 = vunpack.c.l.b16 %v528
          %v544 = vunpack.c.l.b16 %v529
          %v545 = vunpack.c.l.b16 %v530
          %v546 = vunpack.c.l.b16 %v531
          %v547 = vpack.c.b16 %v544, %v543
          %v548 = vpack.c.b16 %v546, %v545
          %v552 = vsel %vm498, %v527, 0
          %554 = vmatprep.subr.bf16.mxu0 0
          %555 = vmatpush1.bf16.msra.mxu0 %v547
          %556 = vmatprep.subr.bf16.mxu0 0
          %557 = vmatpush1.bf16.msra.mxu0 %v548
          %558 = vmatprep.subr.bf16.mxu0 0
          %559 = vmatpush1.bf16.msra.mxu0 0
          %560 = vmatprep.subr.bf16.mxu0 0
          %561 = vmatpush1.bf16.msra.mxu0 0
          %562 = vmatprep.subr.bf16.mxu0 0
          %563 = vmatpush1.bf16.msra.mxu0 0
          %564 = vmatprep.subr.bf16.mxu0 0
          %565 = vmatpush1.bf16.msra.mxu0 0
          %566 = vmatprep.subr.bf16.mxu0 0
          %567 = vmatpush1.bf16.msra.mxu0 0
          %568 = vmatprep.subr.bf16.mxu0 0
          %569 = vmatpush1.bf16.msra.mxu0 0
          %570 = vmatprep.subr.bf16.mxu0 0
          %571 = vmatpush1.bf16.msra.mxu0 0
          %572 = vmatprep.subr.bf16.mxu0 0
          %573 = vmatpush1.bf16.msra.mxu0 0
          %574 = vmatprep.subr.bf16.mxu0 0
          %575 = vmatpush1.bf16.msra.mxu0 0
          %576 = vmatprep.subr.bf16.mxu0 0
          %577 = vmatpush1.bf16.msra.mxu0 0
          %578 = vmatprep.subr.bf16.mxu0 0
          %579 = vmatpush1.bf16.msra.mxu0 0
          %580 = vmatprep.subr.bf16.mxu0 0
          %581 = vmatpush1.bf16.msra.mxu0 0
          %582 = vmatprep.subr.bf16.mxu0 0
          %583 = vmatpush1.bf16.msra.mxu0 0
          %584 = vmatprep.subr.bf16.mxu0 0
          %585 = vmatpush1.bf16.msra.mxu0 0
          %586 = vmatprep.mubr.bf16.mxu0 0
          %587 = vmatmul.mubr.bf16.gmra.mrb[0].mxu0 %v552
          %v588 = vpop.f32.mrb[0].mxu0
          %v589 = vadd.f32 %v537, %v588
          %v590 = vpop.f32.mrb[0].mxu0
          %v591 = vpop.f32.mrb[0].mxu0
          %v592 = vpop.f32.mrb[0].mxu0
          %593 = vdwg.mxu0
          %v594 = vmul.f32 %v589, 0.35355338
          %596 = vrot.lane.b32.xlu0 %v589, 96
          %v597 = vpop.permute.xlu0 %596
          %599 = vst.msk [vmem:[%s478] sm:$0xff] %vm498, %v597
          %600 = vrot.lane.b32.xlu0 %v589, 64
          %v601 = vpop.permute.xlu0 %600
          %s603 = scalar_lea.vmem %s478, 8 [#allocation8]
          %604 = vst.msk [vmem:[%s603] sm:$0xff] %vm498, %v601
          %606 = vrot.lane.b32.xlu0 %v594, 120
          %v607 = vpop.permute.xlu0 %606
          %609 = vrot.lane.b32.xlu0 %v594, 112
          %v610 = vpop.permute.xlu0 %609
          %612 = vrot.lane.b32.xlu0 %v594, 104
          %v613 = vpop.permute.xlu0 %612
          %v615 = vcombine.low %v594, %v610
          %v616 = vcombine.high %v594, %v610
          %v618 = vunpack.c.l.s4 1983009808
          %v619 = vunpack.c.0.s8 %v618
          %v620 = vlaneseq
          %v621 = vshrl.u32 %v620, 7
          %v622 = vsub.s32 %v619, %v621
          %v623 = vrot.slane %v615, %v622
          %v625 = vunpack.c.l.s4 1983009808
          %v626 = vunpack.c.0.s8 %v625
          %v627 = vlaneseq
          %v628 = vshrl.u32 %v627, 7
          %v629 = vsub.s32 %v626, %v628
          %v630 = vrot.slane %v616, %v629
          %v631 = vcombine.low %v607, %v613
          %v632 = vcombine.high %v607, %v613
          %v634 = vunpack.c.l.s4 1983009808
          %v635 = vunpack.c.0.s8 %v634
          %v636 = vlaneseq
          %v637 = vshrl.u32 %v636, 7
          %v638 = vsub.s32 %v635, %v637
          %v639 = vrot.slane %v631, %v638
          %v641 = vunpack.c.l.s4 1983009808
          %v642 = vunpack.c.0.s8 %v641
          %v643 = vlaneseq
          %v644 = vshrl.u32 %v643, 7
          %v645 = vsub.s32 %v642, %v644
          %v646 = vrot.slane %v632, %v645
          %v647 = vcombine.low %v623, %v639
          %v648 = vcombine.high %v623, %v639
          %v650 = vunpack.c.l.s4 1934713408
          %v651 = vunpack.c.0.s8 %v650
          %v652 = vlaneseq
          %v653 = vshrl.u32 %v652, 7
          %v654 = vsub.s32 %v651, %v653
          %v655 = vrot.slane %v647, %v654
          %v657 = vunpack.c.l.s4 1934713408
          %v658 = vunpack.c.0.s8 %v657
          %v659 = vlaneseq
          %v660 = vshrl.u32 %v659, 7
          %v661 = vsub.s32 %v658, %v660
          %v662 = vrot.slane %v648, %v661
          %v663 = vcombine.low %v630, %v646
          %v664 = vcombine.high %v630, %v646
          %v666 = vunpack.c.l.s4 1934713408
          %v667 = vunpack.c.0.s8 %v666
          %v668 = vlaneseq
          %v669 = vshrl.u32 %v668, 7
          %v670 = vsub.s32 %v667, %v669
          %v671 = vrot.slane %v663, %v670
          %v673 = vunpack.c.l.s4 1934713408
          %v674 = vunpack.c.0.s8 %v673
          %v675 = vlaneseq
          %v676 = vshrl.u32 %v675, 7
          %v677 = vsub.s32 %v674, %v676
          %v678 = vrot.slane %v664, %v677
          %v679 = vcombine.high %v655, 0.0
          %v680 = vcombine.high %v662, 0.0
          %v681 = vcombine.high %v671, 0.0
          %v682 = vcombine.high %v678, 0.0
          %v683 = vcombine.low %v655, %v662
          %v685 = vunpack.c.l.s4 1983009808
          %v686 = vunpack.c.0.s8 %v685
          %v687 = vlaneseq
          %v688 = vshrl.u32 %v687, 7
          %v689 = vsub.s32 %v686, %v688
          %v690 = vrot.slane %v683, %v689
          %v691 = vcombine.low %v679, %v680
          %v693 = vunpack.c.l.s4 1983009808
          %v694 = vunpack.c.0.s8 %v693
          %v695 = vlaneseq
          %v696 = vshrl.u32 %v695, 7
          %v697 = vsub.s32 %v694, %v696
          %v698 = vrot.slane %v691, %v697
          %v699 = vcombine.low %v671, %v678
          %v701 = vunpack.c.l.s4 1983009808
          %v702 = vunpack.c.0.s8 %v701
          %v703 = vlaneseq
          %v704 = vshrl.u32 %v703, 7
          %v705 = vsub.s32 %v702, %v704
          %v706 = vrot.slane %v699, %v705
          %v707 = vcombine.low %v681, %v682
          %v709 = vunpack.c.l.s4 1983009808
          %v710 = vunpack.c.0.s8 %v709
          %v711 = vlaneseq
          %v712 = vshrl.u32 %v711, 7
          %v713 = vsub.s32 %v710, %v712
          %v714 = vrot.slane %v707, %v713
          %v715 = vcombine.low %v690, %v698
          %v716 = vcombine.high %v690, %v698
          %v718 = vunpack.c.l.s4 1934713408
          %v719 = vunpack.c.0.s8 %v718
          %v720 = vlaneseq
          %v721 = vshrl.u32 %v720, 7
          %v722 = vsub.s32 %v719, %v721
          %v723 = vrot.slane %v715, %v722
          %v725 = vunpack.c.l.s4 1934713408
          %v726 = vunpack.c.0.s8 %v725
          %v727 = vlaneseq
          %v728 = vshrl.u32 %v727, 7
          %v729 = vsub.s32 %v726, %v728
          %v730 = vrot.slane %v716, %v729
          %v731 = vcombine.low %v706, %v714
          %v732 = vcombine.high %v706, %v714
          %v734 = vunpack.c.l.s4 1934713408
          %v735 = vunpack.c.0.s8 %v734
          %v736 = vlaneseq
          %v737 = vshrl.u32 %v736, 7
          %v738 = vsub.s32 %v735, %v737
          %v739 = vrot.slane %v731, %v738
          %v741 = vunpack.c.l.s4 1934713408
          %v742 = vunpack.c.0.s8 %v741
          %v743 = vlaneseq
          %v744 = vshrl.u32 %v743, 7
          %v745 = vsub.s32 %v742, %v744
          %v746 = vrot.slane %v732, %v745
          %v747 = vcombine.low %v723, %v739
          %v748 = vcombine.high %v723, %v739
          %v749 = vcombine.low %v730, %v746
          %v750 = vcombine.high %v730, %v746
          %v751 = vpack.c.bf16 %v747, %v747
          %v752 = vpack.c.bf16 %v748, %v748
          %v753 = vpack.c.bf16 %v749, %v749
          %v754 = vpack.c.bf16 %v750, %v750
          %vm755 = vcmask 60416
          %756 = vst.msk [vmem:[#allocation2] sm:$0xf] %vm755, %v751
          %757 = vst.msk [vmem:[#allocation2 + $0x4] sm:$0xf] %vm755, %v752
          %758 = vst.msk [vmem:[#allocation2 + $0x8] sm:$0xf] %vm755, %v753
          %759 = vst.msk [vmem:[#allocation2 + $0xc] sm:$0xf] %vm755, %v754
          %760 = vrot.lane.b32.xlu0 %v589, 120
          %v761 = vpop.permute.xlu0 %760
          %762 = vrot.lane.b32.xlu0 %v589, 112
          %v763 = vpop.permute.xlu0 %762
          %764 = vrot.lane.b32.xlu0 %v589, 104
          %v765 = vpop.permute.xlu0 %764
          %766 = vrot.lane.b32.xlu0 %v761, 96
          %v767 = vpop.permute.xlu0 %766
          %768 = vrot.lane.b32.xlu0 %v763, 96
          %v769 = vpop.permute.xlu0 %768
          %770 = vrot.lane.b32.xlu0 %v765, 96
          %v771 = vpop.permute.xlu0 %770
          %v775 = vcombine.low %v597, %v769
          %v776 = vcombine.high %v597, %v769
          %v778 = vunpack.c.l.s4 1983009808
          %v779 = vunpack.c.0.s8 %v778
          %v780 = vlaneseq
          %v781 = vshrl.u32 %v780, 7
          %v782 = vsub.s32 %v779, %v781
          %v783 = vrot.slane %v775, %v782
          %v785 = vunpack.c.l.s4 1983009808
          %v786 = vunpack.c.0.s8 %v785
          %v787 = vlaneseq
          %v788 = vshrl.u32 %v787, 7
          %v789 = vsub.s32 %v786, %v788
          %v790 = vrot.slane %v776, %v789
          %v791 = vcombine.low %v767, %v771
          %v792 = vcombine.high %v767, %v771
          %v794 = vunpack.c.l.s4 1983009808
          %v795 = vunpack.c.0.s8 %v794
          %v796 = vlaneseq
          %v797 = vshrl.u32 %v796, 7
          %v798 = vsub.s32 %v795, %v797
          %v799 = vrot.slane %v791, %v798
          %v801 = vunpack.c.l.s4 1983009808
          %v802 = vunpack.c.0.s8 %v801
          %v803 = vlaneseq
          %v804 = vshrl.u32 %v803, 7
          %v805 = vsub.s32 %v802, %v804
          %v806 = vrot.slane %v792, %v805
          %v807 = vcombine.low %v783, %v799
          %v808 = vcombine.high %v783, %v799
          %v810 = vunpack.c.l.s4 1934713408
          %v811 = vunpack.c.0.s8 %v810
          %v812 = vlaneseq
          %v813 = vshrl.u32 %v812, 7
          %v814 = vsub.s32 %v811, %v813
          %v815 = vrot.slane %v807, %v814
          %v817 = vunpack.c.l.s4 1934713408
          %v818 = vunpack.c.0.s8 %v817
          %v819 = vlaneseq
          %v820 = vshrl.u32 %v819, 7
          %v821 = vsub.s32 %v818, %v820
          %v822 = vrot.slane %v808, %v821
          %v823 = vcombine.low %v790, %v806
          %v824 = vcombine.high %v790, %v806
          %v826 = vunpack.c.l.s4 1934713408
          %v827 = vunpack.c.0.s8 %v826
          %v828 = vlaneseq
          %v829 = vshrl.u32 %v828, 7
          %v830 = vsub.s32 %v827, %v829
          %v831 = vrot.slane %v823, %v830
          %v833 = vunpack.c.l.s4 1934713408
          %v834 = vunpack.c.0.s8 %v833
          %v835 = vlaneseq
          %v836 = vshrl.u32 %v835, 7
          %v837 = vsub.s32 %v834, %v836
          %v838 = vrot.slane %v824, %v837
          %v839 = vcombine.high %v815, 0.0
          %v840 = vcombine.high %v822, 0.0
          %v841 = vcombine.high %v831, 0.0
          %v842 = vcombine.high %v838, 0.0
          %v843 = vcombine.low %v815, %v822
          %v845 = vunpack.c.l.s4 1983009808
          %v846 = vunpack.c.0.s8 %v845
          %v847 = vlaneseq
          %v848 = vshrl.u32 %v847, 7
          %v849 = vsub.s32 %v846, %v848
          %v850 = vrot.slane %v843, %v849
          %v851 = vcombine.low %v839, %v840
          %v853 = vunpack.c.l.s4 1983009808
          %v854 = vunpack.c.0.s8 %v853
          %v855 = vlaneseq
          %v856 = vshrl.u32 %v855, 7
          %v857 = vsub.s32 %v854, %v856
          %v858 = vrot.slane %v851, %v857
          %v859 = vcombine.low %v831, %v838
          %v861 = vunpack.c.l.s4 1983009808
          %v862 = vunpack.c.0.s8 %v861
          %v863 = vlaneseq
          %v864 = vshrl.u32 %v863, 7
          %v865 = vsub.s32 %v862, %v864
          %v866 = vrot.slane %v859, %v865
          %v867 = vcombine.low %v841, %v842
          %v869 = vunpack.c.l.s4 1983009808
          %v870 = vunpack.c.0.s8 %v869
          %v871 = vlaneseq
          %v872 = vshrl.u32 %v871, 7
          %v873 = vsub.s32 %v870, %v872
          %v874 = vrot.slane %v867, %v873
          %v875 = vcombine.low %v850, %v858
          %v876 = vcombine.high %v850, %v858
          %v878 = vunpack.c.l.s4 1934713408
          %v879 = vunpack.c.0.s8 %v878
          %v880 = vlaneseq
          %v881 = vshrl.u32 %v880, 7
          %v882 = vsub.s32 %v879, %v881
          %v883 = vrot.slane %v875, %v882
          %v885 = vunpack.c.l.s4 1934713408
          %v886 = vunpack.c.0.s8 %v885
          %v887 = vlaneseq
          %v888 = vshrl.u32 %v887, 7
          %v889 = vsub.s32 %v886, %v888
          %v890 = vrot.slane %v876, %v889
          %v891 = vcombine.low %v866, %v874
          %v892 = vcombine.high %v866, %v874
          %v894 = vunpack.c.l.s4 1934713408
          %v895 = vunpack.c.0.s8 %v894
          %v896 = vlaneseq
          %v897 = vshrl.u32 %v896, 7
          %v898 = vsub.s32 %v895, %v897
          %v899 = vrot.slane %v891, %v898
          %v901 = vunpack.c.l.s4 1934713408
          %v902 = vunpack.c.0.s8 %v901
          %v903 = vlaneseq
          %v904 = vshrl.u32 %v903, 7
          %v905 = vsub.s32 %v902, %v904
          %v906 = vrot.slane %v892, %v905
          %v907 = vcombine.low %v883, %v899
          %v908 = vcombine.high %v883, %v899
          %v909 = vcombine.low %v890, %v906
          %v910 = vcombine.high %v890, %v906
          %v911 = vpack.c.bf16 %v907, %v907
          %v912 = vpack.c.bf16 %v908, %v908
          %v913 = vpack.c.bf16 %v909, %v909
          %v914 = vpack.c.bf16 %v910, %v910
          %915 = vst.msk [vmem:[#allocation3] sm:$0xf] %vm755, %v911
          %916 = vst.msk [vmem:[#allocation3 + $0x4] sm:$0xf] %vm755, %v912
          %917 = vst.msk [vmem:[#allocation3 + $0x8] sm:$0xf] %vm755, %v913
          %918 = vst.msk [vmem:[#allocation3 + $0xc] sm:$0xf] %vm755, %v914
          %919 = vrot.lane.b32.xlu0 %v761, 64
          %v920 = vpop.permute.xlu0 %919
          %921 = vrot.lane.b32.xlu0 %v763, 64
          %v922 = vpop.permute.xlu0 %921
          %923 = vrot.lane.b32.xlu0 %v765, 64
          %v924 = vpop.permute.xlu0 %923
          %v928 = vcombine.low %v601, %v922
          %v929 = vcombine.high %v601, %v922
          %v931 = vunpack.c.l.s4 1983009808
          %v932 = vunpack.c.0.s8 %v931
          %v933 = vlaneseq
          %v934 = vshrl.u32 %v933, 7
          %v935 = vsub.s32 %v932, %v934
          %v936 = vrot.slane %v928, %v935
          %v938 = vunpack.c.l.s4 1983009808
          %v939 = vunpack.c.0.s8 %v938
          %v940 = vlaneseq
          %v941 = vshrl.u32 %v940, 7
          %v942 = vsub.s32 %v939, %v941
          %v943 = vrot.slane %v929, %v942
          %v944 = vcombine.low %v920, %v924
          %v945 = vcombine.high %v920, %v924
          %v947 = vunpack.c.l.s4 1983009808
          %v948 = vunpack.c.0.s8 %v947
          %v949 = vlaneseq
          %v950 = vshrl.u32 %v949, 7
          %v951 = vsub.s32 %v948, %v950
          %v952 = vrot.slane %v944, %v951
          %v954 = vunpack.c.l.s4 1983009808
          %v955 = vunpack.c.0.s8 %v954
          %v956 = vlaneseq
          %v957 = vshrl.u32 %v956, 7
          %v958 = vsub.s32 %v955, %v957
          %v959 = vrot.slane %v945, %v958
          %v960 = vcombine.low %v936, %v952
          %v961 = vcombine.high %v936, %v952
          %v963 = vunpack.c.l.s4 1934713408
          %v964 = vunpack.c.0.s8 %v963
          %v965 = vlaneseq
          %v966 = vshrl.u32 %v965, 7
          %v967 = vsub.s32 %v964, %v966
          %v968 = vrot.slane %v960, %v967
          %v970 = vunpack.c.l.s4 1934713408
          %v971 = vunpack.c.0.s8 %v970
          %v972 = vlaneseq
          %v973 = vshrl.u32 %v972, 7
          %v974 = vsub.s32 %v971, %v973
          %v975 = vrot.slane %v961, %v974
          %v976 = vcombine.low %v943, %v959
          %v977 = vcombine.high %v943, %v959
          %v979 = vunpack.c.l.s4 1934713408
          %v980 = vunpack.c.0.s8 %v979
          %v981 = vlaneseq
          %v982 = vshrl.u32 %v981, 7
          %v983 = vsub.s32 %v980, %v982
          %v984 = vrot.slane %v976, %v983
          %v986 = vunpack.c.l.s4 1934713408
          %v987 = vunpack.c.0.s8 %v986
          %v988 = vlaneseq
          %v989 = vshrl.u32 %v988, 7
          %v990 = vsub.s32 %v987, %v989
          %v991 = vrot.slane %v977, %v990
          %v992 = vcombine.high %v968, 0.0
          %v993 = vcombine.high %v975, 0.0
          %v994 = vcombine.high %v984, 0.0
          %v995 = vcombine.high %v991, 0.0
          %v996 = vcombine.low %v968, %v975
          %v998 = vunpack.c.l.s4 1983009808
          %v999 = vunpack.c.0.s8 %v998
          %v1000 = vlaneseq
          %v1001 = vshrl.u32 %v1000, 7
          %v1002 = vsub.s32 %v999, %v1001
          %v1003 = vrot.slane %v996, %v1002
          %v1004 = vcombine.low %v992, %v993
          %v1006 = vunpack.c.l.s4 1983009808
          %v1007 = vunpack.c.0.s8 %v1006
          %v1008 = vlaneseq
          %v1009 = vshrl.u32 %v1008, 7
          %v1010 = vsub.s32 %v1007, %v1009
          %v1011 = vrot.slane %v1004, %v1010
          %v1012 = vcombine.low %v984, %v991
          %v1014 = vunpack.c.l.s4 1983009808
          %v1015 = vunpack.c.0.s8 %v1014
          %v1016 = vlaneseq
          %v1017 = vshrl.u32 %v1016, 7
          %v1018 = vsub.s32 %v1015, %v1017
          %v1019 = vrot.slane %v1012, %v1018
          %v1020 = vcombine.low %v994, %v995
          %v1022 = vunpack.c.l.s4 1983009808
          %v1023 = vunpack.c.0.s8 %v1022
          %v1024 = vlaneseq
          %v1025 = vshrl.u32 %v1024, 7
          %v1026 = vsub.s32 %v1023, %v1025
          %v1027 = vrot.slane %v1020, %v1026
          %v1028 = vcombine.low %v1003, %v1011
          %v1029 = vcombine.high %v1003, %v1011
          %v1031 = vunpack.c.l.s4 1934713408
          %v1032 = vunpack.c.0.s8 %v1031
          %v1033 = vlaneseq
          %v1034 = vshrl.u32 %v1033, 7
          %v1035 = vsub.s32 %v1032, %v1034
          %v1036 = vrot.slane %v1028, %v1035
          %v1038 = vunpack.c.l.s4 1934713408
          %v1039 = vunpack.c.0.s8 %v1038
          %v1040 = vlaneseq
          %v1041 = vshrl.u32 %v1040, 7
          %v1042 = vsub.s32 %v1039, %v1041
          %v1043 = vrot.slane %v1029, %v1042
          %v1044 = vcombine.low %v1019, %v1027
          %v1045 = vcombine.high %v1019, %v1027
          %v1047 = vunpack.c.l.s4 1934713408
          %v1048 = vunpack.c.0.s8 %v1047
          %v1049 = vlaneseq
          %v1050 = vshrl.u32 %v1049, 7
          %v1051 = vsub.s32 %v1048, %v1050
          %v1052 = vrot.slane %v1044, %v1051
          %v1054 = vunpack.c.l.s4 1934713408
          %v1055 = vunpack.c.0.s8 %v1054
          %v1056 = vlaneseq
          %v1057 = vshrl.u32 %v1056, 7
          %v1058 = vsub.s32 %v1055, %v1057
          %v1059 = vrot.slane %v1045, %v1058
          %v1060 = vcombine.low %v1036, %v1052
          %v1061 = vcombine.high %v1036, %v1052
          %v1062 = vcombine.low %v1043, %v1059
          %v1063 = vcombine.high %v1043, %v1059
          %v1064 = vpack.c.bf16 %v1060, %v1060
          %v1065 = vpack.c.bf16 %v1061, %v1061
          %v1066 = vpack.c.bf16 %v1062, %v1062
          %v1067 = vpack.c.bf16 %v1063, %v1063
          %1068 = vst.msk [vmem:[#allocation4] sm:$0xf] %vm755, %v1064
          %1069 = vst.msk [vmem:[#allocation4 + $0x4] sm:$0xf] %vm755, %v1065
          %1070 = vst.msk [vmem:[#allocation4 + $0x8] sm:$0xf] %vm755, %v1066
          %1071 = vst.msk [vmem:[#allocation4 + $0xc] sm:$0xf] %vm755, %v1067
        $region76: #{gpt2_forward.2} parent=71 // pred_fallthru
          _
        %vm1072 = vcmask 7168
        %1073 = vst.msk [vmem:[#allocation6] sm:$0xff] %vm1072, -1e+30
        %1074 = vst.msk [vmem:[#allocation6 + $0x8] sm:$0xff] %vm1072, -1e+30
        %1075 = vst.msk [vmem:[#allocation6 + $0x10] sm:$0xff] %vm1072, -1e+30
        %1076 = vst.msk [vmem:[#allocation6 + $0x18] sm:$0xff] %vm1072, -1e+30
        %1077 = vst.msk [vmem:[#allocation7] sm:$0xff] %vm1072, 0.0
        %1078 = vst.msk [vmem:[#allocation7 + $0x8] sm:$0xff] %vm1072, 0.0
        %1079 = vst.msk [vmem:[#allocation7 + $0x10] sm:$0xff] %vm1072, 0.0
        %1080 = vst.msk [vmem:[#allocation7 + $0x18] sm:$0xff] %vm1072, 0.0
        %vm1081 = vcmask 64512
        %1082 = vst.msk [vmem:[#allocation5] sm:$0xff] %vm1081, 0.0
        %1083 = vst.msk [vmem:[#allocation5 + $0x8] sm:$0xff] %vm1081, 0.0
        %1084 = vst.msk [vmem:[#allocation5 + $0x10] sm:$0xff] %vm1081, 0.0
        %1085 = vst.msk [vmem:[#allocation5 + $0x18] sm:$0xff] %vm1081, 0.0
        %s1086 = smul.u32 %s31, 8
        %s1087 = sshra.s32 %s1086, 3
        %s1088 = sand.u32 %s1086, 7
        %s1089 = smul.addr %s1087, 4
        %s1090 = scalar_lea.vmem [#allocation2], %s1089
        %v1091 = vld [vmem:[%s1090] sm:$0xf]
        %v1092 = vld [vmem:[%s1090 + $0x4] sm:$0xf]
        %v1093 = vld [vmem:[%s1090 + $0x8] sm:$0xf]
        %v1094 = vld [vmem:[%s1090 + $0xc] sm:$0xf]
        %s1095 = sadd.s32 %s31, 1
        // While loop
        $region77: #{gpt2_forward.2} parent=71 // loop_pre_header
          _
        $region78: #{gpt2_forward.2} parent=71 // loop_header
          %s1097 = sphi 0, %s1099
          %p1098 = scmp.ge.s32.totalorder %s1097, %s1095
        $region79: #{gpt2_forward.2} parent=71 // loop_header_branch
          %1101 = sbr.rel (%p1098) target = $region83
        $region80: #{gpt2_forward.2} parent=71 // loop_body
          %s1102 = smul.u32 %s1097, 8
          %s1103 = sshra.s32 %s1102, 3
          %s1104 = sand.u32 %s1102, 7
          %s1105 = smul.addr %s1103, 4
          %s1106 = scalar_lea.vmem [#allocation3], %s1105
          %v1107 = vld [vmem:[%s1106] sm:$0xf]
          %v1108 = vld [vmem:[%s1106 + $0x4] sm:$0xf]
          %v1109 = vld [vmem:[%s1106 + $0x8] sm:$0xf]
          %v1110 = vld [vmem:[%s1106 + $0xc] sm:$0xf]
          %s1111 = smul.addr %s1103, 4
          %s1112 = scalar_lea.vmem [#allocation4], %s1111
          %v1113 = vld [vmem:[%s1112] sm:$0xf]
          %v1114 = vld [vmem:[%s1112 + $0x4] sm:$0xf]
          %v1115 = vld [vmem:[%s1112 + $0x8] sm:$0xf]
          %v1116 = vld [vmem:[%s1112 + $0xc] sm:$0xf]
          %v1118 = vsel %vm1081, %v1091, 0
          %v1121 = vsel %vm1081, %v1107, 0
          %1123 = vmatprep.subr.bf16.mxu0 0
          %1124 = vmatpush1.bf16.xpose.msra.mxu0 %v1121
          %1125 = vmatprep.subr.bf16.mxu0 0
          %1126 = vmatpush1.bf16.xpose.msra.mxu0 0
          %1127 = vmatprep.subr.bf16.mxu0 0
          %1128 = vmatpush1.bf16.xpose.msra.mxu0 0
          %1129 = vmatprep.subr.bf16.mxu0 0
          %1130 = vmatpush1.bf16.xpose.msra.mxu0 0
          %1131 = vmatprep.subr.bf16.mxu0 0
          %1132 = vmatpush1.bf16.xpose.msra.mxu0 0
          %1133 = vmatprep.subr.bf16.mxu0 0
          %1134 = vmatpush1.bf16.xpose.msra.mxu0 0
          %1135 = vmatprep.subr.bf16.mxu0 0
          %1136 = vmatpush1.bf16.xpose.msra.mxu0 0
          %1137 = vmatprep.subr.bf16.mxu0 0
          %1138 = vmatpush1.bf16.xpose.msra.mxu0 0
          %1139 = vmatprep.subr.bf16.mxu0 0
          %1140 = vmatpush1.bf16.xpose.msra.mxu0 0
          %1141 = vmatprep.subr.bf16.mxu0 0
          %1142 = vmatpush1.bf16.xpose.msra.mxu0 0
          %1143 = vmatprep.subr.bf16.mxu0 0
          %1144 = vmatpush1.bf16.xpose.msra.mxu0 0
          %1145 = vmatprep.subr.bf16.mxu0 0
          %1146 = vmatpush1.bf16.xpose.msra.mxu0 0
          %1147 = vmatprep.subr.bf16.mxu0 0
          %1148 = vmatpush1.bf16.xpose.msra.mxu0 0
          %1149 = vmatprep.subr.bf16.mxu0 0
          %1150 = vmatpush1.bf16.xpose.msra.mxu0 0
          %1151 = vmatprep.subr.bf16.mxu0 0
          %1152 = vmatpush1.bf16.xpose.msra.mxu0 0
          %1153 = vmatprep.subr.bf16.mxu0 0
          %1154 = vmatpush1.bf16.xpose.msra.mxu0 0
          %1155 = vmatprep.mubr.bf16.mxu0 0
          %1156 = vmatmul.mubr.bf16.gmra.mrb[0].mxu0 %v1118
          %v1157 = vpop.f32.mrb[0].mxu0
          %v1158 = vadd.f32 0.0, %v1157
          %v1159 = vpop.f32.mrb[0].mxu0
          %v1160 = vpop.f32.mrb[0].mxu0
          %v1161 = vpop.f32.mrb[0].mxu0
          %1162 = vdwg.mxu0
          %v1164 = vsel %vm1081, %v1092, 0
          %v1167 = vsel %vm1081, %v1108, 0
          %1169 = vmatprep.subr.bf16.mxu0 0
          %1170 = vmatpush1.bf16.xpose.msra.mxu0 %v1167
          %1171 = vmatprep.subr.bf16.mxu0 0
          %1172 = vmatpush1.bf16.xpose.msra.mxu0 0
          %1173 = vmatprep.subr.bf16.mxu0 0
          %1174 = vmatpush1.bf16.xpose.msra.mxu0 0
          %1175 = vmatprep.subr.bf16.mxu0 0
          %1176 = vmatpush1.bf16.xpose.msra.mxu0 0
          %1177 = vmatprep.subr.bf16.mxu0 0
          %1178 = vmatpush1.bf16.xpose.msra.mxu0 0
          %1179 = vmatprep.subr.bf16.mxu0 0
          %1180 = vmatpush1.bf16.xpose.msra.mxu0 0
          %1181 = vmatprep.subr.bf16.mxu0 0
          %1182 = vmatpush1.bf16.xpose.msra.mxu0 0
          %1183 = vmatprep.subr.bf16.mxu0 0
          %1184 = vmatpush1.bf16.xpose.msra.mxu0 0
          %1185 = vmatprep.subr.bf16.mxu0 0
          %1186 = vmatpush1.bf16.xpose.msra.mxu0 0
          %1187 = vmatprep.subr.bf16.mxu0 0
          %1188 = vmatpush1.bf16.xpose.msra.mxu0 0
          %1189 = vmatprep.subr.bf16.mxu0 0
          %1190 = vmatpush1.bf16.xpose.msra.mxu0 0
          %1191 = vmatprep.subr.bf16.mxu0 0
          %1192 = vmatpush1.bf16.xpose.msra.mxu0 0
          %1193 = vmatprep.subr.bf16.mxu0 0
          %1194 = vmatpush1.bf16.xpose.msra.mxu0 0
          %1195 = vmatprep.subr.bf16.mxu0 0
          %1196 = vmatpush1.bf16.xpose.msra.mxu0 0
          %1197 = vmatprep.subr.bf16.mxu0 0
          %1198 = vmatpush1.bf16.xpose.msra.mxu0 0
          %1199 = vmatprep.subr.bf16.mxu0 0
          %1200 = vmatpush1.bf16.xpose.msra.mxu0 0
          %1201 = vmatprep.mubr.bf16.mxu0 0
          %1202 = vmatmul.mubr.bf16.gmra.mrb[0].mxu0 %v1164
          %v1203 = vpop.f32.mrb[0].mxu0
          %v1204 = vadd.f32 0.0, %v1203
          %v1205 = vpop.f32.mrb[0].mxu0
          %v1206 = vpop.f32.mrb[0].mxu0
          %v1207 = vpop.f32.mrb[0].mxu0
          %1208 = vdwg.mxu0
          %v1210 = vsel %vm1081, %v1093, 0
          %v1213 = vsel %vm1081, %v1109, 0
          %1215 = vmatprep.subr.bf16.mxu0 0
          %1216 = vmatpush1.bf16.xpose.msra.mxu0 %v1213
          %1217 = vmatprep.subr.bf16.mxu0 0
          %1218 = vmatpush1.bf16.xpose.msra.mxu0 0
          %1219 = vmatprep.subr.bf16.mxu0 0
          %1220 = vmatpush1.bf16.xpose.msra.mxu0 0
          %1221 = vmatprep.subr.bf16.mxu0 0
          %1222 = vmatpush1.bf16.xpose.msra.mxu0 0
          %1223 = vmatprep.subr.bf16.mxu0 0
          %1224 = vmatpush1.bf16.xpose.msra.mxu0 0
          %1225 = vmatprep.subr.bf16.mxu0 0
          %1226 = vmatpush1.bf16.xpose.msra.mxu0 0
          %1227 = vmatprep.subr.bf16.mxu0 0
          %1228 = vmatpush1.bf16.xpose.msra.mxu0 0
          %1229 = vmatprep.subr.bf16.mxu0 0
          %1230 = vmatpush1.bf16.xpose.msra.mxu0 0
          %1231 = vmatprep.subr.bf16.mxu0 0
          %1232 = vmatpush1.bf16.xpose.msra.mxu0 0
          %1233 = vmatprep.subr.bf16.mxu0 0
          %1234 = vmatpush1.bf16.xpose.msra.mxu0 0
          %1235 = vmatprep.subr.bf16.mxu0 0
          %1236 = vmatpush1.bf16.xpose.msra.mxu0 0
          %1237 = vmatprep.subr.bf16.mxu0 0
          %1238 = vmatpush1.bf16.xpose.msra.mxu0 0
          %1239 = vmatprep.subr.bf16.mxu0 0
          %1240 = vmatpush1.bf16.xpose.msra.mxu0 0
          %1241 = vmatprep.subr.bf16.mxu0 0
          %1242 = vmatpush1.bf16.xpose.msra.mxu0 0
          %1243 = vmatprep.subr.bf16.mxu0 0
          %1244 = vmatpush1.bf16.xpose.msra.mxu0 0
          %1245 = vmatprep.subr.bf16.mxu0 0
          %1246 = vmatpush1.bf16.xpose.msra.mxu0 0
          %1247 = vmatprep.mubr.bf16.mxu0 0
          %1248 = vmatmul.mubr.bf16.gmra.mrb[0].mxu0 %v1210
          %v1249 = vpop.f32.mrb[0].mxu0
          %v1250 = vadd.f32 0.0, %v1249
          %v1251 = vpop.f32.mrb[0].mxu0
          %v1252 = vpop.f32.mrb[0].mxu0
          %v1253 = vpop.f32.mrb[0].mxu0
          %1254 = vdwg.mxu0
          %v1256 = vsel %vm1081, %v1094, 0
          %v1259 = vsel %vm1081, %v1110, 0
          %1261 = vmatprep.subr.bf16.mxu0 0
          %1262 = vmatpush1.bf16.xpose.msra.mxu0 %v1259
          %1263 = vmatprep.subr.bf16.mxu0 0
          %1264 = vmatpush1.bf16.xpose.msra.mxu0 0
          %1265 = vmatprep.subr.bf16.mxu0 0
          %1266 = vmatpush1.bf16.xpose.msra.mxu0 0
          %1267 = vmatprep.subr.bf16.mxu0 0
          %1268 = vmatpush1.bf16.xpose.msra.mxu0 0
          %1269 = vmatprep.subr.bf16.mxu0 0
          %1270 = vmatpush1.bf16.xpose.msra.mxu0 0
          %1271 = vmatprep.subr.bf16.mxu0 0
          %1272 = vmatpush1.bf16.xpose.msra.mxu0 0
          %1273 = vmatprep.subr.bf16.mxu0 0
          %1274 = vmatpush1.bf16.xpose.msra.mxu0 0
          %1275 = vmatprep.subr.bf16.mxu0 0
          %1276 = vmatpush1.bf16.xpose.msra.mxu0 0
          %1277 = vmatprep.subr.bf16.mxu0 0
          %1278 = vmatpush1.bf16.xpose.msra.mxu0 0
          %1279 = vmatprep.subr.bf16.mxu0 0
          %1280 = vmatpush1.bf16.xpose.msra.mxu0 0
          %1281 = vmatprep.subr.bf16.mxu0 0
          %1282 = vmatpush1.bf16.xpose.msra.mxu0 0
          %1283 = vmatprep.subr.bf16.mxu0 0
          %1284 = vmatpush1.bf16.xpose.msra.mxu0 0
          %1285 = vmatprep.subr.bf16.mxu0 0
          %1286 = vmatpush1.bf16.xpose.msra.mxu0 0
          %1287 = vmatprep.subr.bf16.mxu0 0
          %1288 = vmatpush1.bf16.xpose.msra.mxu0 0
          %1289 = vmatprep.subr.bf16.mxu0 0
          %1290 = vmatpush1.bf16.xpose.msra.mxu0 0
          %1291 = vmatprep.subr.bf16.mxu0 0
          %1292 = vmatpush1.bf16.xpose.msra.mxu0 0
          %1293 = vmatprep.mubr.bf16.mxu0 0
          %1294 = vmatmul.mubr.bf16.gmra.mrb[0].mxu0 %v1256
          %v1295 = vpop.f32.mrb[0].mxu0
          %v1296 = vadd.f32 0.0, %v1295
          %v1297 = vpop.f32.mrb[0].mxu0
          %v1298 = vpop.f32.mrb[0].mxu0
          %v1299 = vpop.f32.mrb[0].mxu0
          %1300 = vdwg.mxu0
          %v1301 = vlaneseq
          %v1302 = vshrl.u32 %v1301, 7
          %v1303 = vstv %s1086
          %v1304 = vadd.s32 %v1302, %v1303
          %v1305 = vlaneseq
          %v1306 = vand.u32 %v1305, 127
          %v1307 = vstv %s1102
          %v1308 = vadd.s32 %v1306, %v1307
          %vm1309 = vcmp.le.s32.totalorder %v1308, %v1304
          %v1310 = vsel %vm1309, 1, 0
          %vm1311 = vcmp.eq.s32.totalorder %v1310, 1
          %v1312 = vsel %vm1311, %v1158, -1e+10
          %v1313 = vsel %vm1311, %v1204, -1e+10
          %v1314 = vsel %vm1311, %v1250, -1e+10
          %v1315 = vsel %vm1311, %v1296, -1e+10
          %v1316 = vld [vmem:[#allocation6] sm:$0xff]
          %v1317 = vld [vmem:[#allocation6 + $0x8] sm:$0xff]
          %v1318 = vld [vmem:[#allocation6 + $0x10] sm:$0xff]
          %v1319 = vld [vmem:[#allocation6 + $0x18] sm:$0xff]
          %v1320 = vsel %vm1081, %v1312, -inf
          %1321 = vmax.xlane.f32.xlu0 %v1320
          %v1322 = vpop.xlane.xlu0 %1321
          %v1323 = vsel %vm1081, %v1313, -inf
          %1324 = vmax.xlane.f32.xlu0 %v1323
          %v1325 = vpop.xlane.xlu0 %1324
          %v1326 = vsel %vm1081, %v1314, -inf
          %1327 = vmax.xlane.f32.xlu0 %v1326
          %v1328 = vpop.xlane.xlu0 %1327
          %v1329 = vsel %vm1081, %v1315, -inf
          %1330 = vmax.xlane.f32.xlu0 %v1329
          %v1331 = vpop.xlane.xlu0 %1330
          %v1332 = vmax.f32 %v1316, %v1322
          %v1333 = vmax.f32 %v1317, %v1325
          %v1334 = vmax.f32 %v1318, %v1328
          %v1335 = vmax.f32 %v1319, %v1331
          %v1336 = vsub.f32 %v1316, %v1332
          %v1337 = vsub.f32 %v1317, %v1333
          %v1338 = vsub.f32 %v1318, %v1334
          %v1339 = vsub.f32 %v1319, %v1335
          %v1340 = vmul.f32 %v1336, 1.442695
          %v1341 = vpow.pop %v1340
          %v1342 = vmul.f32 %v1337, 1.442695
          %v1343 = vpow.pop %v1342
          %v1344 = vmul.f32 %v1338, 1.442695
          %v1345 = vpow.pop %v1344
          %v1346 = vmul.f32 %v1339, 1.442695
          %v1347 = vpow.pop %v1346
          %1349 = vset.pattern.permute.xlu0 0
          %1350 = vperm.xlu0 %1349, %v1332
          %v1351 = vpop.permute.xlu0 %1350
          %1354 = vset.pattern.permute.xlu0 0
          %1355 = vperm.xlu0 %1354, %v1333
          %v1356 = vpop.permute.xlu0 %1355
          %1359 = vset.pattern.permute.xlu0 0
          %1360 = vperm.xlu0 %1359, %v1334
          %v1361 = vpop.permute.xlu0 %1360
          %1364 = vset.pattern.permute.xlu0 0
          %1365 = vperm.xlu0 %1364, %v1335
          %v1366 = vpop.permute.xlu0 %1365
          %v1368 = vsub.f32 %v1312, %v1351
          %v1369 = vsub.f32 %v1313, %v1356
          %v1370 = vsub.f32 %v1314, %v1361
          %v1371 = vsub.f32 %v1315, %v1366
          %v1372 = vmul.f32 %v1368, 1.442695
          %v1373 = vpow.pop %v1372
          %v1374 = vmul.f32 %v1369, 1.442695
          %v1375 = vpow.pop %v1374
          %v1376 = vmul.f32 %v1370, 1.442695
          %v1377 = vpow.pop %v1376
          %v1378 = vmul.f32 %v1371, 1.442695
          %v1379 = vpow.pop %v1378
          %v1380 = vld [vmem:[#allocation7] sm:$0xff]
          %v1381 = vld [vmem:[#allocation7 + $0x8] sm:$0xff]
          %v1382 = vld [vmem:[#allocation7 + $0x10] sm:$0xff]
          %v1383 = vld [vmem:[#allocation7 + $0x18] sm:$0xff]
          %v1384 = vmul.f32 %v1341, %v1380
          %v1385 = vmul.f32 %v1343, %v1381
          %v1386 = vmul.f32 %v1345, %v1382
          %v1387 = vmul.f32 %v1347, %v1383
          %v1388 = vsel %vm1081, %v1373, 0.0
          %1389 = vadd.xlane.f32.xlu0 %v1388
          %v1390 = vpop.xlane.xlu0 %1389
          %v1391 = vsel %vm1081, %v1375, 0.0
          %1392 = vadd.xlane.f32.xlu0 %v1391
          %v1393 = vpop.xlane.xlu0 %1392
          %v1394 = vsel %vm1081, %v1377, 0.0
          %1395 = vadd.xlane.f32.xlu0 %v1394
          %v1396 = vpop.xlane.xlu0 %1395
          %v1397 = vsel %vm1081, %v1379, 0.0
          %1398 = vadd.xlane.f32.xlu0 %v1397
          %v1399 = vpop.xlane.xlu0 %1398
          %v1400 = vadd.f32 %v1384, %v1390
          %v1401 = vadd.f32 %v1385, %v1393
          %v1402 = vadd.f32 %v1386, %v1396
          %v1403 = vadd.f32 %v1387, %v1399
          %1404 = vst.msk [vmem:[#allocation7] sm:$0xff] %vm1072, %v1400
          %1405 = vst.msk [vmem:[#allocation7 + $0x8] sm:$0xff] %vm1072, %v1401
          %1406 = vst.msk [vmem:[#allocation7 + $0x10] sm:$0xff] %vm1072, %v1402
          %1407 = vst.msk [vmem:[#allocation7 + $0x18] sm:$0xff] %vm1072, %v1403
          %v1408 = vld [vmem:[#allocation5] sm:$0xff]
          %v1409 = vld [vmem:[#allocation5 + $0x8] sm:$0xff]
          %v1410 = vld [vmem:[#allocation5 + $0x10] sm:$0xff]
          %v1411 = vld [vmem:[#allocation5 + $0x18] sm:$0xff]
          %1413 = vset.pattern.permute.xlu0 0
          %1414 = vperm.xlu0 %1413, %v1341
          %v1415 = vpop.permute.xlu0 %1414
          %1418 = vset.pattern.permute.xlu0 0
          %1419 = vperm.xlu0 %1418, %v1343
          %v1420 = vpop.permute.xlu0 %1419
          %1423 = vset.pattern.permute.xlu0 0
          %1424 = vperm.xlu0 %1423, %v1345
          %v1425 = vpop.permute.xlu0 %1424
          %1428 = vset.pattern.permute.xlu0 0
          %1429 = vperm.xlu0 %1428, %v1347
          %v1430 = vpop.permute.xlu0 %1429
          %v1432 = vmul.f32 %v1415, %v1408
          %v1433 = vmul.f32 %v1420, %v1409
          %v1434 = vmul.f32 %v1425, %v1410
          %v1435 = vmul.f32 %v1430, %v1411
          %v1436 = vpack.c.bf16 %v1373, %v1373
          %v1437 = vpack.c.bf16 %v1375, %v1375
          %v1438 = vpack.c.bf16 %v1377, %v1377
          %v1439 = vpack.c.bf16 %v1379, %v1379
          %v1441 = vsel %vm1081, %v1436, 0
          %vm1443 = vcmask 1043456
          %v1445 = vsel %vm1443, %v1113, 0
          %1447 = vmatprep.subr.bf16.mxu0 0
          %1448 = vmatpush1.bf16.msra.mxu0 %v1445
          %1449 = vmatprep.subr.bf16.mxu0 0
          %1450 = vmatpush1.bf16.msra.mxu0 0
          %1451 = vmatprep.subr.bf16.mxu0 0
          %1452 = vmatpush1.bf16.msra.mxu0 0
          %1453 = vmatprep.subr.bf16.mxu0 0
          %1454 = vmatpush1.bf16.msra.mxu0 0
          %1455 = vmatprep.subr.bf16.mxu0 0
          %1456 = vmatpush1.bf16.msra.mxu0 0
          %1457 = vmatprep.subr.bf16.mxu0 0
          %1458 = vmatpush1.bf16.msra.mxu0 0
          %1459 = vmatprep.subr.bf16.mxu0 0
          %1460 = vmatpush1.bf16.msra.mxu0 0
          %1461 = vmatprep.subr.bf16.mxu0 0
          %1462 = vmatpush1.bf16.msra.mxu0 0
          %1463 = vmatprep.subr.bf16.mxu0 0
          %1464 = vmatpush1.bf16.msra.mxu0 0
          %1465 = vmatprep.subr.bf16.mxu0 0
          %1466 = vmatpush1.bf16.msra.mxu0 0
          %1467 = vmatprep.subr.bf16.mxu0 0
          %1468 = vmatpush1.bf16.msra.mxu0 0
          %1469 = vmatprep.subr.bf16.mxu0 0
          %1470 = vmatpush1.bf16.msra.mxu0 0
          %1471 = vmatprep.subr.bf16.mxu0 0
          %1472 = vmatpush1.bf16.msra.mxu0 0
          %1473 = vmatprep.subr.bf16.mxu0 0
          %1474 = vmatpush1.bf16.msra.mxu0 0
          %1475 = vmatprep.subr.bf16.mxu0 0
          %1476 = vmatpush1.bf16.msra.mxu0 0
          %1477 = vmatprep.subr.bf16.mxu0 0
          %1478 = vmatpush1.bf16.msra.mxu0 0
          %1479 = vmatprep.mubr.bf16.mxu0 0
          %1480 = vmatmul.mubr.bf16.gmra.mrb[0].mxu0 %v1441
          %v1481 = vpop.f32.mrb[0].mxu0
          %v1482 = vadd.f32 0.0, %v1481
          %v1483 = vpop.f32.mrb[0].mxu0
          %v1484 = vpop.f32.mrb[0].mxu0
          %v1485 = vpop.f32.mrb[0].mxu0
          %1486 = vdwg.mxu0
          %v1488 = vsel %vm1081, %v1437, 0
          %v1491 = vsel %vm1443, %v1114, 0
          %1493 = vmatprep.subr.bf16.mxu0 0
          %1494 = vmatpush1.bf16.msra.mxu0 %v1491
          %1495 = vmatprep.subr.bf16.mxu0 0
          %1496 = vmatpush1.bf16.msra.mxu0 0
          %1497 = vmatprep.subr.bf16.mxu0 0
          %1498 = vmatpush1.bf16.msra.mxu0 0
          %1499 = vmatprep.subr.bf16.mxu0 0
          %1500 = vmatpush1.bf16.msra.mxu0 0
          %1501 = vmatprep.subr.bf16.mxu0 0
          %1502 = vmatpush1.bf16.msra.mxu0 0
          %1503 = vmatprep.subr.bf16.mxu0 0
          %1504 = vmatpush1.bf16.msra.mxu0 0
          %1505 = vmatprep.subr.bf16.mxu0 0
          %1506 = vmatpush1.bf16.msra.mxu0 0
          %1507 = vmatprep.subr.bf16.mxu0 0
          %1508 = vmatpush1.bf16.msra.mxu0 0
          %1509 = vmatprep.subr.bf16.mxu0 0
          %1510 = vmatpush1.bf16.msra.mxu0 0
          %1511 = vmatprep.subr.bf16.mxu0 0
          %1512 = vmatpush1.bf16.msra.mxu0 0
          %1513 = vmatprep.subr.bf16.mxu0 0
          %1514 = vmatpush1.bf16.msra.mxu0 0
          %1515 = vmatprep.subr.bf16.mxu0 0
          %1516 = vmatpush1.bf16.msra.mxu0 0
          %1517 = vmatprep.subr.bf16.mxu0 0
          %1518 = vmatpush1.bf16.msra.mxu0 0
          %1519 = vmatprep.subr.bf16.mxu0 0
          %1520 = vmatpush1.bf16.msra.mxu0 0
          %1521 = vmatprep.subr.bf16.mxu0 0
          %1522 = vmatpush1.bf16.msra.mxu0 0
          %1523 = vmatprep.subr.bf16.mxu0 0
          %1524 = vmatpush1.bf16.msra.mxu0 0
          %1525 = vmatprep.mubr.bf16.mxu0 0
          %1526 = vmatmul.mubr.bf16.gmra.mrb[0].mxu0 %v1488
          %v1527 = vpop.f32.mrb[0].mxu0
          %v1528 = vadd.f32 0.0, %v1527
          %v1529 = vpop.f32.mrb[0].mxu0
          %v1530 = vpop.f32.mrb[0].mxu0
          %v1531 = vpop.f32.mrb[0].mxu0
          %1532 = vdwg.mxu0
          %v1534 = vsel %vm1081, %v1438, 0
          %v1537 = vsel %vm1443, %v1115, 0
          %1539 = vmatprep.subr.bf16.mxu0 0
          %1540 = vmatpush1.bf16.msra.mxu0 %v1537
          %1541 = vmatprep.subr.bf16.mxu0 0
          %1542 = vmatpush1.bf16.msra.mxu0 0
          %1543 = vmatprep.subr.bf16.mxu0 0
          %1544 = vmatpush1.bf16.msra.mxu0 0
          %1545 = vmatprep.subr.bf16.mxu0 0
          %1546 = vmatpush1.bf16.msra.mxu0 0
          %1547 = vmatprep.subr.bf16.mxu0 0
          %1548 = vmatpush1.bf16.msra.mxu0 0
          %1549 = vmatprep.subr.bf16.mxu0 0
          %1550 = vmatpush1.bf16.msra.mxu0 0
          %1551 = vmatprep.subr.bf16.mxu0 0
          %1552 = vmatpush1.bf16.msra.mxu0 0
          %1553 = vmatprep.subr.bf16.mxu0 0
          %1554 = vmatpush1.bf16.msra.mxu0 0
          %1555 = vmatprep.subr.bf16.mxu0 0
          %1556 = vmatpush1.bf16.msra.mxu0 0
          %1557 = vmatprep.subr.bf16.mxu0 0
          %1558 = vmatpush1.bf16.msra.mxu0 0
          %1559 = vmatprep.subr.bf16.mxu0 0
          %1560 = vmatpush1.bf16.msra.mxu0 0
          %1561 = vmatprep.subr.bf16.mxu0 0
          %1562 = vmatpush1.bf16.msra.mxu0 0
          %1563 = vmatprep.subr.bf16.mxu0 0
          %1564 = vmatpush1.bf16.msra.mxu0 0
          %1565 = vmatprep.subr.bf16.mxu0 0
          %1566 = vmatpush1.bf16.msra.mxu0 0
          %1567 = vmatprep.subr.bf16.mxu0 0
          %1568 = vmatpush1.bf16.msra.mxu0 0
          %1569 = vmatprep.subr.bf16.mxu0 0
          %1570 = vmatpush1.bf16.msra.mxu0 0
          %1571 = vmatprep.mubr.bf16.mxu0 0
          %1572 = vmatmul.mubr.bf16.gmra.mrb[0].mxu0 %v1534
          %v1573 = vpop.f32.mrb[0].mxu0
          %v1574 = vadd.f32 0.0, %v1573
          %v1575 = vpop.f32.mrb[0].mxu0
          %v1576 = vpop.f32.mrb[0].mxu0
          %v1577 = vpop.f32.mrb[0].mxu0
          %1578 = vdwg.mxu0
          %v1580 = vsel %vm1081, %v1439, 0
          %v1583 = vsel %vm1443, %v1116, 0
          %1585 = vmatprep.subr.bf16.mxu0 0
          %1586 = vmatpush1.bf16.msra.mxu0 %v1583
          %1587 = vmatprep.subr.bf16.mxu0 0
          %1588 = vmatpush1.bf16.msra.mxu0 0
          %1589 = vmatprep.subr.bf16.mxu0 0
          %1590 = vmatpush1.bf16.msra.mxu0 0
          %1591 = vmatprep.subr.bf16.mxu0 0
          %1592 = vmatpush1.bf16.msra.mxu0 0
          %1593 = vmatprep.subr.bf16.mxu0 0
          %1594 = vmatpush1.bf16.msra.mxu0 0
          %1595 = vmatprep.subr.bf16.mxu0 0
          %1596 = vmatpush1.bf16.msra.mxu0 0
          %1597 = vmatprep.subr.bf16.mxu0 0
          %1598 = vmatpush1.bf16.msra.mxu0 0
          %1599 = vmatprep.subr.bf16.mxu0 0
          %1600 = vmatpush1.bf16.msra.mxu0 0
          %1601 = vmatprep.subr.bf16.mxu0 0
          %1602 = vmatpush1.bf16.msra.mxu0 0
          %1603 = vmatprep.subr.bf16.mxu0 0
          %1604 = vmatpush1.bf16.msra.mxu0 0
          %1605 = vmatprep.subr.bf16.mxu0 0
          %1606 = vmatpush1.bf16.msra.mxu0 0
          %1607 = vmatprep.subr.bf16.mxu0 0
          %1608 = vmatpush1.bf16.msra.mxu0 0
          %1609 = vmatprep.subr.bf16.mxu0 0
          %1610 = vmatpush1.bf16.msra.mxu0 0
          %1611 = vmatprep.subr.bf16.mxu0 0
          %1612 = vmatpush1.bf16.msra.mxu0 0
          %1613 = vmatprep.subr.bf16.mxu0 0
          %1614 = vmatpush1.bf16.msra.mxu0 0
          %1615 = vmatprep.subr.bf16.mxu0 0
          %1616 = vmatpush1.bf16.msra.mxu0 0
          %1617 = vmatprep.mubr.bf16.mxu0 0
          %1618 = vmatmul.mubr.bf16.gmra.mrb[0].mxu0 %v1580
          %v1619 = vpop.f32.mrb[0].mxu0
          %v1620 = vadd.f32 0.0, %v1619
          %v1621 = vpop.f32.mrb[0].mxu0
          %v1622 = vpop.f32.mrb[0].mxu0
          %v1623 = vpop.f32.mrb[0].mxu0
          %1624 = vdwg.mxu0
          %v1625 = vadd.f32 %v1432, %v1482
          %v1626 = vadd.f32 %v1433, %v1528
          %v1627 = vadd.f32 %v1434, %v1574
          %v1628 = vadd.f32 %v1435, %v1620
          %1629 = vst.msk [vmem:[#allocation5] sm:$0xff] %vm1081, %v1625
          %1630 = vst.msk [vmem:[#allocation5 + $0x8] sm:$0xff] %vm1081, %v1626
          %1631 = vst.msk [vmem:[#allocation5 + $0x10] sm:$0xff] %vm1081, %v1627
          %1632 = vst.msk [vmem:[#allocation5 + $0x18] sm:$0xff] %vm1081, %v1628
          %1633 = vst.msk [vmem:[#allocation6] sm:$0xff] %vm1072, %v1332
          %1634 = vst.msk [vmem:[#allocation6 + $0x8] sm:$0xff] %vm1072, %v1333
          %1635 = vst.msk [vmem:[#allocation6 + $0x10] sm:$0xff] %vm1072, %v1334
          %1636 = vst.msk [vmem:[#allocation6 + $0x18] sm:$0xff] %vm1072, %v1335
        $region81: #{gpt2_forward.2} parent=71 // loop_footer
          %s1099 = sadd.s32 %s1097, 1
        $region82: #{gpt2_forward.2} parent=71 // loop_footer_branch
          %1096 = sbr.rel target = $region78
        $region83: #{gpt2_forward.2} parent=71 // loop_exit
          _
        %v1637 = vld [vmem:[#allocation5] sm:$0xff]
        %v1638 = vld [vmem:[#allocation5 + $0x8] sm:$0xff]
        %v1639 = vld [vmem:[#allocation5 + $0x10] sm:$0xff]
        %v1640 = vld [vmem:[#allocation5 + $0x18] sm:$0xff]
        %v1641 = vld [vmem:[#allocation7] sm:$0xff]
        %v1642 = vld [vmem:[#allocation7 + $0x8] sm:$0xff]
        %v1643 = vld [vmem:[#allocation7 + $0x10] sm:$0xff]
        %v1644 = vld [vmem:[#allocation7 + $0x18] sm:$0xff]
        %v1645 = vrcp.pop %v1641
        %v1646 = vrcp.pop %v1642
        %v1647 = vrcp.pop %v1643
        %v1648 = vrcp.pop %v1644
        %1650 = vset.pattern.permute.xlu0 0
        %1651 = vperm.xlu0 %1650, %v1645
        %v1652 = vpop.permute.xlu0 %1651
        %1655 = vset.pattern.permute.xlu0 0
        %1656 = vperm.xlu0 %1655, %v1646
        %v1657 = vpop.permute.xlu0 %1656
        %1660 = vset.pattern.permute.xlu0 0
        %1661 = vperm.xlu0 %1660, %v1647
        %v1662 = vpop.permute.xlu0 %1661
        %1665 = vset.pattern.permute.xlu0 0
        %1666 = vperm.xlu0 %1665, %v1648
        %v1667 = vpop.permute.xlu0 %1666
        %v1669 = vmul.f32 %v1637, %v1652
        %v1670 = vmul.f32 %v1638, %v1657
        %v1671 = vmul.f32 %v1639, %v1662
        %v1672 = vmul.f32 %v1640, %v1667
        %v1673 = vcombine.low %v1669, %v1671
        %v1674 = vcombine.high %v1669, %v1671
        %v1676 = vunpack.c.l.s4 1983009808
        %v1677 = vunpack.c.0.s8 %v1676
        %v1678 = vlaneseq
        %v1679 = vshrl.u32 %v1678, 7
        %v1680 = vsub.s32 %v1677, %v1679
        %v1681 = vrot.slane %v1673, %v1680
        %v1683 = vunpack.c.l.s4 1983009808
        %v1684 = vunpack.c.0.s8 %v1683
        %v1685 = vlaneseq
        %v1686 = vshrl.u32 %v1685, 7
        %v1687 = vsub.s32 %v1684, %v1686
        %v1688 = vrot.slane %v1674, %v1687
        %v1689 = vcombine.low %v1670, %v1672
        %v1690 = vcombine.high %v1670, %v1672
        %v1692 = vunpack.c.l.s4 1983009808
        %v1693 = vunpack.c.0.s8 %v1692
        %v1694 = vlaneseq
        %v1695 = vshrl.u32 %v1694, 7
        %v1696 = vsub.s32 %v1693, %v1695
        %v1697 = vrot.slane %v1689, %v1696
        %v1699 = vunpack.c.l.s4 1983009808
        %v1700 = vunpack.c.0.s8 %v1699
        %v1701 = vlaneseq
        %v1702 = vshrl.u32 %v1701, 7
        %v1703 = vsub.s32 %v1700, %v1702
        %v1704 = vrot.slane %v1690, %v1703
        %v1705 = vcombine.low %v1681, %v1697
        %v1706 = vcombine.high %v1681, %v1697
        %v1708 = vunpack.c.l.s4 1934713408
        %v1709 = vunpack.c.0.s8 %v1708
        %v1710 = vlaneseq
        %v1711 = vshrl.u32 %v1710, 7
        %v1712 = vsub.s32 %v1709, %v1711
        %v1713 = vrot.slane %v1705, %v1712
        %v1715 = vunpack.c.l.s4 1934713408
        %v1716 = vunpack.c.0.s8 %v1715
        %v1717 = vlaneseq
        %v1718 = vshrl.u32 %v1717, 7
        %v1719 = vsub.s32 %v1716, %v1718
        %v1720 = vrot.slane %v1706, %v1719
        %v1721 = vcombine.low %v1688, %v1704
        %v1722 = vcombine.high %v1688, %v1704
        %v1724 = vunpack.c.l.s4 1934713408
        %v1725 = vunpack.c.0.s8 %v1724
        %v1726 = vlaneseq
        %v1727 = vshrl.u32 %v1726, 7
        %v1728 = vsub.s32 %v1725, %v1727
        %v1729 = vrot.slane %v1721, %v1728
        %v1731 = vunpack.c.l.s4 1934713408
        %v1732 = vunpack.c.0.s8 %v1731
        %v1733 = vlaneseq
        %v1734 = vshrl.u32 %v1733, 7
        %v1735 = vsub.s32 %v1732, %v1734
        %v1736 = vrot.slane %v1722, %v1735
        %v1737 = vcombine.high %v1713, 0.0
        %v1738 = vcombine.high %v1720, 0.0
        %v1739 = vcombine.high %v1729, 0.0
        %v1740 = vcombine.high %v1736, 0.0
        %v1741 = vcombine.low %v1713, %v1720
        %v1743 = vunpack.c.l.s4 1983009808
        %v1744 = vunpack.c.0.s8 %v1743
        %v1745 = vlaneseq
        %v1746 = vshrl.u32 %v1745, 7
        %v1747 = vsub.s32 %v1744, %v1746
        %v1748 = vrot.slane %v1741, %v1747
        %v1749 = vcombine.low %v1737, %v1738
        %v1751 = vunpack.c.l.s4 1983009808
        %v1752 = vunpack.c.0.s8 %v1751
        %v1753 = vlaneseq
        %v1754 = vshrl.u32 %v1753, 7
        %v1755 = vsub.s32 %v1752, %v1754
        %v1756 = vrot.slane %v1749, %v1755
        %v1757 = vcombine.low %v1729, %v1736
        %v1759 = vunpack.c.l.s4 1983009808
        %v1760 = vunpack.c.0.s8 %v1759
        %v1761 = vlaneseq
        %v1762 = vshrl.u32 %v1761, 7
        %v1763 = vsub.s32 %v1760, %v1762
        %v1764 = vrot.slane %v1757, %v1763
        %v1765 = vcombine.low %v1739, %v1740
        %v1767 = vunpack.c.l.s4 1983009808
        %v1768 = vunpack.c.0.s8 %v1767
        %v1769 = vlaneseq
        %v1770 = vshrl.u32 %v1769, 7
        %v1771 = vsub.s32 %v1768, %v1770
        %v1772 = vrot.slane %v1765, %v1771
        %v1773 = vcombine.low %v1748, %v1756
        %v1774 = vcombine.high %v1748, %v1756
        %v1776 = vunpack.c.l.s4 1934713408
        %v1777 = vunpack.c.0.s8 %v1776
        %v1778 = vlaneseq
        %v1779 = vshrl.u32 %v1778, 7
        %v1780 = vsub.s32 %v1777, %v1779
        %v1781 = vrot.slane %v1773, %v1780
        %v1783 = vunpack.c.l.s4 1934713408
        %v1784 = vunpack.c.0.s8 %v1783
        %v1785 = vlaneseq
        %v1786 = vshrl.u32 %v1785, 7
        %v1787 = vsub.s32 %v1784, %v1786
        %v1788 = vrot.slane %v1774, %v1787
        %v1789 = vcombine.low %v1764, %v1772
        %v1790 = vcombine.high %v1764, %v1772
        %v1792 = vunpack.c.l.s4 1934713408
        %v1793 = vunpack.c.0.s8 %v1792
        %v1794 = vlaneseq
        %v1795 = vshrl.u32 %v1794, 7
        %v1796 = vsub.s32 %v1793, %v1795
        %v1797 = vrot.slane %v1789, %v1796
        %v1799 = vunpack.c.l.s4 1934713408
        %v1800 = vunpack.c.0.s8 %v1799
        %v1801 = vlaneseq
        %v1802 = vshrl.u32 %v1801, 7
        %v1803 = vsub.s32 %v1800, %v1802
        %v1804 = vrot.slane %v1790, %v1803
        %v1805 = vcombine.low %v1781, %v1797
        %v1806 = vcombine.high %v1781, %v1797
        %v1807 = vcombine.low %v1788, %v1804
        %v1808 = vcombine.high %v1788, %v1804
        %1810 = vrot.lane.b32.xlu0 %v1806, 8
        %v1811 = vpop.permute.xlu0 %1810
        %1814 = vrot.lane.b32.xlu0 %v1807, 16
        %v1815 = vpop.permute.xlu0 %1814
        %1818 = vrot.lane.b32.xlu0 %v1808, 24
        %v1819 = vpop.permute.xlu0 %1818
        %v1821 = vsel %vm1081, %v1805, %v1811
        %vm1822 = vcmask 130048
        %v1823 = vsel %vm1822, %v1821, %v1815
        %vm1824 = vcmask 195584
        %v1825 = vsel %vm1824, %v1823, %v1819
        %v1826 = vpack.c.bf16 %v1825, %v1825
        %v1827 = vld [vmem:[%s5] sm:$0xf]
        %v1828 = vld [vmem:[%s5 + $0x4] sm:$0xf]
        %v1829 = vld [vmem:[%s5 + $0x8] sm:$0xf]
        %v1830 = vld [vmem:[%s5 + $0xc] sm:$0xf]
        %v1831 = vld [vmem:[%s6] sm:$0x1]
        %v1833 = vlaneseq
        %v1834 = vshrl.u32 %v1833, 7
        %v1835 = vsub.s32 0, %v1834
        %v1836 = vrot.slane %v1831, %v1835
        %v1842 = vunpack.c.l.b16 %v1827
        %v1843 = vunpack.c.l.b16 %v1828
        %v1844 = vunpack.c.l.b16 %v1829
        %v1845 = vunpack.c.l.b16 %v1830
        %v1846 = vpack.c.b16 %v1843, %v1842
        %v1847 = vpack.c.b16 %v1845, %v1844
        %vm1850 = vcmask 261120
        %v1852 = vsel %vm1850, %v1826, 0
        %1854 = vmatprep.subr.bf16.mxu0 0
        %1855 = vmatpush1.bf16.msra.mxu0 %v1846
        %1856 = vmatprep.subr.bf16.mxu0 0
        %1857 = vmatpush1.bf16.msra.mxu0 %v1847
        %1858 = vmatprep.subr.bf16.mxu0 0
        %1859 = vmatpush1.bf16.msra.mxu0 0
        %1860 = vmatprep.subr.bf16.mxu0 0
        %1861 = vmatpush1.bf16.msra.mxu0 0
        %1862 = vmatprep.subr.bf16.mxu0 0
        %1863 = vmatpush1.bf16.msra.mxu0 0
        %1864 = vmatprep.subr.bf16.mxu0 0
        %1865 = vmatpush1.bf16.msra.mxu0 0
        %1866 = vmatprep.subr.bf16.mxu0 0
        %1867 = vmatpush1.bf16.msra.mxu0 0
        %1868 = vmatprep.subr.bf16.mxu0 0
        %1869 = vmatpush1.bf16.msra.mxu0 0
        %1870 = vmatprep.subr.bf16.mxu0 0
        %1871 = vmatpush1.bf16.msra.mxu0 0
        %1872 = vmatprep.subr.bf16.mxu0 0
        %1873 = vmatpush1.bf16.msra.mxu0 0
        %1874 = vmatprep.subr.bf16.mxu0 0
        %1875 = vmatpush1.bf16.msra.mxu0 0
        %1876 = vmatprep.subr.bf16.mxu0 0
        %1877 = vmatpush1.bf16.msra.mxu0 0
        %1878 = vmatprep.subr.bf16.mxu0 0
        %1879 = vmatpush1.bf16.msra.mxu0 0
        %1880 = vmatprep.subr.bf16.mxu0 0
        %1881 = vmatpush1.bf16.msra.mxu0 0
        %1882 = vmatprep.subr.bf16.mxu0 0
        %1883 = vmatpush1.bf16.msra.mxu0 0
        %1884 = vmatprep.subr.bf16.mxu0 0
        %1885 = vmatpush1.bf16.msra.mxu0 0
        %1886 = vmatprep.mubr.bf16.mxu0 0
        %1887 = vmatmul.mubr.bf16.gmra.mrb[0].mxu0 %v1852
        %v1888 = vpop.f32.mrb[0].mxu0
        %v1889 = vadd.f32 %v1836, %v1888
        %v1890 = vpop.f32.mrb[0].mxu0
        %v1891 = vpop.f32.mrb[0].mxu0
        %v1892 = vpop.f32.mrb[0].mxu0
        %1893 = vdwg.mxu0
        %s1894 = scalar_lea.vmem %s482, %s1086
        %v1895 = vld [vmem:[%s1894] sm:$0xff]
        %v1896 = vadd.f32 %v1895, %v1889
        %v1897 = vld [vmem:[%s7] sm:$0x1]
        %v1898 = vld [vmem:[%s8] sm:$0x1]
        %v1899 = vsel %vm1850, %v1896, 0.0
        %1900 = vadd.xlane.f32.xlu0 %v1899
        %v1901 = vpop.xlane.xlu0 %1900
        %v1902 = vrcp.pop 32.0
        %v1903 = vmul.f32 %v1901, %v1902
        %v1904 = vsub.f32 %v1896, %v1903
        %v1905 = vmul.f32 %v1904, %v1904
        %v1906 = vsel %vm1850, %v1905, 0.0
        %1907 = vadd.xlane.f32.xlu0 %v1906
        %v1908 = vpop.xlane.xlu0 %1907
        %v1909 = vmul.f32 %v1908, %v1902
        %v1910 = vadd.f32 %v1909, 1e-05
        %v1911 = vrsqrt.pop %v1910
        %v1912 = vmul.f32 %v1904, %v1911
        %v1914 = vlaneseq
        %v1915 = vshrl.u32 %v1914, 7
        %v1916 = vsub.s32 0, %v1915
        %v1917 = vrot.slane %v1897, %v1916
        %v1919 = vmul.f32 %v1912, %v1917
        %v1921 = vlaneseq
        %v1922 = vshrl.u32 %v1921, 7
        %v1923 = vsub.s32 0, %v1922
        %v1924 = vrot.slane %v1898, %v1923
        %v1926 = vadd.f32 %v1919, %v1924
        %v1927 = vpack.c.bf16 %v1926, %v1926
        %v1928 = vld [vmem:[%s9] sm:$0xf]
        %v1929 = vld [vmem:[%s9 + $0x4] sm:$0xf]
        %v1930 = vld [vmem:[%s9 + $0x8] sm:$0xf]
        %v1931 = vld [vmem:[%s9 + $0xc] sm:$0xf]
        %v1932 = vld [vmem:[%s10] sm:$0x1]
        %v1934 = vlaneseq
        %v1935 = vshrl.u32 %v1934, 7
        %v1936 = vsub.s32 0, %v1935
        %v1937 = vrot.slane %v1932, %v1936
        %v1943 = vunpack.c.l.b16 %v1928
        %v1944 = vunpack.c.l.b16 %v1929
        %v1945 = vunpack.c.l.b16 %v1930
        %v1946 = vunpack.c.l.b16 %v1931
        %v1947 = vpack.c.b16 %v1944, %v1943
        %v1948 = vpack.c.b16 %v1946, %v1945
        %v1952 = vsel %vm1850, %v1927, 0
        %1954 = vmatprep.subr.bf16.mxu0 0
        %1955 = vmatpush1.bf16.msra.mxu0 %v1947
        %1956 = vmatprep.subr.bf16.mxu0 0
        %1957 = vmatpush1.bf16.msra.mxu0 %v1948
        %1958 = vmatprep.subr.bf16.mxu0 0
        %1959 = vmatpush1.bf16.msra.mxu0 0
        %1960 = vmatprep.subr.bf16.mxu0 0
        %1961 = vmatpush1.bf16.msra.mxu0 0
        %1962 = vmatprep.subr.bf16.mxu0 0
        %1963 = vmatpush1.bf16.msra.mxu0 0
        %1964 = vmatprep.subr.bf16.mxu0 0
        %1965 = vmatpush1.bf16.msra.mxu0 0
        %1966 = vmatprep.subr.bf16.mxu0 0
        %1967 = vmatpush1.bf16.msra.mxu0 0
        %1968 = vmatprep.subr.bf16.mxu0 0
        %1969 = vmatpush1.bf16.msra.mxu0 0
        %1970 = vmatprep.subr.bf16.mxu0 0
        %1971 = vmatpush1.bf16.msra.mxu0 0
        %1972 = vmatprep.subr.bf16.mxu0 0
        %1973 = vmatpush1.bf16.msra.mxu0 0
        %1974 = vmatprep.subr.bf16.mxu0 0
        %1975 = vmatpush1.bf16.msra.mxu0 0
        %1976 = vmatprep.subr.bf16.mxu0 0
        %1977 = vmatpush1.bf16.msra.mxu0 0
        %1978 = vmatprep.subr.bf16.mxu0 0
        %1979 = vmatpush1.bf16.msra.mxu0 0
        %1980 = vmatprep.subr.bf16.mxu0 0
        %1981 = vmatpush1.bf16.msra.mxu0 0
        %1982 = vmatprep.subr.bf16.mxu0 0
        %1983 = vmatpush1.bf16.msra.mxu0 0
        %1984 = vmatprep.subr.bf16.mxu0 0
        %1985 = vmatpush1.bf16.msra.mxu0 0
        %1986 = vmatprep.mubr.bf16.mxu0 0
        %1987 = vmatmul.mubr.bf16.gmra.mrb[0].mxu0 %v1952
        %v1988 = vpop.f32.mrb[0].mxu0
        %v1989 = vadd.f32 %v1937, %v1988
        %v1990 = vpop.f32.mrb[0].mxu0
        %v1991 = vpop.f32.mrb[0].mxu0
        %v1992 = vpop.f32.mrb[0].mxu0
        %1993 = vdwg.mxu0
        %v1994 = vmul.f32 %v1989, 0.5
        %v1995 = vmul.f32 %v1989, 0.044715
        %v1996 = vmul.f32 %v1995, %v1989
        %v1997 = vmul.f32 %v1996, %v1989
        %v1998 = vadd.f32 %v1989, %v1997
        %v1999 = vmul.f32 %v1998, 0.7978846
        %v2000 = vtanh.pop %v1999
        %v2001 = vadd.f32 %v2000, 1.0
        %v2002 = vmul.f32 %v1994, %v2001
        %v2003 = vpack.c.bf16 %v2002, %v2002
        %v2004 = vld [vmem:[%s11] sm:$0xf]
        %v2005 = vld [vmem:[%s11 + $0x4] sm:$0xf]
        %v2006 = vld [vmem:[%s11 + $0x8] sm:$0xf]
        %v2007 = vld [vmem:[%s11 + $0xc] sm:$0xf]
        %v2008 = vld [vmem:[%s11 + $0x10] sm:$0xf]
        %v2009 = vld [vmem:[%s11 + $0x14] sm:$0xf]
        %v2010 = vld [vmem:[%s11 + $0x18] sm:$0xf]
        %v2011 = vld [vmem:[%s11 + $0x1c] sm:$0xf]
        %v2012 = vld [vmem:[%s11 + $0x20] sm:$0xf]
        %v2013 = vld [vmem:[%s11 + $0x24] sm:$0xf]
        %v2014 = vld [vmem:[%s11 + $0x28] sm:$0xf]
        %v2015 = vld [vmem:[%s11 + $0x2c] sm:$0xf]
        %v2016 = vld [vmem:[%s11 + $0x30] sm:$0xf]
        %v2017 = vld [vmem:[%s11 + $0x34] sm:$0xf]
        %v2018 = vld [vmem:[%s11 + $0x38] sm:$0xf]
        %v2019 = vld [vmem:[%s11 + $0x3c] sm:$0xf]
        %v2036 = vunpack.c.l.b16 %v2004
        %v2037 = vunpack.c.l.b16 %v2005
        %v2038 = vunpack.c.l.b16 %v2006
        %v2039 = vunpack.c.l.b16 %v2007
        %v2040 = vunpack.c.l.b16 %v2008
        %v2041 = vunpack.c.l.b16 %v2009
        %v2042 = vunpack.c.l.b16 %v2010
        %v2043 = vunpack.c.l.b16 %v2011
        %v2044 = vunpack.c.l.b16 %v2012
        %v2045 = vunpack.c.l.b16 %v2013
        %v2046 = vunpack.c.l.b16 %v2014
        %v2047 = vunpack.c.l.b16 %v2015
        %v2048 = vunpack.c.l.b16 %v2016
        %v2049 = vunpack.c.l.b16 %v2017
        %v2050 = vunpack.c.l.b16 %v2018
        %v2051 = vunpack.c.l.b16 %v2019
        %v2052 = vpack.c.b16 %v2037, %v2036
        %v2053 = vpack.c.b16 %v2039, %v2038
        %v2054 = vpack.c.b16 %v2041, %v2040
        %v2055 = vpack.c.b16 %v2043, %v2042
        %v2056 = vpack.c.b16 %v2045, %v2044
        %v2057 = vpack.c.b16 %v2047, %v2046
        %v2058 = vpack.c.b16 %v2049, %v2048
        %v2059 = vpack.c.b16 %v2051, %v2050
        %2068 = vmatprep.subr.bf16.mxu0 0
        %2069 = vmatpush1.bf16.msra.mxu0 %v2052
        %2070 = vmatprep.subr.bf16.mxu0 0
        %2071 = vmatpush1.bf16.msra.mxu0 %v2053
        %2072 = vmatprep.subr.bf16.mxu0 0
        %2073 = vmatpush1.bf16.msra.mxu0 %v2054
        %2074 = vmatprep.subr.bf16.mxu0 0
        %2075 = vmatpush1.bf16.msra.mxu0 %v2055
        %2076 = vmatprep.subr.bf16.mxu0 0
        %2077 = vmatpush1.bf16.msra.mxu0 %v2056
        %2078 = vmatprep.subr.bf16.mxu0 0
        %2079 = vmatpush1.bf16.msra.mxu0 %v2057
        %2080 = vmatprep.subr.bf16.mxu0 0
        %2081 = vmatpush1.bf16.msra.mxu0 %v2058
        %2082 = vmatprep.subr.bf16.mxu0 0
        %2083 = vmatpush1.bf16.msra.mxu0 %v2059
        %2084 = vmatprep.subr.bf16.mxu0 0
        %2085 = vmatpush1.bf16.msra.mxu0 0
        %2086 = vmatprep.subr.bf16.mxu0 0
        %2087 = vmatpush1.bf16.msra.mxu0 0
        %2088 = vmatprep.subr.bf16.mxu0 0
        %2089 = vmatpush1.bf16.msra.mxu0 0
        %2090 = vmatprep.subr.bf16.mxu0 0
        %2091 = vmatpush1.bf16.msra.mxu0 0
        %2092 = vmatprep.subr.bf16.mxu0 0
        %2093 = vmatpush1.bf16.msra.mxu0 0
        %2094 = vmatprep.subr.bf16.mxu0 0
        %2095 = vmatpush1.bf16.msra.mxu0 0
        %2096 = vmatprep.subr.bf16.mxu0 0
        %2097 = vmatpush1.bf16.msra.mxu0 0
        %2098 = vmatprep.subr.bf16.mxu0 0
        %2099 = vmatpush1.bf16.msra.mxu0 0
        %2100 = vmatprep.mubr.bf16.mxu0 0
        %2101 = vmatmul.mubr.bf16.gmra.mrb[0].mxu0 %v2003
        %v2102 = vpop.f32.mrb[0].mxu0
        %v2103 = vadd.f32 0.0, %v2102
        %v2104 = vpop.f32.mrb[0].mxu0
        %v2105 = vpop.f32.mrb[0].mxu0
        %v2106 = vpop.f32.mrb[0].mxu0
        %2107 = vdwg.mxu0
        %v2108 = vadd.f32 %v1896, %v2103
        %v2109 = vld [vmem:[%s12] sm:$0x1]
        %v2111 = vlaneseq
        %v2112 = vshrl.u32 %v2111, 7
        %v2113 = vsub.s32 0, %v2112
        %v2114 = vrot.slane %v2109, %v2113
        %v2116 = vadd.f32 %v2108, %v2114
        %2117 = vst.msk [vmem:[%s489] sm:$0xff] %vm1850, %v2116
        %p2118 = scmp.lt.s32.totalorder %s30, 1
        %s2119 = scalar_select %p2118, %s30, 1
        %p2120 = scmp.lt.s32.totalorder %s31, 0
        %s2121 = scalar_select %p2120, %s31, 0
        %s2122 = sadd.s32 %s2121, %s2119
        %s2123 = smul.addr %s2122, 8
        %s2124 = scalar_lea.vmem %s13, %s2123
        %s2125 = sand.u32 %s352, 1
        %s2126 = sand.u32 %s352, 1
        %s2127 = smul.addr %s2126, 16
        %s2128 = scalar_lea.vmem [#allocation8], %s2127
        // Predicated region
        $region84: #{gpt2_forward.2} parent=71 // pred_check
          %p2129 = pneg %p336
        $region85: #{gpt2_forward.2} parent=71 // pred_check_branch
          %2131 = sbr.rel (%p2129) target = $region87
        $region86: #{gpt2_forward.2} parent=71 // pred_region
          _
        $region87: #{gpt2_forward.2} parent=71 // pred_fallthru
          _
        // Predicated region
        $region88: #{gpt2_forward.2} parent=71 // pred_check
          %p2132 = pneg %p362
        $region89: #{gpt2_forward.2} parent=71 // pred_check_branch
          %2134 = sbr.rel (%p2132) target = $region91
        $region90: #{gpt2_forward.2} parent=71 // pred_region
          %s2135 = smul.addr %s30, 8
          %s2136 = scalar_lea.vmem %s14, %s2135
          // Predicated region
          $region92: #{gpt2_forward.2} parent=90 // pred_check
            _
          $region93: #{gpt2_forward.2} parent=90 // pred_check_branch
            %2138 = sbr.rel (0) target = $region95
          $region94: #{gpt2_forward.2} parent=90 // pred_region
            // Predicated region
            $region96: #{gpt2_forward.2} parent=94 // pred_check
              _
            $region97: #{gpt2_forward.2} parent=94 // pred_check_branch
              %2140 = sbr.rel (0) target = $region99
            $region98: #{gpt2_forward.2} parent=94 // pred_region
              // Predicated region
              $region111: #{gpt2_forward.2} parent=98 // pred_check
                _
              $region112: #{gpt2_forward.2} parent=98 // pred_check_branch
                %2157 = sbr.rel (0) target = $region114
              $region113: #{gpt2_forward.2} parent=98 // pred_region
                loop: start=0, step=1, limit=1
                $region115: #{gpt2_forward.2} parent=113 // loop_pre_header
                  _
                $region116: #{gpt2_forward.2} parent=113 // loop_header
                  %s2159 = sphi 0, %s2163
                  %p2160 = scmp.ge.s32.totalorder %s2159, 1
                  %s2164 = sphi %s2128, %s2128
                  %s2165 = sphi %s2136, %s2136
                $region117: #{gpt2_forward.2} parent=113 // loop_header_branch
                  %2162 = sbr.rel (%p2160) target = $region121
                $region118: #{gpt2_forward.2} parent=113 // loop_body
                  %v2166 = vld [vmem:[%s2164] sm:$0xff]
                  %2167 = vst [vmem:[%s2165] sm:$0xff] %v2166
                  %v2168 = vld [vmem:[%s2164 + $0x8] sm:$0xff]
                  %2169 = vst [vmem:[%s2165 + $0x10] sm:$0xff] %v2168
                $region119: #{gpt2_forward.2} parent=113 // loop_footer
                  %s2163 = sadd.s32 1, %s2159
                $region120: #{gpt2_forward.2} parent=113 // loop_footer_branch
                  %2158 = sbr.rel target = $region116
                $region121: #{gpt2_forward.2} parent=113 // loop_exit
                  _
              $region114: #{gpt2_forward.2} parent=98 // pred_fallthru
                _
              // Predicated region
              $region122: #{gpt2_forward.2} parent=98 // pred_check
                _
              $region123: #{gpt2_forward.2} parent=98 // pred_check_branch
                %2171 = sbr.rel target = $region125
              $region124: #{gpt2_forward.2} parent=98 // pred_region
                _
              $region125: #{gpt2_forward.2} parent=98 // pred_fallthru
                _
            $region99: #{gpt2_forward.2} parent=94 // pred_fallthru
              _
            // Predicated region
            $region100: #{gpt2_forward.2} parent=94 // pred_check
              _
            $region101: #{gpt2_forward.2} parent=94 // pred_check_branch
              %2142 = sbr.rel target = $region103
            $region102: #{gpt2_forward.2} parent=94 // pred_region
              loop: start=0, step=1, limit=1
              $region104: #{gpt2_forward.2} parent=102 // loop_pre_header
                _
              $region105: #{gpt2_forward.2} parent=102 // loop_header
                %s2145 = sphi 0, %s2149
                %p2146 = scmp.ge.s32.totalorder %s2145, 1
                %s2150 = sphi %s2128, %s2128
                %s2151 = sphi %s2136, %s2136
              $region106: #{gpt2_forward.2} parent=102 // loop_header_branch
                %2148 = sbr.rel (%p2146) target = $region110
              $region107: #{gpt2_forward.2} parent=102 // loop_body
                %v2152 = vld [vmem:[%s2150] sm:$0xff]
                %2153 = vst [vmem:[%s2151] sm:$0xff] %v2152
                %v2154 = vld [vmem:[%s2150 + $0x8] sm:$0xff]
                %2155 = vst [vmem:[%s2151 + $0x10] sm:$0xff] %v2154
              $region108: #{gpt2_forward.2} parent=102 // loop_footer
                %s2149 = sadd.s32 1, %s2145
              $region109: #{gpt2_forward.2} parent=102 // loop_footer_branch
                %2144 = sbr.rel target = $region105
              $region110: #{gpt2_forward.2} parent=102 // loop_exit
                _
            $region103: #{gpt2_forward.2} parent=94 // pred_fallthru
              _
          $region95: #{gpt2_forward.2} parent=90 // pred_fallthru
            _
          %2172 = vnop
        $region91: #{gpt2_forward.2} parent=71 // pred_fallthru
          _
      $region72: #{gpt2_forward.2} parent=5 // pred_fallthru
        _
      %p2173 = scmp.le.s32.totalorder 2, %s21
      // Predicated region
      $region126: #{gpt2_forward.2} parent=5 // pred_check
        %p2174 = pneg %p2173
      $region127: #{gpt2_forward.2} parent=5 // pred_check_branch
        %2176 = sbr.rel (%p2174) target = $region129
      $region128: #{gpt2_forward.2} parent=5 // pred_region
        %s2177 = ssub.s32 %s21, 2
        // Predicated region
        $region130: #{gpt2_forward.2} parent=128 // pred_check
          %p2178 = pneg %p342
        $region131: #{gpt2_forward.2} parent=128 // pred_check_branch
          %2180 = sbr.rel (%p2178) target = $region133
        $region132: #{gpt2_forward.2} parent=128 // pred_region
          %p2181 = scmp.lt.s32.totalorder %s32, 1
          %s2182 = scalar_select %p2181, %s32, 1
          %p2183 = scmp.lt.s32.totalorder %s33, 0
          %s2184 = scalar_select %p2183, %s33, 0
          %s2185 = sadd.s32 %s2184, %s2182
          %s2186 = smul.addr %s2185, 8
          %s2187 = scalar_lea.vmem %s13, %s2186
        $region133: #{gpt2_forward.2} parent=128 // pred_fallthru
          _
        // Predicated region
        $region134: #{gpt2_forward.2} parent=128 // pred_check
          %p2188 = pneg %p368
        $region135: #{gpt2_forward.2} parent=128 // pred_check_branch
          %2190 = sbr.rel (%p2188) target = $region137
        $region136: #{gpt2_forward.2} parent=128 // pred_region
          %s2191 = sand.u32 %s353, 1
          %s2192 = sand.u32 %s353, 1
          %s2193 = smul.addr %s2192, 16
          %s2194 = scalar_lea.vmem [#allocation8], %s2193
        $region137: #{gpt2_forward.2} parent=128 // pred_fallthru
          _
      $region129: #{gpt2_forward.2} parent=5 // pred_fallthru
        _
    $region6: #{gpt2_forward.2} parent=1 // loop_footer
      %s25 = sadd.s32 1, %s21
    $region7: #{gpt2_forward.2} parent=1 // loop_footer_branch
      %20 = sbr.rel target = $region3
    $region8: #{gpt2_forward.2} parent=1 // loop_exit
      _

// kernel: gpt2_forward.3
$region0: #{gpt2_forward.3}
  #allocation0 [shape = 'u32[]', space=smem, size = 0x4, offset = 0x4, fixed_abs, tag = 'smem constant byte address 0x4 - core index']
  #allocation1 [shape = 'u32[144,128]{1,0:T(1,128)}', space=vmem, size = 0x12000, scoped, tag = 'internal scratch']
  #allocation2 [shape = 'bf16[4,8,8]{2,1,0:T(8,128)(2,1)}', space=vmem, size = 0x2000, scoped, tag = 'scratch operand']
  #allocation3 [shape = 'bf16[4,8,8]{2,1,0:T(8,128)(2,1)}', space=vmem, size = 0x2000, scoped, tag = 'scratch operand']
  #allocation4 [shape = 'bf16[4,8,8]{2,1,0:T(8,128)(2,1)}', space=vmem, size = 0x2000, scoped, tag = 'scratch operand']
  #allocation5 [shape = 'f32[4,8,8]{2,1,0:T(8,128)}', space=vmem, size = 0x4000, scoped, tag = 'scratch operand']
  #allocation6 [shape = 'f32[4,8,1]{2,1,0:T(8,128)}', space=vmem, size = 0x4000, scoped, tag = 'scratch operand']
  #allocation7 [shape = 'f32[4,8,1]{2,1,0:T(8,128)}', space=vmem, size = 0x4000, scoped, tag = 'scratch operand']
  %s0 = inlined_call_operand.vmem [shape: f32[2,8,32], index: 0, kind: input, shape index: {}]
  %s1 = inlined_call_operand.vmem [shape: f32[1,32], index: 1, kind: input, shape index: {}]
  %s2 = inlined_call_operand.vmem [shape: f32[1,32], index: 2, kind: input, shape index: {}]
  %s3 = inlined_call_operand.vmem [shape: bf16[32,96], index: 3, kind: input, shape index: {}]
  %s4 = inlined_call_operand.vmem [shape: f32[1,96], index: 4, kind: input, shape index: {}]
  %s5 = inlined_call_operand.vmem [shape: bf16[32,32], index: 5, kind: input, shape index: {}]
  %s6 = inlined_call_operand.vmem [shape: f32[1,32], index: 6, kind: input, shape index: {}]
  %s7 = inlined_call_operand.vmem [shape: f32[1,32], index: 7, kind: input, shape index: {}]
  %s8 = inlined_call_operand.vmem [shape: f32[1,32], index: 8, kind: input, shape index: {}]
  %s9 = inlined_call_operand.vmem [shape: bf16[32,128], index: 9, kind: input, shape index: {}]
  %s10 = inlined_call_operand.vmem [shape: f32[1,128], index: 10, kind: input, shape index: {}]
  %s11 = inlined_call_operand.vmem [shape: bf16[128,32], index: 11, kind: input, shape index: {}]
  %s12 = inlined_call_operand.vmem [shape: f32[1,32], index: 12, kind: input, shape index: {}]
  %s13 = inlined_call_operand.vmem [shape: f32[1,32], index: 13, kind: input, shape index: {}]
  %s14 = inlined_call_operand.vmem [shape: f32[1,32], index: 14, kind: input, shape index: {}]
  %s15 = inlined_call_operand.hbm [shape: f32[2,8,32], index: 15, kind: output, shape index: {0}]
  %s16 = inlined_call_operand.vmem [shape: f32[2,2,8,32], index: 16, kind: output, shape index: {1}]
  %17 = xla_tuple %s15, %s16
  %s18 = sld [smem:[#allocation0]]
  $region146: #{gpt2_forward.3} parent=0
    _
  %s20 = ssub.s32 1, %s18
  %s21 = scalar_select 0, %s20, %s18
  $region1: #{gpt2_forward.3} parent=0
    #allocation8 [shape = 'u8[8192]{0}', space=vmem, size = 0x2000, scoped, tag = 'output window, operand 0']
    #allocation9 [shape = 's32[2]{0}', space=sflag, size = 0x8, scoped, tag = 'scoped memory for gpt2_forward.3']
    #allocation10 [shape = 'u8[16384]{0}', space=vmem, size = 0x4000, scoped, tag = 'output window, operand 1']
    %22 = vsyncpa [#allocation9], 0
    %s23 = scalar_lea.sflag [#allocation9], 1
    %24 = vsyncpa %s23, 0
    loop: start=0, step=1, limit=4
    $region2: #{gpt2_forward.3} parent=1 // loop_pre_header
      _
    $region3: #{gpt2_forward.3} parent=1 // loop_header
      %s26 = sphi 0, %s30
      %p27 = scmp.ge.s32.totalorder %s26, 4
      %s33 = sphi 0, %s45
      %s34 = sphi 0, %s41
      %s35 = sphi 0, %s33
      %s36 = sphi 0, %s34
      %s37 = sphi 0, %s35
      %s38 = sphi 0, %s36
      %s48 = sphi 0, %s50
      %s51 = sphi 0, %s48
      %s52 = sphi 0, %s51
      %s68 = sphi 0, %s52
      %s72 = sphi 0, %s72
      %s74 = sphi 0, %s72
      %s75 = sphi 0, %s74
      %s89 = sphi 0, %s75
      %s93 = sphi 0, %s93
      %s95 = sphi 0, %s93
      %s96 = sphi 0, %s95
      %s110 = sphi 0, %s96
      %s114 = sphi 0, %s114
      %s116 = sphi 0, %s114
      %s117 = sphi 0, %s116
      %s131 = sphi 0, %s117
      %s135 = sphi 0, %s135
      %s137 = sphi 0, %s135
      %s138 = sphi 0, %s137
      %s152 = sphi 0, %s138
      %s156 = sphi 0, %s156
      %s158 = sphi 0, %s156
      %s159 = sphi 0, %s158
      %s173 = sphi 0, %s159
      %s177 = sphi 0, %s177
      %s179 = sphi 0, %s177
      %s180 = sphi 0, %s179
      %s194 = sphi 0, %s180
      %s198 = sphi 0, %s198
      %s200 = sphi 0, %s198
      %s201 = sphi 0, %s200
      %s215 = sphi 0, %s201
      %s219 = sphi 0, %s219
      %s221 = sphi 0, %s219
      %s222 = sphi 0, %s221
      %s236 = sphi 0, %s222
      %s240 = sphi 0, %s240
      %s242 = sphi 0, %s240
      %s243 = sphi 0, %s242
      %s257 = sphi 0, %s243
      %s261 = sphi 0, %s261
      %s263 = sphi 0, %s261
      %s264 = sphi 0, %s263
      %s278 = sphi 0, %s264
      %s282 = sphi 0, %s282
      %s284 = sphi 0, %s282
      %s285 = sphi 0, %s284
      %s299 = sphi 0, %s285
      %s303 = sphi 0, %s303
      %s305 = sphi 0, %s303
      %s306 = sphi 0, %s305
      %s320 = sphi 0, %s306
      %s324 = sphi 0, %s324
      %s326 = sphi 0, %s324
      %s327 = sphi 0, %s326
      %s341 = sphi 0, %s327
      %s345 = sphi 0, %s345
      %s347 = sphi 0, %s345
      %s348 = sphi 0, %s347
      %s362 = sphi 0, %s348
      %s370 = sphi 0, %s372
      %s373 = sphi 0, %s370
      %s374 = sphi 0, %s373
      %s390 = sphi 0, %s374
      %s396 = sphi 0, %s398
      %s399 = sphi 0, %s396
      %s400 = sphi 0, %s399
      %s416 = sphi 0, %s400
    $region4: #{gpt2_forward.3} parent=1 // loop_header_branch
      %29 = sbr.rel (%p27) target = $region8
    $region5: #{gpt2_forward.3} parent=1 // loop_body
      %s31 = ssub.s32 %s26, 1
      %s32 = ssub.s32 %s26, 2
      %s39 = sadd.s32 1, %s34
      %p40 = scmp.ge.s32.totalorder %s39, 1
      %s41 = scalar_select %p40, 0, %s39
      %s42 = sadd.s32 1, %s33
      %s43 = scalar_select %p40, %s42, %s33
      %p44 = scmp.ge.s32.totalorder %s43, 2
      %s45 = scalar_select %p44, 0, %s43
      %s46 = ssub.s32 %s33, %s45
      %p47 = scmp.eq.s32.totalorder %s46, 0
      %s49 = sadd.s32 %s48, 1
      %s50 = scalar_select %p47, %s48, %s49
      %p53 = pneg %p47
      %p54 = scmp.eq.s32.totalorder %s26, 1
      %p55 = por %p53, %p54
      %p56 = scmp.ne.s32.totalorder %s48, %s51
      %p57 = scmp.eq.s32.totalorder %s26, 0
      %p58 = por %p56, %p57
      %p59 = scmp.ne.s32.totalorder %s48, %s51
      %p60 = scmp.eq.s32.totalorder %s31, 1
      %p61 = por %p59, %p60
      %p62 = scmp.ne.s32.totalorder %s51, %s52
      %p63 = scmp.eq.s32.totalorder %s31, 0
      %p64 = por %p62, %p63
      %p65 = scmp.ne.s32.totalorder %s51, %s52
      %p66 = scmp.eq.s32.totalorder %s32, 1
      %p67 = por %p65, %p66
      %p69 = scmp.ne.s32.totalorder %s52, %s68
      %p70 = scmp.eq.s32.totalorder %s32, 0
      %p71 = por %p69, %p70
      %s73 = sadd.s32 %s72, 1
      %p76 = scmp.eq.s32.totalorder %s26, 1
      %p77 = scmp.ne.s32.totalorder %s72, %s74
      %p78 = scmp.eq.s32.totalorder %s26, 0
      %p79 = por %p77, %p78
      %p80 = scmp.ne.s32.totalorder %s72, %s74
      %p81 = scmp.eq.s32.totalorder %s31, 1
      %p82 = por %p80, %p81
      %p83 = scmp.ne.s32.totalorder %s74, %s75
      %p84 = scmp.eq.s32.totalorder %s31, 0
      %p85 = por %p83, %p84
      %p86 = scmp.ne.s32.totalorder %s74, %s75
      %p87 = scmp.eq.s32.totalorder %s32, 1
      %p88 = por %p86, %p87
      %p90 = scmp.ne.s32.totalorder %s75, %s89
      %p91 = scmp.eq.s32.totalorder %s32, 0
      %p92 = por %p90, %p91
      %s94 = sadd.s32 %s93, 1
      %p97 = scmp.eq.s32.totalorder %s26, 1
      %p98 = scmp.ne.s32.totalorder %s93, %s95
      %p99 = scmp.eq.s32.totalorder %s26, 0
      %p100 = por %p98, %p99
      %p101 = scmp.ne.s32.totalorder %s93, %s95
      %p102 = scmp.eq.s32.totalorder %s31, 1
      %p103 = por %p101, %p102
      %p104 = scmp.ne.s32.totalorder %s95, %s96
      %p105 = scmp.eq.s32.totalorder %s31, 0
      %p106 = por %p104, %p105
      %p107 = scmp.ne.s32.totalorder %s95, %s96
      %p108 = scmp.eq.s32.totalorder %s32, 1
      %p109 = por %p107, %p108
      %p111 = scmp.ne.s32.totalorder %s96, %s110
      %p112 = scmp.eq.s32.totalorder %s32, 0
      %p113 = por %p111, %p112
      %s115 = sadd.s32 %s114, 1
      %p118 = scmp.eq.s32.totalorder %s26, 1
      %p119 = scmp.ne.s32.totalorder %s114, %s116
      %p120 = scmp.eq.s32.totalorder %s26, 0
      %p121 = por %p119, %p120
      %p122 = scmp.ne.s32.totalorder %s114, %s116
      %p123 = scmp.eq.s32.totalorder %s31, 1
      %p124 = por %p122, %p123
      %p125 = scmp.ne.s32.totalorder %s116, %s117
      %p126 = scmp.eq.s32.totalorder %s31, 0
      %p127 = por %p125, %p126
      %p128 = scmp.ne.s32.totalorder %s116, %s117
      %p129 = scmp.eq.s32.totalorder %s32, 1
      %p130 = por %p128, %p129
      %p132 = scmp.ne.s32.totalorder %s117, %s131
      %p133 = scmp.eq.s32.totalorder %s32, 0
      %p134 = por %p132, %p133
      %s136 = sadd.s32 %s135, 1
      %p139 = scmp.eq.s32.totalorder %s26, 1
      %p140 = scmp.ne.s32.totalorder %s135, %s137
      %p141 = scmp.eq.s32.totalorder %s26, 0
      %p142 = por %p140, %p141
      %p143 = scmp.ne.s32.totalorder %s135, %s137
      %p144 = scmp.eq.s32.totalorder %s31, 1
      %p145 = por %p143, %p144
      %p146 = scmp.ne.s32.totalorder %s137, %s138
      %p147 = scmp.eq.s32.totalorder %s31, 0
      %p148 = por %p146, %p147
      %p149 = scmp.ne.s32.totalorder %s137, %s138
      %p150 = scmp.eq.s32.totalorder %s32, 1
      %p151 = por %p149, %p150
      %p153 = scmp.ne.s32.totalorder %s138, %s152
      %p154 = scmp.eq.s32.totalorder %s32, 0
      %p155 = por %p153, %p154
      %s157 = sadd.s32 %s156, 1
      %p160 = scmp.eq.s32.totalorder %s26, 1
      %p161 = scmp.ne.s32.totalorder %s156, %s158
      %p162 = scmp.eq.s32.totalorder %s26, 0
      %p163 = por %p161, %p162
      %p164 = scmp.ne.s32.totalorder %s156, %s158
      %p165 = scmp.eq.s32.totalorder %s31, 1
      %p166 = por %p164, %p165
      %p167 = scmp.ne.s32.totalorder %s158, %s159
      %p168 = scmp.eq.s32.totalorder %s31, 0
      %p169 = por %p167, %p168
      %p170 = scmp.ne.s32.totalorder %s158, %s159
      %p171 = scmp.eq.s32.totalorder %s32, 1
      %p172 = por %p170, %p171
      %p174 = scmp.ne.s32.totalorder %s159, %s173
      %p175 = scmp.eq.s32.totalorder %s32, 0
      %p176 = por %p174, %p175
      %s178 = sadd.s32 %s177, 1
      %p181 = scmp.eq.s32.totalorder %s26, 1
      %p182 = scmp.ne.s32.totalorder %s177, %s179
      %p183 = scmp.eq.s32.totalorder %s26, 0
      %p184 = por %p182, %p183
      %p185 = scmp.ne.s32.totalorder %s177, %s179
      %p186 = scmp.eq.s32.totalorder %s31, 1
      %p187 = por %p185, %p186
      %p188 = scmp.ne.s32.totalorder %s179, %s180
      %p189 = scmp.eq.s32.totalorder %s31, 0
      %p190 = por %p188, %p189
      %p191 = scmp.ne.s32.totalorder %s179, %s180
      %p192 = scmp.eq.s32.totalorder %s32, 1
      %p193 = por %p191, %p192
      %p195 = scmp.ne.s32.totalorder %s180, %s194
      %p196 = scmp.eq.s32.totalorder %s32, 0
      %p197 = por %p195, %p196
      %s199 = sadd.s32 %s198, 1
      %p202 = scmp.eq.s32.totalorder %s26, 1
      %p203 = scmp.ne.s32.totalorder %s198, %s200
      %p204 = scmp.eq.s32.totalorder %s26, 0
      %p205 = por %p203, %p204
      %p206 = scmp.ne.s32.totalorder %s198, %s200
      %p207 = scmp.eq.s32.totalorder %s31, 1
      %p208 = por %p206, %p207
      %p209 = scmp.ne.s32.totalorder %s200, %s201
      %p210 = scmp.eq.s32.totalorder %s31, 0
      %p211 = por %p209, %p210
      %p212 = scmp.ne.s32.totalorder %s200, %s201
      %p213 = scmp.eq.s32.totalorder %s32, 1
      %p214 = por %p212, %p213
      %p216 = scmp.ne.s32.totalorder %s201, %s215
      %p217 = scmp.eq.s32.totalorder %s32, 0
      %p218 = por %p216, %p217
      %s220 = sadd.s32 %s219, 1
      %p223 = scmp.eq.s32.totalorder %s26, 1
      %p224 = scmp.ne.s32.totalorder %s219, %s221
      %p225 = scmp.eq.s32.totalorder %s26, 0
      %p226 = por %p224, %p225
      %p227 = scmp.ne.s32.totalorder %s219, %s221
      %p228 = scmp.eq.s32.totalorder %s31, 1
      %p229 = por %p227, %p228
      %p230 = scmp.ne.s32.totalorder %s221, %s222
      %p231 = scmp.eq.s32.totalorder %s31, 0
      %p232 = por %p230, %p231
      %p233 = scmp.ne.s32.totalorder %s221, %s222
      %p234 = scmp.eq.s32.totalorder %s32, 1
      %p235 = por %p233, %p234
      %p237 = scmp.ne.s32.totalorder %s222, %s236
      %p238 = scmp.eq.s32.totalorder %s32, 0
      %p239 = por %p237, %p238
      %s241 = sadd.s32 %s240, 1
      %p244 = scmp.eq.s32.totalorder %s26, 1
      %p245 = scmp.ne.s32.totalorder %s240, %s242
      %p246 = scmp.eq.s32.totalorder %s26, 0
      %p247 = por %p245, %p246
      %p248 = scmp.ne.s32.totalorder %s240, %s242
      %p249 = scmp.eq.s32.totalorder %s31, 1
      %p250 = por %p248, %p249
      %p251 = scmp.ne.s32.totalorder %s242, %s243
      %p252 = scmp.eq.s32.totalorder %s31, 0
      %p253 = por %p251, %p252
      %p254 = scmp.ne.s32.totalorder %s242, %s243
      %p255 = scmp.eq.s32.totalorder %s32, 1
      %p256 = por %p254, %p255
      %p258 = scmp.ne.s32.totalorder %s243, %s257
      %p259 = scmp.eq.s32.totalorder %s32, 0
      %p260 = por %p258, %p259
      %s262 = sadd.s32 %s261, 1
      %p265 = scmp.eq.s32.totalorder %s26, 1
      %p266 = scmp.ne.s32.totalorder %s261, %s263
      %p267 = scmp.eq.s32.totalorder %s26, 0
      %p268 = por %p266, %p267
      %p269 = scmp.ne.s32.totalorder %s261, %s263
      %p270 = scmp.eq.s32.totalorder %s31, 1
      %p271 = por %p269, %p270
      %p272 = scmp.ne.s32.totalorder %s263, %s264
      %p273 = scmp.eq.s32.totalorder %s31, 0
      %p274 = por %p272, %p273
      %p275 = scmp.ne.s32.totalorder %s263, %s264
      %p276 = scmp.eq.s32.totalorder %s32, 1
      %p277 = por %p275, %p276
      %p279 = scmp.ne.s32.totalorder %s264, %s278
      %p280 = scmp.eq.s32.totalorder %s32, 0
      %p281 = por %p279, %p280
      %s283 = sadd.s32 %s282, 1
      %p286 = scmp.eq.s32.totalorder %s26, 1
      %p287 = scmp.ne.s32.totalorder %s282, %s284
      %p288 = scmp.eq.s32.totalorder %s26, 0
      %p289 = por %p287, %p288
      %p290 = scmp.ne.s32.totalorder %s282, %s284
      %p291 = scmp.eq.s32.totalorder %s31, 1
      %p292 = por %p290, %p291
      %p293 = scmp.ne.s32.totalorder %s284, %s285
      %p294 = scmp.eq.s32.totalorder %s31, 0
      %p295 = por %p293, %p294
      %p296 = scmp.ne.s32.totalorder %s284, %s285
      %p297 = scmp.eq.s32.totalorder %s32, 1
      %p298 = por %p296, %p297
      %p300 = scmp.ne.s32.totalorder %s285, %s299
      %p301 = scmp.eq.s32.totalorder %s32, 0
      %p302 = por %p300, %p301
      %s304 = sadd.s32 %s303, 1
      %p307 = scmp.eq.s32.totalorder %s26, 1
      %p308 = scmp.ne.s32.totalorder %s303, %s305
      %p309 = scmp.eq.s32.totalorder %s26, 0
      %p310 = por %p308, %p309
      %p311 = scmp.ne.s32.totalorder %s303, %s305
      %p312 = scmp.eq.s32.totalorder %s31, 1
      %p313 = por %p311, %p312
      %p314 = scmp.ne.s32.totalorder %s305, %s306
      %p315 = scmp.eq.s32.totalorder %s31, 0
      %p316 = por %p314, %p315
      %p317 = scmp.ne.s32.totalorder %s305, %s306
      %p318 = scmp.eq.s32.totalorder %s32, 1
      %p319 = por %p317, %p318
      %p321 = scmp.ne.s32.totalorder %s306, %s320
      %p322 = scmp.eq.s32.totalorder %s32, 0
      %p323 = por %p321, %p322
      %s325 = sadd.s32 %s324, 1
      %p328 = scmp.eq.s32.totalorder %s26, 1
      %p329 = scmp.ne.s32.totalorder %s324, %s326
      %p330 = scmp.eq.s32.totalorder %s26, 0
      %p331 = por %p329, %p330
      %p332 = scmp.ne.s32.totalorder %s324, %s326
      %p333 = scmp.eq.s32.totalorder %s31, 1
      %p334 = por %p332, %p333
      %p335 = scmp.ne.s32.totalorder %s326, %s327
      %p336 = scmp.eq.s32.totalorder %s31, 0
      %p337 = por %p335, %p336
      %p338 = scmp.ne.s32.totalorder %s326, %s327
      %p339 = scmp.eq.s32.totalorder %s32, 1
      %p340 = por %p338, %p339
      %p342 = scmp.ne.s32.totalorder %s327, %s341
      %p343 = scmp.eq.s32.totalorder %s32, 0
      %p344 = por %p342, %p343
      %s346 = sadd.s32 %s345, 1
      %p349 = scmp.eq.s32.totalorder %s26, 1
      %p350 = scmp.ne.s32.totalorder %s345, %s347
      %p351 = scmp.eq.s32.totalorder %s26, 0
      %p352 = por %p350, %p351
      %p353 = scmp.ne.s32.totalorder %s345, %s347
      %p354 = scmp.eq.s32.totalorder %s31, 1
      %p355 = por %p353, %p354
      %p356 = scmp.ne.s32.totalorder %s347, %s348
      %p357 = scmp.eq.s32.totalorder %s31, 0
      %p358 = por %p356, %p357
      %p359 = scmp.ne.s32.totalorder %s347, %s348
      %p360 = scmp.eq.s32.totalorder %s32, 1
      %p361 = por %p359, %p360
      %p363 = scmp.ne.s32.totalorder %s348, %s362
      %p364 = scmp.eq.s32.totalorder %s32, 0
      %p365 = por %p363, %p364
      %s366 = ssub.s32 %s33, %s45
      %s367 = ssub.s32 %s34, %s41
      %s368 = sor.u32 %s366, %s367
      %p369 = scmp.eq.s32.totalorder %s368, 0
      %s371 = sadd.s32 %s370, 1
      %s372 = scalar_select %p369, %s370, %s371
      %p375 = pneg %p369
      %p376 = scmp.eq.s32.totalorder %s26, 1
      %p377 = por %p375, %p376
      %p378 = scmp.ne.s32.totalorder %s370, %s373
      %p379 = scmp.eq.s32.totalorder %s26, 0
      %p380 = por %p378, %p379
      %p381 = scmp.ne.s32.totalorder %s370, %s373
      %p382 = scmp.eq.s32.totalorder %s31, 1
      %p383 = por %p381, %p382
      %p384 = scmp.ne.s32.totalorder %s373, %s374
      %p385 = scmp.eq.s32.totalorder %s31, 0
      %p386 = por %p384, %p385
      %p387 = scmp.ne.s32.totalorder %s373, %s374
      %p388 = scmp.eq.s32.totalorder %s32, 1
      %p389 = por %p387, %p388
      %p391 = scmp.ne.s32.totalorder %s374, %s390
      %p392 = scmp.eq.s32.totalorder %s32, 0
      %p393 = por %p391, %p392
      %s394 = ssub.s32 %s33, %s45
      %p395 = scmp.eq.s32.totalorder %s394, 0
      %s397 = sadd.s32 %s396, 1
      %s398 = scalar_select %p395, %s396, %s397
      %p401 = pneg %p395
      %p402 = scmp.eq.s32.totalorder %s26, 1
      %p403 = por %p401, %p402
      %p404 = scmp.ne.s32.totalorder %s396, %s399
      %p405 = scmp.eq.s32.totalorder %s26, 0
      %p406 = por %p404, %p405
      %p407 = scmp.ne.s32.totalorder %s396, %s399
      %p408 = scmp.eq.s32.totalorder %s31, 1
      %p409 = por %p407, %p408
      %p410 = scmp.ne.s32.totalorder %s399, %s400
      %p411 = scmp.eq.s32.totalorder %s31, 0
      %p412 = por %p410, %p411
      %p413 = scmp.ne.s32.totalorder %s399, %s400
      %p414 = scmp.eq.s32.totalorder %s32, 1
      %p415 = por %p413, %p414
      %p417 = scmp.ne.s32.totalorder %s400, %s416
      %p418 = scmp.eq.s32.totalorder %s32, 0
      %p419 = por %p417, %p418
      %p420 = scmp.le.s32.totalorder 1, %s26
      %p421 = scmp.lt.s32.totalorder %s26, 3
      %p422 = pnand %p420, %p421
      %p423 = pneg %p422
      // Predicated region
      $region9: #{gpt2_forward.3} parent=5 // pred_check
        _
      $region10: #{gpt2_forward.3} parent=5 // pred_check_branch
        %425 = sbr.rel (%p422) target = $region12
      $region11: #{gpt2_forward.3} parent=5 // pred_region
        %s426 = ssub.s32 %s26, 1
        // Predicated region
        $region13: #{gpt2_forward.3} parent=11 // pred_check
          %p427 = pneg %p85
        $region14: #{gpt2_forward.3} parent=11 // pred_check_branch
          %429 = sbr.rel (%p427) target = $region16
        $region15: #{gpt2_forward.3} parent=11 // pred_region
          _
        $region16: #{gpt2_forward.3} parent=11 // pred_fallthru
          _
        // Predicated region
        $region17: #{gpt2_forward.3} parent=11 // pred_check
          %p430 = pneg %p106
        $region18: #{gpt2_forward.3} parent=11 // pred_check_branch
          %432 = sbr.rel (%p430) target = $region20
        $region19: #{gpt2_forward.3} parent=11 // pred_region
          _
        $region20: #{gpt2_forward.3} parent=11 // pred_fallthru
          _
        // Predicated region
        $region21: #{gpt2_forward.3} parent=11 // pred_check
          %p433 = pneg %p127
        $region22: #{gpt2_forward.3} parent=11 // pred_check_branch
          %435 = sbr.rel (%p433) target = $region24
        $region23: #{gpt2_forward.3} parent=11 // pred_region
          _
        $region24: #{gpt2_forward.3} parent=11 // pred_fallthru
          _
        // Predicated region
        $region25: #{gpt2_forward.3} parent=11 // pred_check
          %p436 = pneg %p148
        $region26: #{gpt2_forward.3} parent=11 // pred_check_branch
          %438 = sbr.rel (%p436) target = $region28
        $region27: #{gpt2_forward.3} parent=11 // pred_region
          _
        $region28: #{gpt2_forward.3} parent=11 // pred_fallthru
          _
        // Predicated region
        $region29: #{gpt2_forward.3} parent=11 // pred_check
          %p439 = pneg %p169
        $region30: #{gpt2_forward.3} parent=11 // pred_check_branch
          %441 = sbr.rel (%p439) target = $region32
        $region31: #{gpt2_forward.3} parent=11 // pred_region
          _
        $region32: #{gpt2_forward.3} parent=11 // pred_fallthru
          _
        // Predicated region
        $region33: #{gpt2_forward.3} parent=11 // pred_check
          %p442 = pneg %p190
        $region34: #{gpt2_forward.3} parent=11 // pred_check_branch
          %444 = sbr.rel (%p442) target = $region36
        $region35: #{gpt2_forward.3} parent=11 // pred_region
          _
        $region36: #{gpt2_forward.3} parent=11 // pred_fallthru
          _
        // Predicated region
        $region37: #{gpt2_forward.3} parent=11 // pred_check
          %p445 = pneg %p211
        $region38: #{gpt2_forward.3} parent=11 // pred_check_branch
          %447 = sbr.rel (%p445) target = $region40
        $region39: #{gpt2_forward.3} parent=11 // pred_region
          _
        $region40: #{gpt2_forward.3} parent=11 // pred_fallthru
          _
        // Predicated region
        $region41: #{gpt2_forward.3} parent=11 // pred_check
          %p448 = pneg %p232
        $region42: #{gpt2_forward.3} parent=11 // pred_check_branch
          %450 = sbr.rel (%p448) target = $region44
        $region43: #{gpt2_forward.3} parent=11 // pred_region
          _
        $region44: #{gpt2_forward.3} parent=11 // pred_fallthru
          _
        // Predicated region
        $region45: #{gpt2_forward.3} parent=11 // pred_check
          %p451 = pneg %p253
        $region46: #{gpt2_forward.3} parent=11 // pred_check_branch
          %453 = sbr.rel (%p451) target = $region48
        $region47: #{gpt2_forward.3} parent=11 // pred_region
          _
        $region48: #{gpt2_forward.3} parent=11 // pred_fallthru
          _
        // Predicated region
        $region49: #{gpt2_forward.3} parent=11 // pred_check
          %p454 = pneg %p274
        $region50: #{gpt2_forward.3} parent=11 // pred_check_branch
          %456 = sbr.rel (%p454) target = $region52
        $region51: #{gpt2_forward.3} parent=11 // pred_region
          _
        $region52: #{gpt2_forward.3} parent=11 // pred_fallthru
          _
        // Predicated region
        $region53: #{gpt2_forward.3} parent=11 // pred_check
          %p457 = pneg %p295
        $region54: #{gpt2_forward.3} parent=11 // pred_check_branch
          %459 = sbr.rel (%p457) target = $region56
        $region55: #{gpt2_forward.3} parent=11 // pred_region
          _
        $region56: #{gpt2_forward.3} parent=11 // pred_fallthru
          _
        // Predicated region
        $region57: #{gpt2_forward.3} parent=11 // pred_check
          %p460 = pneg %p316
        $region58: #{gpt2_forward.3} parent=11 // pred_check_branch
          %462 = sbr.rel (%p460) target = $region60
        $region59: #{gpt2_forward.3} parent=11 // pred_region
          _
        $region60: #{gpt2_forward.3} parent=11 // pred_fallthru
          _
        // Predicated region
        $region61: #{gpt2_forward.3} parent=11 // pred_check
          %p463 = pneg %p337
        $region62: #{gpt2_forward.3} parent=11 // pred_check_branch
          %465 = sbr.rel (%p463) target = $region64
        $region63: #{gpt2_forward.3} parent=11 // pred_region
          _
        $region64: #{gpt2_forward.3} parent=11 // pred_fallthru
          _
        // Predicated region
        $region65: #{gpt2_forward.3} parent=11 // pred_check
          %p466 = pneg %p358
        $region66: #{gpt2_forward.3} parent=11 // pred_check_branch
          %468 = sbr.rel (%p466) target = $region68
        $region67: #{gpt2_forward.3} parent=11 // pred_region
          _
        $region68: #{gpt2_forward.3} parent=11 // pred_fallthru
          _
      $region12: #{gpt2_forward.3} parent=5 // pred_fallthru
        _
      %p469 = scmp.lt.s32.totalorder %s26, 2
      // Predicated region
      $region69: #{gpt2_forward.3} parent=5 // pred_check
        %p470 = pneg %p469
      $region70: #{gpt2_forward.3} parent=5 // pred_check_branch
        %472 = sbr.rel (%p470) target = $region72
      $region71: #{gpt2_forward.3} parent=5 // pred_region
        // Predicated region
        $region73: #{gpt2_forward.3} parent=71 // pred_check
          %p473 = pneg %p58
        $region74: #{gpt2_forward.3} parent=71 // pred_check_branch
          %475 = sbr.rel (%p473) target = $region76
        $region75: #{gpt2_forward.3} parent=71 // pred_region
          %p476 = scmp.lt.s32.totalorder %s33, 1
          %s477 = scalar_select %p476, %s33, 1
          %s478 = smul.addr %s477, 8
          %s479 = scalar_lea.vmem %s0, %s478
        $region76: #{gpt2_forward.3} parent=71 // pred_fallthru
          _
      $region72: #{gpt2_forward.3} parent=5 // pred_fallthru
        _
      %p480 = scmp.le.s32.totalorder 1, %s26
      %p481 = scmp.lt.s32.totalorder %s26, 3
      %p482 = pnand %p480, %p481
      %p483 = pneg %p482
      // Predicated region
      $region77: #{gpt2_forward.3} parent=5 // pred_check
        _
      $region78: #{gpt2_forward.3} parent=5 // pred_check_branch
        %485 = sbr.rel (%p482) target = $region80
      $region79: #{gpt2_forward.3} parent=5 // pred_region
        %s486 = ssub.s32 %s26, 1
        %p487 = scmp.lt.s32.totalorder %s35, 1
        %s488 = scalar_select %p487, %s35, 1
        %s489 = smul.addr %s488, 8
        %s490 = scalar_lea.vmem %s0, %s489
        %p491 = pneg %p64
        %p492 = pneg %p61
        %p493 = pneg %p85
        %p494 = pneg %p82
        %p495 = pneg %p106
        %p496 = pneg %p103
        %p497 = pneg %p127
        %p498 = pneg %p124
        %p499 = pneg %p148
        %p500 = pneg %p145
        %p501 = pneg %p169
        %p502 = pneg %p166
        %p503 = pneg %p190
        %p504 = pneg %p187
        %p505 = pneg %p211
        %p506 = pneg %p208
        %p507 = pneg %p232
        %p508 = pneg %p229
        %p509 = pneg %p253
        %p510 = pneg %p250
        %p511 = pneg %p274
        %p512 = pneg %p271
        %p513 = pneg %p295
        %p514 = pneg %p292
        %p515 = pneg %p316
        %p516 = pneg %p313
        %p517 = pneg %p337
        %p518 = pneg %p334
        %p519 = pneg %p358
        %p520 = pneg %p355
        %p521 = pneg %p386
        %p522 = pneg %p383
        %s523 = sand.u32 %s373, 1
        %s524 = scalar_lea.sflag [#allocation9], %s523
        %s525 = sand.u32 %s373, 1
        %s526 = smul.addr %s525, 8
        %s527 = scalar_lea.vmem [#allocation8], %s526
        %p528 = pneg %p412
        %p529 = pneg %p409
        %s530 = sand.u32 %s399, 1
        %s531 = sand.u32 %s399, 1
        %s532 = smul.addr %s531, 16
        %s533 = scalar_lea.vmem [#allocation10], %s532
        %p534 = scmp.lt.s32.totalorder %s35, 1
        %s535 = scalar_select %p534, %s35, 1
        %s536 = smul.addr %s535, 8
        %s537 = scalar_lea.vmem %s0, %s536
        %p539 = scmp.eq.s32.totalorder %s36, 0
        // Predicated region
        $region81: #{gpt2_forward.3} parent=79 // pred_check
          %p540 = pneg %p539
        $region82: #{gpt2_forward.3} parent=79 // pred_check_branch
          %542 = sbr.rel (%p540) target = $region84
        $region83: #{gpt2_forward.3} parent=79 // pred_region
          %v543 = vld [vmem:[%s537] sm:$0xff]
          %v544 = vld [vmem:[%s1] sm:$0x1]
          %v545 = vld [vmem:[%s2] sm:$0x1]
          %vm546 = vcmask 261120
          %v547 = vsel %vm546, %v543, 0.0
          %548 = vadd.xlane.f32.xlu0 %v547
          %v549 = vpop.xlane.xlu0 %548
          %v550 = vrcp.pop 32.0
          %v551 = vmul.f32 %v549, %v550
          %v552 = vsub.f32 %v543, %v551
          %v553 = vmul.f32 %v552, %v552
          %v554 = vsel %vm546, %v553, 0.0
          %555 = vadd.xlane.f32.xlu0 %v554
          %v556 = vpop.xlane.xlu0 %555
          %v557 = vmul.f32 %v556, %v550
          %v558 = vadd.f32 %v557, 1e-05
          %v559 = vrsqrt.pop %v558
          %v560 = vmul.f32 %v552, %v559
          %v562 = vlaneseq
          %v563 = vshrl.u32 %v562, 7
          %v564 = vsub.s32 0, %v563
          %v565 = vrot.slane %v544, %v564
          %v567 = vmul.f32 %v560, %v565
          %v569 = vlaneseq
          %v570 = vshrl.u32 %v569, 7
          %v571 = vsub.s32 0, %v570
          %v572 = vrot.slane %v545, %v571
          %v574 = vadd.f32 %v567, %v572
          %v575 = vpack.c.bf16 %v574, %v574
          %v576 = vld [vmem:[%s3] sm:$0xf]
          %v577 = vld [vmem:[%s3 + $0x4] sm:$0xf]
          %v578 = vld [vmem:[%s3 + $0x8] sm:$0xf]
          %v579 = vld [vmem:[%s3 + $0xc] sm:$0xf]
          %v580 = vld [vmem:[%s4] sm:$0x1]
          %v582 = vlaneseq
          %v583 = vshrl.u32 %v582, 7
          %v584 = vsub.s32 0, %v583
          %v585 = vrot.slane %v580, %v584
          %v591 = vunpack.c.l.b16 %v576
          %v592 = vunpack.c.l.b16 %v577
          %v593 = vunpack.c.l.b16 %v578
          %v594 = vunpack.c.l.b16 %v579
          %v595 = vpack.c.b16 %v592, %v591
          %v596 = vpack.c.b16 %v594, %v593
          %v600 = vsel %vm546, %v575, 0
          %602 = vmatprep.subr.bf16.mxu0 0
          %603 = vmatpush1.bf16.msra.mxu0 %v595
          %604 = vmatprep.subr.bf16.mxu0 0
          %605 = vmatpush1.bf16.msra.mxu0 %v596
          %606 = vmatprep.subr.bf16.mxu0 0
          %607 = vmatpush1.bf16.msra.mxu0 0
          %608 = vmatprep.subr.bf16.mxu0 0
          %609 = vmatpush1.bf16.msra.mxu0 0
          %610 = vmatprep.subr.bf16.mxu0 0
          %611 = vmatpush1.bf16.msra.mxu0 0
          %612 = vmatprep.subr.bf16.mxu0 0
          %613 = vmatpush1.bf16.msra.mxu0 0
          %614 = vmatprep.subr.bf16.mxu0 0
          %615 = vmatpush1.bf16.msra.mxu0 0
          %616 = vmatprep.subr.bf16.mxu0 0
          %617 = vmatpush1.bf16.msra.mxu0 0
          %618 = vmatprep.subr.bf16.mxu0 0
          %619 = vmatpush1.bf16.msra.mxu0 0
          %620 = vmatprep.subr.bf16.mxu0 0
          %621 = vmatpush1.bf16.msra.mxu0 0
          %622 = vmatprep.subr.bf16.mxu0 0
          %623 = vmatpush1.bf16.msra.mxu0 0
          %624 = vmatprep.subr.bf16.mxu0 0
          %625 = vmatpush1.bf16.msra.mxu0 0
          %626 = vmatprep.subr.bf16.mxu0 0
          %627 = vmatpush1.bf16.msra.mxu0 0
          %628 = vmatprep.subr.bf16.mxu0 0
          %629 = vmatpush1.bf16.msra.mxu0 0
          %630 = vmatprep.subr.bf16.mxu0 0
          %631 = vmatpush1.bf16.msra.mxu0 0
          %632 = vmatprep.subr.bf16.mxu0 0
          %633 = vmatpush1.bf16.msra.mxu0 0
          %634 = vmatprep.mubr.bf16.mxu0 0
          %635 = vmatmul.mubr.bf16.gmra.mrb[0].mxu0 %v600
          %v636 = vpop.f32.mrb[0].mxu0
          %v637 = vadd.f32 %v585, %v636
          %v638 = vpop.f32.mrb[0].mxu0
          %v639 = vpop.f32.mrb[0].mxu0
          %v640 = vpop.f32.mrb[0].mxu0
          %641 = vdwg.mxu0
          %v642 = vmul.f32 %v637, 0.35355338
          %644 = vrot.lane.b32.xlu0 %v637, 96
          %v645 = vpop.permute.xlu0 %644
          %647 = vst.msk [vmem:[%s533] sm:$0xff] %vm546, %v645
          %648 = vrot.lane.b32.xlu0 %v637, 64
          %v649 = vpop.permute.xlu0 %648
          %s651 = scalar_lea.vmem %s533, 8 [#allocation10]
          %652 = vst.msk [vmem:[%s651] sm:$0xff] %vm546, %v649
          %654 = vrot.lane.b32.xlu0 %v642, 120
          %v655 = vpop.permute.xlu0 %654
          %657 = vrot.lane.b32.xlu0 %v642, 112
          %v658 = vpop.permute.xlu0 %657
          %660 = vrot.lane.b32.xlu0 %v642, 104
          %v661 = vpop.permute.xlu0 %660
          %v663 = vcombine.low %v642, %v658
          %v664 = vcombine.high %v642, %v658
          %v666 = vunpack.c.l.s4 1983009808
          %v667 = vunpack.c.0.s8 %v666
          %v668 = vlaneseq
          %v669 = vshrl.u32 %v668, 7
          %v670 = vsub.s32 %v667, %v669
          %v671 = vrot.slane %v663, %v670
          %v673 = vunpack.c.l.s4 1983009808
          %v674 = vunpack.c.0.s8 %v673
          %v675 = vlaneseq
          %v676 = vshrl.u32 %v675, 7
          %v677 = vsub.s32 %v674, %v676
          %v678 = vrot.slane %v664, %v677
          %v679 = vcombine.low %v655, %v661
          %v680 = vcombine.high %v655, %v661
          %v682 = vunpack.c.l.s4 1983009808
          %v683 = vunpack.c.0.s8 %v682
          %v684 = vlaneseq
          %v685 = vshrl.u32 %v684, 7
          %v686 = vsub.s32 %v683, %v685
          %v687 = vrot.slane %v679, %v686
          %v689 = vunpack.c.l.s4 1983009808
          %v690 = vunpack.c.0.s8 %v689
          %v691 = vlaneseq
          %v692 = vshrl.u32 %v691, 7
          %v693 = vsub.s32 %v690, %v692
          %v694 = vrot.slane %v680, %v693
          %v695 = vcombine.low %v671, %v687
          %v696 = vcombine.high %v671, %v687
          %v698 = vunpack.c.l.s4 1934713408
          %v699 = vunpack.c.0.s8 %v698
          %v700 = vlaneseq
          %v701 = vshrl.u32 %v700, 7
          %v702 = vsub.s32 %v699, %v701
          %v703 = vrot.slane %v695, %v702
          %v705 = vunpack.c.l.s4 1934713408
          %v706 = vunpack.c.0.s8 %v705
          %v707 = vlaneseq
          %v708 = vshrl.u32 %v707, 7
          %v709 = vsub.s32 %v706, %v708
          %v710 = vrot.slane %v696, %v709
          %v711 = vcombine.low %v678, %v694
          %v712 = vcombine.high %v678, %v694
          %v714 = vunpack.c.l.s4 1934713408
          %v715 = vunpack.c.0.s8 %v714
          %v716 = vlaneseq
          %v717 = vshrl.u32 %v716, 7
          %v718 = vsub.s32 %v715, %v717
          %v719 = vrot.slane %v711, %v718
          %v721 = vunpack.c.l.s4 1934713408
          %v722 = vunpack.c.0.s8 %v721
          %v723 = vlaneseq
          %v724 = vshrl.u32 %v723, 7
          %v725 = vsub.s32 %v722, %v724
          %v726 = vrot.slane %v712, %v725
          %v727 = vcombine.high %v703, 0.0
          %v728 = vcombine.high %v710, 0.0
          %v729 = vcombine.high %v719, 0.0
          %v730 = vcombine.high %v726, 0.0
          %v731 = vcombine.low %v703, %v710
          %v733 = vunpack.c.l.s4 1983009808
          %v734 = vunpack.c.0.s8 %v733
          %v735 = vlaneseq
          %v736 = vshrl.u32 %v735, 7
          %v737 = vsub.s32 %v734, %v736
          %v738 = vrot.slane %v731, %v737
          %v739 = vcombine.low %v727, %v728
          %v741 = vunpack.c.l.s4 1983009808
          %v742 = vunpack.c.0.s8 %v741
          %v743 = vlaneseq
          %v744 = vshrl.u32 %v743, 7
          %v745 = vsub.s32 %v742, %v744
          %v746 = vrot.slane %v739, %v745
          %v747 = vcombine.low %v719, %v726
          %v749 = vunpack.c.l.s4 1983009808
          %v750 = vunpack.c.0.s8 %v749
          %v751 = vlaneseq
          %v752 = vshrl.u32 %v751, 7
          %v753 = vsub.s32 %v750, %v752
          %v754 = vrot.slane %v747, %v753
          %v755 = vcombine.low %v729, %v730
          %v757 = vunpack.c.l.s4 1983009808
          %v758 = vunpack.c.0.s8 %v757
          %v759 = vlaneseq
          %v760 = vshrl.u32 %v759, 7
          %v761 = vsub.s32 %v758, %v760
          %v762 = vrot.slane %v755, %v761
          %v763 = vcombine.low %v738, %v746
          %v764 = vcombine.high %v738, %v746
          %v766 = vunpack.c.l.s4 1934713408
          %v767 = vunpack.c.0.s8 %v766
          %v768 = vlaneseq
          %v769 = vshrl.u32 %v768, 7
          %v770 = vsub.s32 %v767, %v769
          %v771 = vrot.slane %v763, %v770
          %v773 = vunpack.c.l.s4 1934713408
          %v774 = vunpack.c.0.s8 %v773
          %v775 = vlaneseq
          %v776 = vshrl.u32 %v775, 7
          %v777 = vsub.s32 %v774, %v776
          %v778 = vrot.slane %v764, %v777
          %v779 = vcombine.low %v754, %v762
          %v780 = vcombine.high %v754, %v762
          %v782 = vunpack.c.l.s4 1934713408
          %v783 = vunpack.c.0.s8 %v782
          %v784 = vlaneseq
          %v785 = vshrl.u32 %v784, 7
          %v786 = vsub.s32 %v783, %v785
          %v787 = vrot.slane %v779, %v786
          %v789 = vunpack.c.l.s4 1934713408
          %v790 = vunpack.c.0.s8 %v789
          %v791 = vlaneseq
          %v792 = vshrl.u32 %v791, 7
          %v793 = vsub.s32 %v790, %v792
          %v794 = vrot.slane %v780, %v793
          %v795 = vcombine.low %v771, %v787
          %v796 = vcombine.high %v771, %v787
          %v797 = vcombine.low %v778, %v794
          %v798 = vcombine.high %v778, %v794
          %v799 = vpack.c.bf16 %v795, %v795
          %v800 = vpack.c.bf16 %v796, %v796
          %v801 = vpack.c.bf16 %v797, %v797
          %v802 = vpack.c.bf16 %v798, %v798
          %vm803 = vcmask 60416
          %804 = vst.msk [vmem:[#allocation2] sm:$0xf] %vm803, %v799
          %805 = vst.msk [vmem:[#allocation2 + $0x4] sm:$0xf] %vm803, %v800
          %806 = vst.msk [vmem:[#allocation2 + $0x8] sm:$0xf] %vm803, %v801
          %807 = vst.msk [vmem:[#allocation2 + $0xc] sm:$0xf] %vm803, %v802
          %808 = vrot.lane.b32.xlu0 %v637, 120
          %v809 = vpop.permute.xlu0 %808
          %810 = vrot.lane.b32.xlu0 %v637, 112
          %v811 = vpop.permute.xlu0 %810
          %812 = vrot.lane.b32.xlu0 %v637, 104
          %v813 = vpop.permute.xlu0 %812
          %814 = vrot.lane.b32.xlu0 %v809, 96
          %v815 = vpop.permute.xlu0 %814
          %816 = vrot.lane.b32.xlu0 %v811, 96
          %v817 = vpop.permute.xlu0 %816
          %818 = vrot.lane.b32.xlu0 %v813, 96
          %v819 = vpop.permute.xlu0 %818
          %v823 = vcombine.low %v645, %v817
          %v824 = vcombine.high %v645, %v817
          %v826 = vunpack.c.l.s4 1983009808
          %v827 = vunpack.c.0.s8 %v826
          %v828 = vlaneseq
          %v829 = vshrl.u32 %v828, 7
          %v830 = vsub.s32 %v827, %v829
          %v831 = vrot.slane %v823, %v830
          %v833 = vunpack.c.l.s4 1983009808
          %v834 = vunpack.c.0.s8 %v833
          %v835 = vlaneseq
          %v836 = vshrl.u32 %v835, 7
          %v837 = vsub.s32 %v834, %v836
          %v838 = vrot.slane %v824, %v837
          %v839 = vcombine.low %v815, %v819
          %v840 = vcombine.high %v815, %v819
          %v842 = vunpack.c.l.s4 1983009808
          %v843 = vunpack.c.0.s8 %v842
          %v844 = vlaneseq
          %v845 = vshrl.u32 %v844, 7
          %v846 = vsub.s32 %v843, %v845
          %v847 = vrot.slane %v839, %v846
          %v849 = vunpack.c.l.s4 1983009808
          %v850 = vunpack.c.0.s8 %v849
          %v851 = vlaneseq
          %v852 = vshrl.u32 %v851, 7
          %v853 = vsub.s32 %v850, %v852
          %v854 = vrot.slane %v840, %v853
          %v855 = vcombine.low %v831, %v847
          %v856 = vcombine.high %v831, %v847
          %v858 = vunpack.c.l.s4 1934713408
          %v859 = vunpack.c.0.s8 %v858
          %v860 = vlaneseq
          %v861 = vshrl.u32 %v860, 7
          %v862 = vsub.s32 %v859, %v861
          %v863 = vrot.slane %v855, %v862
          %v865 = vunpack.c.l.s4 1934713408
          %v866 = vunpack.c.0.s8 %v865
          %v867 = vlaneseq
          %v868 = vshrl.u32 %v867, 7
          %v869 = vsub.s32 %v866, %v868
          %v870 = vrot.slane %v856, %v869
          %v871 = vcombine.low %v838, %v854
          %v872 = vcombine.high %v838, %v854
          %v874 = vunpack.c.l.s4 1934713408
          %v875 = vunpack.c.0.s8 %v874
          %v876 = vlaneseq
          %v877 = vshrl.u32 %v876, 7
          %v878 = vsub.s32 %v875, %v877
          %v879 = vrot.slane %v871, %v878
          %v881 = vunpack.c.l.s4 1934713408
          %v882 = vunpack.c.0.s8 %v881
          %v883 = vlaneseq
          %v884 = vshrl.u32 %v883, 7
          %v885 = vsub.s32 %v882, %v884
          %v886 = vrot.slane %v872, %v885
          %v887 = vcombine.high %v863, 0.0
          %v888 = vcombine.high %v870, 0.0
          %v889 = vcombine.high %v879, 0.0
          %v890 = vcombine.high %v886, 0.0
          %v891 = vcombine.low %v863, %v870
          %v893 = vunpack.c.l.s4 1983009808
          %v894 = vunpack.c.0.s8 %v893
          %v895 = vlaneseq
          %v896 = vshrl.u32 %v895, 7
          %v897 = vsub.s32 %v894, %v896
          %v898 = vrot.slane %v891, %v897
          %v899 = vcombine.low %v887, %v888
          %v901 = vunpack.c.l.s4 1983009808
          %v902 = vunpack.c.0.s8 %v901
          %v903 = vlaneseq
          %v904 = vshrl.u32 %v903, 7
          %v905 = vsub.s32 %v902, %v904
          %v906 = vrot.slane %v899, %v905
          %v907 = vcombine.low %v879, %v886
          %v909 = vunpack.c.l.s4 1983009808
          %v910 = vunpack.c.0.s8 %v909
          %v911 = vlaneseq
          %v912 = vshrl.u32 %v911, 7
          %v913 = vsub.s32 %v910, %v912
          %v914 = vrot.slane %v907, %v913
          %v915 = vcombine.low %v889, %v890
          %v917 = vunpack.c.l.s4 1983009808
          %v918 = vunpack.c.0.s8 %v917
          %v919 = vlaneseq
          %v920 = vshrl.u32 %v919, 7
          %v921 = vsub.s32 %v918, %v920
          %v922 = vrot.slane %v915, %v921
          %v923 = vcombine.low %v898, %v906
          %v924 = vcombine.high %v898, %v906
          %v926 = vunpack.c.l.s4 1934713408
          %v927 = vunpack.c.0.s8 %v926
          %v928 = vlaneseq
          %v929 = vshrl.u32 %v928, 7
          %v930 = vsub.s32 %v927, %v929
          %v931 = vrot.slane %v923, %v930
          %v933 = vunpack.c.l.s4 1934713408
          %v934 = vunpack.c.0.s8 %v933
          %v935 = vlaneseq
          %v936 = vshrl.u32 %v935, 7
          %v937 = vsub.s32 %v934, %v936
          %v938 = vrot.slane %v924, %v937
          %v939 = vcombine.low %v914, %v922
          %v940 = vcombine.high %v914, %v922
          %v942 = vunpack.c.l.s4 1934713408
          %v943 = vunpack.c.0.s8 %v942
          %v944 = vlaneseq
          %v945 = vshrl.u32 %v944, 7
          %v946 = vsub.s32 %v943, %v945
          %v947 = vrot.slane %v939, %v946
          %v949 = vunpack.c.l.s4 1934713408
          %v950 = vunpack.c.0.s8 %v949
          %v951 = vlaneseq
          %v952 = vshrl.u32 %v951, 7
          %v953 = vsub.s32 %v950, %v952
          %v954 = vrot.slane %v940, %v953
          %v955 = vcombine.low %v931, %v947
          %v956 = vcombine.high %v931, %v947
          %v957 = vcombine.low %v938, %v954
          %v958 = vcombine.high %v938, %v954
          %v959 = vpack.c.bf16 %v955, %v955
          %v960 = vpack.c.bf16 %v956, %v956
          %v961 = vpack.c.bf16 %v957, %v957
          %v962 = vpack.c.bf16 %v958, %v958
          %963 = vst.msk [vmem:[#allocation3] sm:$0xf] %vm803, %v959
          %964 = vst.msk [vmem:[#allocation3 + $0x4] sm:$0xf] %vm803, %v960
          %965 = vst.msk [vmem:[#allocation3 + $0x8] sm:$0xf] %vm803, %v961
          %966 = vst.msk [vmem:[#allocation3 + $0xc] sm:$0xf] %vm803, %v962
          %967 = vrot.lane.b32.xlu0 %v809, 64
          %v968 = vpop.permute.xlu0 %967
          %969 = vrot.lane.b32.xlu0 %v811, 64
          %v970 = vpop.permute.xlu0 %969
          %971 = vrot.lane.b32.xlu0 %v813, 64
          %v972 = vpop.permute.xlu0 %971
          %v976 = vcombine.low %v649, %v970
          %v977 = vcombine.high %v649, %v970
          %v979 = vunpack.c.l.s4 1983009808
          %v980 = vunpack.c.0.s8 %v979
          %v981 = vlaneseq
          %v982 = vshrl.u32 %v981, 7
          %v983 = vsub.s32 %v980, %v982
          %v984 = vrot.slane %v976, %v983
          %v986 = vunpack.c.l.s4 1983009808
          %v987 = vunpack.c.0.s8 %v986
          %v988 = vlaneseq
          %v989 = vshrl.u32 %v988, 7
          %v990 = vsub.s32 %v987, %v989
          %v991 = vrot.slane %v977, %v990
          %v992 = vcombine.low %v968, %v972
          %v993 = vcombine.high %v968, %v972
          %v995 = vunpack.c.l.s4 1983009808
          %v996 = vunpack.c.0.s8 %v995
          %v997 = vlaneseq
          %v998 = vshrl.u32 %v997, 7
          %v999 = vsub.s32 %v996, %v998
          %v1000 = vrot.slane %v992, %v999
          %v1002 = vunpack.c.l.s4 1983009808
          %v1003 = vunpack.c.0.s8 %v1002
          %v1004 = vlaneseq
          %v1005 = vshrl.u32 %v1004, 7
          %v1006 = vsub.s32 %v1003, %v1005
          %v1007 = vrot.slane %v993, %v1006
          %v1008 = vcombine.low %v984, %v1000
          %v1009 = vcombine.high %v984, %v1000
          %v1011 = vunpack.c.l.s4 1934713408
          %v1012 = vunpack.c.0.s8 %v1011
          %v1013 = vlaneseq
          %v1014 = vshrl.u32 %v1013, 7
          %v1015 = vsub.s32 %v1012, %v1014
          %v1016 = vrot.slane %v1008, %v1015
          %v1018 = vunpack.c.l.s4 1934713408
          %v1019 = vunpack.c.0.s8 %v1018
          %v1020 = vlaneseq
          %v1021 = vshrl.u32 %v1020, 7
          %v1022 = vsub.s32 %v1019, %v1021
          %v1023 = vrot.slane %v1009, %v1022
          %v1024 = vcombine.low %v991, %v1007
          %v1025 = vcombine.high %v991, %v1007
          %v1027 = vunpack.c.l.s4 1934713408
          %v1028 = vunpack.c.0.s8 %v1027
          %v1029 = vlaneseq
          %v1030 = vshrl.u32 %v1029, 7
          %v1031 = vsub.s32 %v1028, %v1030
          %v1032 = vrot.slane %v1024, %v1031
          %v1034 = vunpack.c.l.s4 1934713408
          %v1035 = vunpack.c.0.s8 %v1034
          %v1036 = vlaneseq
          %v1037 = vshrl.u32 %v1036, 7
          %v1038 = vsub.s32 %v1035, %v1037
          %v1039 = vrot.slane %v1025, %v1038
          %v1040 = vcombine.high %v1016, 0.0
          %v1041 = vcombine.high %v1023, 0.0
          %v1042 = vcombine.high %v1032, 0.0
          %v1043 = vcombine.high %v1039, 0.0
          %v1044 = vcombine.low %v1016, %v1023
          %v1046 = vunpack.c.l.s4 1983009808
          %v1047 = vunpack.c.0.s8 %v1046
          %v1048 = vlaneseq
          %v1049 = vshrl.u32 %v1048, 7
          %v1050 = vsub.s32 %v1047, %v1049
          %v1051 = vrot.slane %v1044, %v1050
          %v1052 = vcombine.low %v1040, %v1041
          %v1054 = vunpack.c.l.s4 1983009808
          %v1055 = vunpack.c.0.s8 %v1054
          %v1056 = vlaneseq
          %v1057 = vshrl.u32 %v1056, 7
          %v1058 = vsub.s32 %v1055, %v1057
          %v1059 = vrot.slane %v1052, %v1058
          %v1060 = vcombine.low %v1032, %v1039
          %v1062 = vunpack.c.l.s4 1983009808
          %v1063 = vunpack.c.0.s8 %v1062
          %v1064 = vlaneseq
          %v1065 = vshrl.u32 %v1064, 7
          %v1066 = vsub.s32 %v1063, %v1065
          %v1067 = vrot.slane %v1060, %v1066
          %v1068 = vcombine.low %v1042, %v1043
          %v1070 = vunpack.c.l.s4 1983009808
          %v1071 = vunpack.c.0.s8 %v1070
          %v1072 = vlaneseq
          %v1073 = vshrl.u32 %v1072, 7
          %v1074 = vsub.s32 %v1071, %v1073
          %v1075 = vrot.slane %v1068, %v1074
          %v1076 = vcombine.low %v1051, %v1059
          %v1077 = vcombine.high %v1051, %v1059
          %v1079 = vunpack.c.l.s4 1934713408
          %v1080 = vunpack.c.0.s8 %v1079
          %v1081 = vlaneseq
          %v1082 = vshrl.u32 %v1081, 7
          %v1083 = vsub.s32 %v1080, %v1082
          %v1084 = vrot.slane %v1076, %v1083
          %v1086 = vunpack.c.l.s4 1934713408
          %v1087 = vunpack.c.0.s8 %v1086
          %v1088 = vlaneseq
          %v1089 = vshrl.u32 %v1088, 7
          %v1090 = vsub.s32 %v1087, %v1089
          %v1091 = vrot.slane %v1077, %v1090
          %v1092 = vcombine.low %v1067, %v1075
          %v1093 = vcombine.high %v1067, %v1075
          %v1095 = vunpack.c.l.s4 1934713408
          %v1096 = vunpack.c.0.s8 %v1095
          %v1097 = vlaneseq
          %v1098 = vshrl.u32 %v1097, 7
          %v1099 = vsub.s32 %v1096, %v1098
          %v1100 = vrot.slane %v1092, %v1099
          %v1102 = vunpack.c.l.s4 1934713408
          %v1103 = vunpack.c.0.s8 %v1102
          %v1104 = vlaneseq
          %v1105 = vshrl.u32 %v1104, 7
          %v1106 = vsub.s32 %v1103, %v1105
          %v1107 = vrot.slane %v1093, %v1106
          %v1108 = vcombine.low %v1084, %v1100
          %v1109 = vcombine.high %v1084, %v1100
          %v1110 = vcombine.low %v1091, %v1107
          %v1111 = vcombine.high %v1091, %v1107
          %v1112 = vpack.c.bf16 %v1108, %v1108
          %v1113 = vpack.c.bf16 %v1109, %v1109
          %v1114 = vpack.c.bf16 %v1110, %v1110
          %v1115 = vpack.c.bf16 %v1111, %v1111
          %1116 = vst.msk [vmem:[#allocation4] sm:$0xf] %vm803, %v1112
          %1117 = vst.msk [vmem:[#allocation4 + $0x4] sm:$0xf] %vm803, %v1113
          %1118 = vst.msk [vmem:[#allocation4 + $0x8] sm:$0xf] %vm803, %v1114
          %1119 = vst.msk [vmem:[#allocation4 + $0xc] sm:$0xf] %vm803, %v1115
        $region84: #{gpt2_forward.3} parent=79 // pred_fallthru
          _
        %vm1120 = vcmask 7168
        %1121 = vst.msk [vmem:[#allocation6] sm:$0xff] %vm1120, -1e+30
        %1122 = vst.msk [vmem:[#allocation6 + $0x8] sm:$0xff] %vm1120, -1e+30
        %1123 = vst.msk [vmem:[#allocation6 + $0x10] sm:$0xff] %vm1120, -1e+30
        %1124 = vst.msk [vmem:[#allocation6 + $0x18] sm:$0xff] %vm1120, -1e+30
        %1125 = vst.msk [vmem:[#allocation7] sm:$0xff] %vm1120, 0.0
        %1126 = vst.msk [vmem:[#allocation7 + $0x8] sm:$0xff] %vm1120, 0.0
        %1127 = vst.msk [vmem:[#allocation7 + $0x10] sm:$0xff] %vm1120, 0.0
        %1128 = vst.msk [vmem:[#allocation7 + $0x18] sm:$0xff] %vm1120, 0.0
        %vm1129 = vcmask 64512
        %1130 = vst.msk [vmem:[#allocation5] sm:$0xff] %vm1129, 0.0
        %1131 = vst.msk [vmem:[#allocation5 + $0x8] sm:$0xff] %vm1129, 0.0
        %1132 = vst.msk [vmem:[#allocation5 + $0x10] sm:$0xff] %vm1129, 0.0
        %1133 = vst.msk [vmem:[#allocation5 + $0x18] sm:$0xff] %vm1129, 0.0
        %s1134 = smul.u32 %s36, 8
        %s1135 = sshra.s32 %s1134, 3
        %s1136 = sand.u32 %s1134, 7
        %s1137 = smul.addr %s1135, 4
        %s1138 = scalar_lea.vmem [#allocation2], %s1137
        %v1139 = vld [vmem:[%s1138] sm:$0xf]
        %v1140 = vld [vmem:[%s1138 + $0x4] sm:$0xf]
        %v1141 = vld [vmem:[%s1138 + $0x8] sm:$0xf]
        %v1142 = vld [vmem:[%s1138 + $0xc] sm:$0xf]
        %s1143 = sadd.s32 %s36, 1
        // While loop
        $region85: #{gpt2_forward.3} parent=79 // loop_pre_header
          _
        $region86: #{gpt2_forward.3} parent=79 // loop_header
          %s1145 = sphi 0, %s1147
          %p1146 = scmp.ge.s32.totalorder %s1145, %s1143
        $region87: #{gpt2_forward.3} parent=79 // loop_header_branch
          %1149 = sbr.rel (%p1146) target = $region91
        $region88: #{gpt2_forward.3} parent=79 // loop_body
          %s1150 = smul.u32 %s1145, 8
          %s1151 = sshra.s32 %s1150, 3
          %s1152 = sand.u32 %s1150, 7
          %s1153 = smul.addr %s1151, 4
          %s1154 = scalar_lea.vmem [#allocation3], %s1153
          %v1155 = vld [vmem:[%s1154] sm:$0xf]
          %v1156 = vld [vmem:[%s1154 + $0x4] sm:$0xf]
          %v1157 = vld [vmem:[%s1154 + $0x8] sm:$0xf]
          %v1158 = vld [vmem:[%s1154 + $0xc] sm:$0xf]
          %s1159 = smul.addr %s1151, 4
          %s1160 = scalar_lea.vmem [#allocation4], %s1159
          %v1161 = vld [vmem:[%s1160] sm:$0xf]
          %v1162 = vld [vmem:[%s1160 + $0x4] sm:$0xf]
          %v1163 = vld [vmem:[%s1160 + $0x8] sm:$0xf]
          %v1164 = vld [vmem:[%s1160 + $0xc] sm:$0xf]
          %v1166 = vsel %vm1129, %v1139, 0
          %v1169 = vsel %vm1129, %v1155, 0
          %1171 = vmatprep.subr.bf16.mxu0 0
          %1172 = vmatpush1.bf16.xpose.msra.mxu0 %v1169
          %1173 = vmatprep.subr.bf16.mxu0 0
          %1174 = vmatpush1.bf16.xpose.msra.mxu0 0
          %1175 = vmatprep.subr.bf16.mxu0 0
          %1176 = vmatpush1.bf16.xpose.msra.mxu0 0
          %1177 = vmatprep.subr.bf16.mxu0 0
          %1178 = vmatpush1.bf16.xpose.msra.mxu0 0
          %1179 = vmatprep.subr.bf16.mxu0 0
          %1180 = vmatpush1.bf16.xpose.msra.mxu0 0
          %1181 = vmatprep.subr.bf16.mxu0 0
          %1182 = vmatpush1.bf16.xpose.msra.mxu0 0
          %1183 = vmatprep.subr.bf16.mxu0 0
          %1184 = vmatpush1.bf16.xpose.msra.mxu0 0
          %1185 = vmatprep.subr.bf16.mxu0 0
          %1186 = vmatpush1.bf16.xpose.msra.mxu0 0
          %1187 = vmatprep.subr.bf16.mxu0 0
          %1188 = vmatpush1.bf16.xpose.msra.mxu0 0
          %1189 = vmatprep.subr.bf16.mxu0 0
          %1190 = vmatpush1.bf16.xpose.msra.mxu0 0
          %1191 = vmatprep.subr.bf16.mxu0 0
          %1192 = vmatpush1.bf16.xpose.msra.mxu0 0
          %1193 = vmatprep.subr.bf16.mxu0 0
          %1194 = vmatpush1.bf16.xpose.msra.mxu0 0
          %1195 = vmatprep.subr.bf16.mxu0 0
          %1196 = vmatpush1.bf16.xpose.msra.mxu0 0
          %1197 = vmatprep.subr.bf16.mxu0 0
          %1198 = vmatpush1.bf16.xpose.msra.mxu0 0
          %1199 = vmatprep.subr.bf16.mxu0 0
          %1200 = vmatpush1.bf16.xpose.msra.mxu0 0
          %1201 = vmatprep.subr.bf16.mxu0 0
          %1202 = vmatpush1.bf16.xpose.msra.mxu0 0
          %1203 = vmatprep.mubr.bf16.mxu0 0
          %1204 = vmatmul.mubr.bf16.gmra.mrb[0].mxu0 %v1166
          %v1205 = vpop.f32.mrb[0].mxu0
          %v1206 = vadd.f32 0.0, %v1205
          %v1207 = vpop.f32.mrb[0].mxu0
          %v1208 = vpop.f32.mrb[0].mxu0
          %v1209 = vpop.f32.mrb[0].mxu0
          %1210 = vdwg.mxu0
          %v1212 = vsel %vm1129, %v1140, 0
          %v1215 = vsel %vm1129, %v1156, 0
          %1217 = vmatprep.subr.bf16.mxu0 0
          %1218 = vmatpush1.bf16.xpose.msra.mxu0 %v1215
          %1219 = vmatprep.subr.bf16.mxu0 0
          %1220 = vmatpush1.bf16.xpose.msra.mxu0 0
          %1221 = vmatprep.subr.bf16.mxu0 0
          %1222 = vmatpush1.bf16.xpose.msra.mxu0 0
          %1223 = vmatprep.subr.bf16.mxu0 0
          %1224 = vmatpush1.bf16.xpose.msra.mxu0 0
          %1225 = vmatprep.subr.bf16.mxu0 0
          %1226 = vmatpush1.bf16.xpose.msra.mxu0 0
          %1227 = vmatprep.subr.bf16.mxu0 0
          %1228 = vmatpush1.bf16.xpose.msra.mxu0 0
          %1229 = vmatprep.subr.bf16.mxu0 0
          %1230 = vmatpush1.bf16.xpose.msra.mxu0 0
          %1231 = vmatprep.subr.bf16.mxu0 0
          %1232 = vmatpush1.bf16.xpose.msra.mxu0 0
          %1233 = vmatprep.subr.bf16.mxu0 0
          %1234 = vmatpush1.bf16.xpose.msra.mxu0 0
          %1235 = vmatprep.subr.bf16.mxu0 0
          %1236 = vmatpush1.bf16.xpose.msra.mxu0 0
          %1237 = vmatprep.subr.bf16.mxu0 0
          %1238 = vmatpush1.bf16.xpose.msra.mxu0 0
          %1239 = vmatprep.subr.bf16.mxu0 0
          %1240 = vmatpush1.bf16.xpose.msra.mxu0 0
          %1241 = vmatprep.subr.bf16.mxu0 0
          %1242 = vmatpush1.bf16.xpose.msra.mxu0 0
          %1243 = vmatprep.subr.bf16.mxu0 0
          %1244 = vmatpush1.bf16.xpose.msra.mxu0 0
          %1245 = vmatprep.subr.bf16.mxu0 0
          %1246 = vmatpush1.bf16.xpose.msra.mxu0 0
          %1247 = vmatprep.subr.bf16.mxu0 0
          %1248 = vmatpush1.bf16.xpose.msra.mxu0 0
          %1249 = vmatprep.mubr.bf16.mxu0 0
          %1250 = vmatmul.mubr.bf16.gmra.mrb[0].mxu0 %v1212
          %v1251 = vpop.f32.mrb[0].mxu0
          %v1252 = vadd.f32 0.0, %v1251
          %v1253 = vpop.f32.mrb[0].mxu0
          %v1254 = vpop.f32.mrb[0].mxu0
          %v1255 = vpop.f32.mrb[0].mxu0
          %1256 = vdwg.mxu0
          %v1258 = vsel %vm1129, %v1141, 0
          %v1261 = vsel %vm1129, %v1157, 0
          %1263 = vmatprep.subr.bf16.mxu0 0
          %1264 = vmatpush1.bf16.xpose.msra.mxu0 %v1261
          %1265 = vmatprep.subr.bf16.mxu0 0
          %1266 = vmatpush1.bf16.xpose.msra.mxu0 0
          %1267 = vmatprep.subr.bf16.mxu0 0
          %1268 = vmatpush1.bf16.xpose.msra.mxu0 0
          %1269 = vmatprep.subr.bf16.mxu0 0
          %1270 = vmatpush1.bf16.xpose.msra.mxu0 0
          %1271 = vmatprep.subr.bf16.mxu0 0
          %1272 = vmatpush1.bf16.xpose.msra.mxu0 0
          %1273 = vmatprep.subr.bf16.mxu0 0
          %1274 = vmatpush1.bf16.xpose.msra.mxu0 0
          %1275 = vmatprep.subr.bf16.mxu0 0
          %1276 = vmatpush1.bf16.xpose.msra.mxu0 0
          %1277 = vmatprep.subr.bf16.mxu0 0
          %1278 = vmatpush1.bf16.xpose.msra.mxu0 0
          %1279 = vmatprep.subr.bf16.mxu0 0
          %1280 = vmatpush1.bf16.xpose.msra.mxu0 0
          %1281 = vmatprep.subr.bf16.mxu0 0
          %1282 = vmatpush1.bf16.xpose.msra.mxu0 0
          %1283 = vmatprep.subr.bf16.mxu0 0
          %1284 = vmatpush1.bf16.xpose.msra.mxu0 0
          %1285 = vmatprep.subr.bf16.mxu0 0
          %1286 = vmatpush1.bf16.xpose.msra.mxu0 0
          %1287 = vmatprep.subr.bf16.mxu0 0
          %1288 = vmatpush1.bf16.xpose.msra.mxu0 0
          %1289 = vmatprep.subr.bf16.mxu0 0
          %1290 = vmatpush1.bf16.xpose.msra.mxu0 0
          %1291 = vmatprep.subr.bf16.mxu0 0
          %1292 = vmatpush1.bf16.xpose.msra.mxu0 0
          %1293 = vmatprep.subr.bf16.mxu0 0
          %1294 = vmatpush1.bf16.xpose.msra.mxu0 0
          %1295 = vmatprep.mubr.bf16.mxu0 0
          %1296 = vmatmul.mubr.bf16.gmra.mrb[0].mxu0 %v1258
          %v1297 = vpop.f32.mrb[0].mxu0
          %v1298 = vadd.f32 0.0, %v1297
          %v1299 = vpop.f32.mrb[0].mxu0
          %v1300 = vpop.f32.mrb[0].mxu0
          %v1301 = vpop.f32.mrb[0].mxu0
          %1302 = vdwg.mxu0
          %v1304 = vsel %vm1129, %v1142, 0
          %v1307 = vsel %vm1129, %v1158, 0
          %1309 = vmatprep.subr.bf16.mxu0 0
          %1310 = vmatpush1.bf16.xpose.msra.mxu0 %v1307
          %1311 = vmatprep.subr.bf16.mxu0 0
          %1312 = vmatpush1.bf16.xpose.msra.mxu0 0
          %1313 = vmatprep.subr.bf16.mxu0 0
          %1314 = vmatpush1.bf16.xpose.msra.mxu0 0
          %1315 = vmatprep.subr.bf16.mxu0 0
          %1316 = vmatpush1.bf16.xpose.msra.mxu0 0
          %1317 = vmatprep.subr.bf16.mxu0 0
          %1318 = vmatpush1.bf16.xpose.msra.mxu0 0
          %1319 = vmatprep.subr.bf16.mxu0 0
          %1320 = vmatpush1.bf16.xpose.msra.mxu0 0
          %1321 = vmatprep.subr.bf16.mxu0 0
          %1322 = vmatpush1.bf16.xpose.msra.mxu0 0
          %1323 = vmatprep.subr.bf16.mxu0 0
          %1324 = vmatpush1.bf16.xpose.msra.mxu0 0
          %1325 = vmatprep.subr.bf16.mxu0 0
          %1326 = vmatpush1.bf16.xpose.msra.mxu0 0
          %1327 = vmatprep.subr.bf16.mxu0 0
          %1328 = vmatpush1.bf16.xpose.msra.mxu0 0
          %1329 = vmatprep.subr.bf16.mxu0 0
          %1330 = vmatpush1.bf16.xpose.msra.mxu0 0
          %1331 = vmatprep.subr.bf16.mxu0 0
          %1332 = vmatpush1.bf16.xpose.msra.mxu0 0
          %1333 = vmatprep.subr.bf16.mxu0 0
          %1334 = vmatpush1.bf16.xpose.msra.mxu0 0
          %1335 = vmatprep.subr.bf16.mxu0 0
          %1336 = vmatpush1.bf16.xpose.msra.mxu0 0
          %1337 = vmatprep.subr.bf16.mxu0 0
          %1338 = vmatpush1.bf16.xpose.msra.mxu0 0
          %1339 = vmatprep.subr.bf16.mxu0 0
          %1340 = vmatpush1.bf16.xpose.msra.mxu0 0
          %1341 = vmatprep.mubr.bf16.mxu0 0
          %1342 = vmatmul.mubr.bf16.gmra.mrb[0].mxu0 %v1304
          %v1343 = vpop.f32.mrb[0].mxu0
          %v1344 = vadd.f32 0.0, %v1343
          %v1345 = vpop.f32.mrb[0].mxu0
          %v1346 = vpop.f32.mrb[0].mxu0
          %v1347 = vpop.f32.mrb[0].mxu0
          %1348 = vdwg.mxu0
          %v1349 = vlaneseq
          %v1350 = vshrl.u32 %v1349, 7
          %v1351 = vstv %s1134
          %v1352 = vadd.s32 %v1350, %v1351
          %v1353 = vlaneseq
          %v1354 = vand.u32 %v1353, 127
          %v1355 = vstv %s1150
          %v1356 = vadd.s32 %v1354, %v1355
          %vm1357 = vcmp.le.s32.totalorder %v1356, %v1352
          %v1358 = vsel %vm1357, 1, 0
          %vm1359 = vcmp.eq.s32.totalorder %v1358, 1
          %v1360 = vsel %vm1359, %v1206, -1e+10
          %v1361 = vsel %vm1359, %v1252, -1e+10
          %v1362 = vsel %vm1359, %v1298, -1e+10
          %v1363 = vsel %vm1359, %v1344, -1e+10
          %v1364 = vld [vmem:[#allocation6] sm:$0xff]
          %v1365 = vld [vmem:[#allocation6 + $0x8] sm:$0xff]
          %v1366 = vld [vmem:[#allocation6 + $0x10] sm:$0xff]
          %v1367 = vld [vmem:[#allocation6 + $0x18] sm:$0xff]
          %v1368 = vsel %vm1129, %v1360, -inf
          %1369 = vmax.xlane.f32.xlu0 %v1368
          %v1370 = vpop.xlane.xlu0 %1369
          %v1371 = vsel %vm1129, %v1361, -inf
          %1372 = vmax.xlane.f32.xlu0 %v1371
          %v1373 = vpop.xlane.xlu0 %1372
          %v1374 = vsel %vm1129, %v1362, -inf
          %1375 = vmax.xlane.f32.xlu0 %v1374
          %v1376 = vpop.xlane.xlu0 %1375
          %v1377 = vsel %vm1129, %v1363, -inf
          %1378 = vmax.xlane.f32.xlu0 %v1377
          %v1379 = vpop.xlane.xlu0 %1378
          %v1380 = vmax.f32 %v1364, %v1370
          %v1381 = vmax.f32 %v1365, %v1373
          %v1382 = vmax.f32 %v1366, %v1376
          %v1383 = vmax.f32 %v1367, %v1379
          %v1384 = vsub.f32 %v1364, %v1380
          %v1385 = vsub.f32 %v1365, %v1381
          %v1386 = vsub.f32 %v1366, %v1382
          %v1387 = vsub.f32 %v1367, %v1383
          %v1388 = vmul.f32 %v1384, 1.442695
          %v1389 = vpow.pop %v1388
          %v1390 = vmul.f32 %v1385, 1.442695
          %v1391 = vpow.pop %v1390
          %v1392 = vmul.f32 %v1386, 1.442695
          %v1393 = vpow.pop %v1392
          %v1394 = vmul.f32 %v1387, 1.442695
          %v1395 = vpow.pop %v1394
          %1397 = vset.pattern.permute.xlu0 0
          %1398 = vperm.xlu0 %1397, %v1380
          %v1399 = vpop.permute.xlu0 %1398
          %1402 = vset.pattern.permute.xlu0 0
          %1403 = vperm.xlu0 %1402, %v1381
          %v1404 = vpop.permute.xlu0 %1403
          %1407 = vset.pattern.permute.xlu0 0
          %1408 = vperm.xlu0 %1407, %v1382
          %v1409 = vpop.permute.xlu0 %1408
          %1412 = vset.pattern.permute.xlu0 0
          %1413 = vperm.xlu0 %1412, %v1383
          %v1414 = vpop.permute.xlu0 %1413
          %v1416 = vsub.f32 %v1360, %v1399
          %v1417 = vsub.f32 %v1361, %v1404
          %v1418 = vsub.f32 %v1362, %v1409
          %v1419 = vsub.f32 %v1363, %v1414
          %v1420 = vmul.f32 %v1416, 1.442695
          %v1421 = vpow.pop %v1420
          %v1422 = vmul.f32 %v1417, 1.442695
          %v1423 = vpow.pop %v1422
          %v1424 = vmul.f32 %v1418, 1.442695
          %v1425 = vpow.pop %v1424
          %v1426 = vmul.f32 %v1419, 1.442695
          %v1427 = vpow.pop %v1426
          %v1428 = vld [vmem:[#allocation7] sm:$0xff]
          %v1429 = vld [vmem:[#allocation7 + $0x8] sm:$0xff]
          %v1430 = vld [vmem:[#allocation7 + $0x10] sm:$0xff]
          %v1431 = vld [vmem:[#allocation7 + $0x18] sm:$0xff]
          %v1432 = vmul.f32 %v1389, %v1428
          %v1433 = vmul.f32 %v1391, %v1429
          %v1434 = vmul.f32 %v1393, %v1430
          %v1435 = vmul.f32 %v1395, %v1431
          %v1436 = vsel %vm1129, %v1421, 0.0
          %1437 = vadd.xlane.f32.xlu0 %v1436
          %v1438 = vpop.xlane.xlu0 %1437
          %v1439 = vsel %vm1129, %v1423, 0.0
          %1440 = vadd.xlane.f32.xlu0 %v1439
          %v1441 = vpop.xlane.xlu0 %1440
          %v1442 = vsel %vm1129, %v1425, 0.0
          %1443 = vadd.xlane.f32.xlu0 %v1442
          %v1444 = vpop.xlane.xlu0 %1443
          %v1445 = vsel %vm1129, %v1427, 0.0
          %1446 = vadd.xlane.f32.xlu0 %v1445
          %v1447 = vpop.xlane.xlu0 %1446
          %v1448 = vadd.f32 %v1432, %v1438
          %v1449 = vadd.f32 %v1433, %v1441
          %v1450 = vadd.f32 %v1434, %v1444
          %v1451 = vadd.f32 %v1435, %v1447
          %1452 = vst.msk [vmem:[#allocation7] sm:$0xff] %vm1120, %v1448
          %1453 = vst.msk [vmem:[#allocation7 + $0x8] sm:$0xff] %vm1120, %v1449
          %1454 = vst.msk [vmem:[#allocation7 + $0x10] sm:$0xff] %vm1120, %v1450
          %1455 = vst.msk [vmem:[#allocation7 + $0x18] sm:$0xff] %vm1120, %v1451
          %v1456 = vld [vmem:[#allocation5] sm:$0xff]
          %v1457 = vld [vmem:[#allocation5 + $0x8] sm:$0xff]
          %v1458 = vld [vmem:[#allocation5 + $0x10] sm:$0xff]
          %v1459 = vld [vmem:[#allocation5 + $0x18] sm:$0xff]
          %1461 = vset.pattern.permute.xlu0 0
          %1462 = vperm.xlu0 %1461, %v1389
          %v1463 = vpop.permute.xlu0 %1462
          %1466 = vset.pattern.permute.xlu0 0
          %1467 = vperm.xlu0 %1466, %v1391
          %v1468 = vpop.permute.xlu0 %1467
          %1471 = vset.pattern.permute.xlu0 0
          %1472 = vperm.xlu0 %1471, %v1393
          %v1473 = vpop.permute.xlu0 %1472
          %1476 = vset.pattern.permute.xlu0 0
          %1477 = vperm.xlu0 %1476, %v1395
          %v1478 = vpop.permute.xlu0 %1477
          %v1480 = vmul.f32 %v1463, %v1456
          %v1481 = vmul.f32 %v1468, %v1457
          %v1482 = vmul.f32 %v1473, %v1458
          %v1483 = vmul.f32 %v1478, %v1459
          %v1484 = vpack.c.bf16 %v1421, %v1421
          %v1485 = vpack.c.bf16 %v1423, %v1423
          %v1486 = vpack.c.bf16 %v1425, %v1425
          %v1487 = vpack.c.bf16 %v1427, %v1427
          %v1489 = vsel %vm1129, %v1484, 0
          %vm1491 = vcmask 1043456
          %v1493 = vsel %vm1491, %v1161, 0
          %1495 = vmatprep.subr.bf16.mxu0 0
          %1496 = vmatpush1.bf16.msra.mxu0 %v1493
          %1497 = vmatprep.subr.bf16.mxu0 0
          %1498 = vmatpush1.bf16.msra.mxu0 0
          %1499 = vmatprep.subr.bf16.mxu0 0
          %1500 = vmatpush1.bf16.msra.mxu0 0
          %1501 = vmatprep.subr.bf16.mxu0 0
          %1502 = vmatpush1.bf16.msra.mxu0 0
          %1503 = vmatprep.subr.bf16.mxu0 0
          %1504 = vmatpush1.bf16.msra.mxu0 0
          %1505 = vmatprep.subr.bf16.mxu0 0
          %1506 = vmatpush1.bf16.msra.mxu0 0
          %1507 = vmatprep.subr.bf16.mxu0 0
          %1508 = vmatpush1.bf16.msra.mxu0 0
          %1509 = vmatprep.subr.bf16.mxu0 0
          %1510 = vmatpush1.bf16.msra.mxu0 0
          %1511 = vmatprep.subr.bf16.mxu0 0
          %1512 = vmatpush1.bf16.msra.mxu0 0
          %1513 = vmatprep.subr.bf16.mxu0 0
          %1514 = vmatpush1.bf16.msra.mxu0 0
          %1515 = vmatprep.subr.bf16.mxu0 0
          %1516 = vmatpush1.bf16.msra.mxu0 0
          %1517 = vmatprep.subr.bf16.mxu0 0
          %1518 = vmatpush1.bf16.msra.mxu0 0
          %1519 = vmatprep.subr.bf16.mxu0 0
          %1520 = vmatpush1.bf16.msra.mxu0 0
          %1521 = vmatprep.subr.bf16.mxu0 0
          %1522 = vmatpush1.bf16.msra.mxu0 0
          %1523 = vmatprep.subr.bf16.mxu0 0
          %1524 = vmatpush1.bf16.msra.mxu0 0
          %1525 = vmatprep.subr.bf16.mxu0 0
          %1526 = vmatpush1.bf16.msra.mxu0 0
          %1527 = vmatprep.mubr.bf16.mxu0 0
          %1528 = vmatmul.mubr.bf16.gmra.mrb[0].mxu0 %v1489
          %v1529 = vpop.f32.mrb[0].mxu0
          %v1530 = vadd.f32 0.0, %v1529
          %v1531 = vpop.f32.mrb[0].mxu0
          %v1532 = vpop.f32.mrb[0].mxu0
          %v1533 = vpop.f32.mrb[0].mxu0
          %1534 = vdwg.mxu0
          %v1536 = vsel %vm1129, %v1485, 0
          %v1539 = vsel %vm1491, %v1162, 0
          %1541 = vmatprep.subr.bf16.mxu0 0
          %1542 = vmatpush1.bf16.msra.mxu0 %v1539
          %1543 = vmatprep.subr.bf16.mxu0 0
          %1544 = vmatpush1.bf16.msra.mxu0 0
          %1545 = vmatprep.subr.bf16.mxu0 0
          %1546 = vmatpush1.bf16.msra.mxu0 0
          %1547 = vmatprep.subr.bf16.mxu0 0
          %1548 = vmatpush1.bf16.msra.mxu0 0
          %1549 = vmatprep.subr.bf16.mxu0 0
          %1550 = vmatpush1.bf16.msra.mxu0 0
          %1551 = vmatprep.subr.bf16.mxu0 0
          %1552 = vmatpush1.bf16.msra.mxu0 0
          %1553 = vmatprep.subr.bf16.mxu0 0
          %1554 = vmatpush1.bf16.msra.mxu0 0
          %1555 = vmatprep.subr.bf16.mxu0 0
          %1556 = vmatpush1.bf16.msra.mxu0 0
          %1557 = vmatprep.subr.bf16.mxu0 0
          %1558 = vmatpush1.bf16.msra.mxu0 0
          %1559 = vmatprep.subr.bf16.mxu0 0
          %1560 = vmatpush1.bf16.msra.mxu0 0
          %1561 = vmatprep.subr.bf16.mxu0 0
          %1562 = vmatpush1.bf16.msra.mxu0 0
          %1563 = vmatprep.subr.bf16.mxu0 0
          %1564 = vmatpush1.bf16.msra.mxu0 0
          %1565 = vmatprep.subr.bf16.mxu0 0
          %1566 = vmatpush1.bf16.msra.mxu0 0
          %1567 = vmatprep.subr.bf16.mxu0 0
          %1568 = vmatpush1.bf16.msra.mxu0 0
          %1569 = vmatprep.subr.bf16.mxu0 0
          %1570 = vmatpush1.bf16.msra.mxu0 0
          %1571 = vmatprep.subr.bf16.mxu0 0
          %1572 = vmatpush1.bf16.msra.mxu0 0
          %1573 = vmatprep.mubr.bf16.mxu0 0
          %1574 = vmatmul.mubr.bf16.gmra.mrb[0].mxu0 %v1536
          %v1575 = vpop.f32.mrb[0].mxu0
          %v1576 = vadd.f32 0.0, %v1575
          %v1577 = vpop.f32.mrb[0].mxu0
          %v1578 = vpop.f32.mrb[0].mxu0
          %v1579 = vpop.f32.mrb[0].mxu0
          %1580 = vdwg.mxu0
          %v1582 = vsel %vm1129, %v1486, 0
          %v1585 = vsel %vm1491, %v1163, 0
          %1587 = vmatprep.subr.bf16.mxu0 0
          %1588 = vmatpush1.bf16.msra.mxu0 %v1585
          %1589 = vmatprep.subr.bf16.mxu0 0
          %1590 = vmatpush1.bf16.msra.mxu0 0
          %1591 = vmatprep.subr.bf16.mxu0 0
          %1592 = vmatpush1.bf16.msra.mxu0 0
          %1593 = vmatprep.subr.bf16.mxu0 0
          %1594 = vmatpush1.bf16.msra.mxu0 0
          %1595 = vmatprep.subr.bf16.mxu0 0
          %1596 = vmatpush1.bf16.msra.mxu0 0
          %1597 = vmatprep.subr.bf16.mxu0 0
          %1598 = vmatpush1.bf16.msra.mxu0 0
          %1599 = vmatprep.subr.bf16.mxu0 0
          %1600 = vmatpush1.bf16.msra.mxu0 0
          %1601 = vmatprep.subr.bf16.mxu0 0
          %1602 = vmatpush1.bf16.msra.mxu0 0
          %1603 = vmatprep.subr.bf16.mxu0 0
          %1604 = vmatpush1.bf16.msra.mxu0 0
          %1605 = vmatprep.subr.bf16.mxu0 0
          %1606 = vmatpush1.bf16.msra.mxu0 0
          %1607 = vmatprep.subr.bf16.mxu0 0
          %1608 = vmatpush1.bf16.msra.mxu0 0
          %1609 = vmatprep.subr.bf16.mxu0 0
          %1610 = vmatpush1.bf16.msra.mxu0 0
          %1611 = vmatprep.subr.bf16.mxu0 0
          %1612 = vmatpush1.bf16.msra.mxu0 0
          %1613 = vmatprep.subr.bf16.mxu0 0
          %1614 = vmatpush1.bf16.msra.mxu0 0
          %1615 = vmatprep.subr.bf16.mxu0 0
          %1616 = vmatpush1.bf16.msra.mxu0 0
          %1617 = vmatprep.subr.bf16.mxu0 0
          %1618 = vmatpush1.bf16.msra.mxu0 0
          %1619 = vmatprep.mubr.bf16.mxu0 0
          %1620 = vmatmul.mubr.bf16.gmra.mrb[0].mxu0 %v1582
          %v1621 = vpop.f32.mrb[0].mxu0
          %v1622 = vadd.f32 0.0, %v1621
          %v1623 = vpop.f32.mrb[0].mxu0
          %v1624 = vpop.f32.mrb[0].mxu0
          %v1625 = vpop.f32.mrb[0].mxu0
          %1626 = vdwg.mxu0
          %v1628 = vsel %vm1129, %v1487, 0
          %v1631 = vsel %vm1491, %v1164, 0
          %1633 = vmatprep.subr.bf16.mxu0 0
          %1634 = vmatpush1.bf16.msra.mxu0 %v1631
          %1635 = vmatprep.subr.bf16.mxu0 0
          %1636 = vmatpush1.bf16.msra.mxu0 0
          %1637 = vmatprep.subr.bf16.mxu0 0
          %1638 = vmatpush1.bf16.msra.mxu0 0
          %1639 = vmatprep.subr.bf16.mxu0 0
          %1640 = vmatpush1.bf16.msra.mxu0 0
          %1641 = vmatprep.subr.bf16.mxu0 0
          %1642 = vmatpush1.bf16.msra.mxu0 0
          %1643 = vmatprep.subr.bf16.mxu0 0
          %1644 = vmatpush1.bf16.msra.mxu0 0
          %1645 = vmatprep.subr.bf16.mxu0 0
          %1646 = vmatpush1.bf16.msra.mxu0 0
          %1647 = vmatprep.subr.bf16.mxu0 0
          %1648 = vmatpush1.bf16.msra.mxu0 0
          %1649 = vmatprep.subr.bf16.mxu0 0
          %1650 = vmatpush1.bf16.msra.mxu0 0
          %1651 = vmatprep.subr.bf16.mxu0 0
          %1652 = vmatpush1.bf16.msra.mxu0 0
          %1653 = vmatprep.subr.bf16.mxu0 0
          %1654 = vmatpush1.bf16.msra.mxu0 0
          %1655 = vmatprep.subr.bf16.mxu0 0
          %1656 = vmatpush1.bf16.msra.mxu0 0
          %1657 = vmatprep.subr.bf16.mxu0 0
          %1658 = vmatpush1.bf16.msra.mxu0 0
          %1659 = vmatprep.subr.bf16.mxu0 0
          %1660 = vmatpush1.bf16.msra.mxu0 0
          %1661 = vmatprep.subr.bf16.mxu0 0
          %1662 = vmatpush1.bf16.msra.mxu0 0
          %1663 = vmatprep.subr.bf16.mxu0 0
          %1664 = vmatpush1.bf16.msra.mxu0 0
          %1665 = vmatprep.mubr.bf16.mxu0 0
          %1666 = vmatmul.mubr.bf16.gmra.mrb[0].mxu0 %v1628
          %v1667 = vpop.f32.mrb[0].mxu0
          %v1668 = vadd.f32 0.0, %v1667
          %v1669 = vpop.f32.mrb[0].mxu0
          %v1670 = vpop.f32.mrb[0].mxu0
          %v1671 = vpop.f32.mrb[0].mxu0
          %1672 = vdwg.mxu0
          %v1673 = vadd.f32 %v1480, %v1530
          %v1674 = vadd.f32 %v1481, %v1576
          %v1675 = vadd.f32 %v1482, %v1622
          %v1676 = vadd.f32 %v1483, %v1668
          %1677 = vst.msk [vmem:[#allocation5] sm:$0xff] %vm1129, %v1673
          %1678 = vst.msk [vmem:[#allocation5 + $0x8] sm:$0xff] %vm1129, %v1674
          %1679 = vst.msk [vmem:[#allocation5 + $0x10] sm:$0xff] %vm1129, %v1675
          %1680 = vst.msk [vmem:[#allocation5 + $0x18] sm:$0xff] %vm1129, %v1676
          %1681 = vst.msk [vmem:[#allocation6] sm:$0xff] %vm1120, %v1380
          %1682 = vst.msk [vmem:[#allocation6 + $0x8] sm:$0xff] %vm1120, %v1381
          %1683 = vst.msk [vmem:[#allocation6 + $0x10] sm:$0xff] %vm1120, %v1382
          %1684 = vst.msk [vmem:[#allocation6 + $0x18] sm:$0xff] %vm1120, %v1383
        $region89: #{gpt2_forward.3} parent=79 // loop_footer
          %s1147 = sadd.s32 %s1145, 1
        $region90: #{gpt2_forward.3} parent=79 // loop_footer_branch
          %1144 = sbr.rel target = $region86
        $region91: #{gpt2_forward.3} parent=79 // loop_exit
          _
        %v1685 = vld [vmem:[#allocation5] sm:$0xff]
        %v1686 = vld [vmem:[#allocation5 + $0x8] sm:$0xff]
        %v1687 = vld [vmem:[#allocation5 + $0x10] sm:$0xff]
        %v1688 = vld [vmem:[#allocation5 + $0x18] sm:$0xff]
        %v1689 = vld [vmem:[#allocation7] sm:$0xff]
        %v1690 = vld [vmem:[#allocation7 + $0x8] sm:$0xff]
        %v1691 = vld [vmem:[#allocation7 + $0x10] sm:$0xff]
        %v1692 = vld [vmem:[#allocation7 + $0x18] sm:$0xff]
        %v1693 = vrcp.pop %v1689
        %v1694 = vrcp.pop %v1690
        %v1695 = vrcp.pop %v1691
        %v1696 = vrcp.pop %v1692
        %1698 = vset.pattern.permute.xlu0 0
        %1699 = vperm.xlu0 %1698, %v1693
        %v1700 = vpop.permute.xlu0 %1699
        %1703 = vset.pattern.permute.xlu0 0
        %1704 = vperm.xlu0 %1703, %v1694
        %v1705 = vpop.permute.xlu0 %1704
        %1708 = vset.pattern.permute.xlu0 0
        %1709 = vperm.xlu0 %1708, %v1695
        %v1710 = vpop.permute.xlu0 %1709
        %1713 = vset.pattern.permute.xlu0 0
        %1714 = vperm.xlu0 %1713, %v1696
        %v1715 = vpop.permute.xlu0 %1714
        %v1717 = vmul.f32 %v1685, %v1700
        %v1718 = vmul.f32 %v1686, %v1705
        %v1719 = vmul.f32 %v1687, %v1710
        %v1720 = vmul.f32 %v1688, %v1715
        %v1721 = vcombine.low %v1717, %v1719
        %v1722 = vcombine.high %v1717, %v1719
        %v1724 = vunpack.c.l.s4 1983009808
        %v1725 = vunpack.c.0.s8 %v1724
        %v1726 = vlaneseq
        %v1727 = vshrl.u32 %v1726, 7
        %v1728 = vsub.s32 %v1725, %v1727
        %v1729 = vrot.slane %v1721, %v1728
        %v1731 = vunpack.c.l.s4 1983009808
        %v1732 = vunpack.c.0.s8 %v1731
        %v1733 = vlaneseq
        %v1734 = vshrl.u32 %v1733, 7
        %v1735 = vsub.s32 %v1732, %v1734
        %v1736 = vrot.slane %v1722, %v1735
        %v1737 = vcombine.low %v1718, %v1720
        %v1738 = vcombine.high %v1718, %v1720
        %v1740 = vunpack.c.l.s4 1983009808
        %v1741 = vunpack.c.0.s8 %v1740
        %v1742 = vlaneseq
        %v1743 = vshrl.u32 %v1742, 7
        %v1744 = vsub.s32 %v1741, %v1743
        %v1745 = vrot.slane %v1737, %v1744
        %v1747 = vunpack.c.l.s4 1983009808
        %v1748 = vunpack.c.0.s8 %v1747
        %v1749 = vlaneseq
        %v1750 = vshrl.u32 %v1749, 7
        %v1751 = vsub.s32 %v1748, %v1750
        %v1752 = vrot.slane %v1738, %v1751
        %v1753 = vcombine.low %v1729, %v1745
        %v1754 = vcombine.high %v1729, %v1745
        %v1756 = vunpack.c.l.s4 1934713408
        %v1757 = vunpack.c.0.s8 %v1756
        %v1758 = vlaneseq
        %v1759 = vshrl.u32 %v1758, 7
        %v1760 = vsub.s32 %v1757, %v1759
        %v1761 = vrot.slane %v1753, %v1760
        %v1763 = vunpack.c.l.s4 1934713408
        %v1764 = vunpack.c.0.s8 %v1763
        %v1765 = vlaneseq
        %v1766 = vshrl.u32 %v1765, 7
        %v1767 = vsub.s32 %v1764, %v1766
        %v1768 = vrot.slane %v1754, %v1767
        %v1769 = vcombine.low %v1736, %v1752
        %v1770 = vcombine.high %v1736, %v1752
        %v1772 = vunpack.c.l.s4 1934713408
        %v1773 = vunpack.c.0.s8 %v1772
        %v1774 = vlaneseq
        %v1775 = vshrl.u32 %v1774, 7
        %v1776 = vsub.s32 %v1773, %v1775
        %v1777 = vrot.slane %v1769, %v1776
        %v1779 = vunpack.c.l.s4 1934713408
        %v1780 = vunpack.c.0.s8 %v1779
        %v1781 = vlaneseq
        %v1782 = vshrl.u32 %v1781, 7
        %v1783 = vsub.s32 %v1780, %v1782
        %v1784 = vrot.slane %v1770, %v1783
        %v1785 = vcombine.high %v1761, 0.0
        %v1786 = vcombine.high %v1768, 0.0
        %v1787 = vcombine.high %v1777, 0.0
        %v1788 = vcombine.high %v1784, 0.0
        %v1789 = vcombine.low %v1761, %v1768
        %v1791 = vunpack.c.l.s4 1983009808
        %v1792 = vunpack.c.0.s8 %v1791
        %v1793 = vlaneseq
        %v1794 = vshrl.u32 %v1793, 7
        %v1795 = vsub.s32 %v1792, %v1794
        %v1796 = vrot.slane %v1789, %v1795
        %v1797 = vcombine.low %v1785, %v1786
        %v1799 = vunpack.c.l.s4 1983009808
        %v1800 = vunpack.c.0.s8 %v1799
        %v1801 = vlaneseq
        %v1802 = vshrl.u32 %v1801, 7
        %v1803 = vsub.s32 %v1800, %v1802
        %v1804 = vrot.slane %v1797, %v1803
        %v1805 = vcombine.low %v1777, %v1784
        %v1807 = vunpack.c.l.s4 1983009808
        %v1808 = vunpack.c.0.s8 %v1807
        %v1809 = vlaneseq
        %v1810 = vshrl.u32 %v1809, 7
        %v1811 = vsub.s32 %v1808, %v1810
        %v1812 = vrot.slane %v1805, %v1811
        %v1813 = vcombine.low %v1787, %v1788
        %v1815 = vunpack.c.l.s4 1983009808
        %v1816 = vunpack.c.0.s8 %v1815
        %v1817 = vlaneseq
        %v1818 = vshrl.u32 %v1817, 7
        %v1819 = vsub.s32 %v1816, %v1818
        %v1820 = vrot.slane %v1813, %v1819
        %v1821 = vcombine.low %v1796, %v1804
        %v1822 = vcombine.high %v1796, %v1804
        %v1824 = vunpack.c.l.s4 1934713408
        %v1825 = vunpack.c.0.s8 %v1824
        %v1826 = vlaneseq
        %v1827 = vshrl.u32 %v1826, 7
        %v1828 = vsub.s32 %v1825, %v1827
        %v1829 = vrot.slane %v1821, %v1828
        %v1831 = vunpack.c.l.s4 1934713408
        %v1832 = vunpack.c.0.s8 %v1831
        %v1833 = vlaneseq
        %v1834 = vshrl.u32 %v1833, 7
        %v1835 = vsub.s32 %v1832, %v1834
        %v1836 = vrot.slane %v1822, %v1835
        %v1837 = vcombine.low %v1812, %v1820
        %v1838 = vcombine.high %v1812, %v1820
        %v1840 = vunpack.c.l.s4 1934713408
        %v1841 = vunpack.c.0.s8 %v1840
        %v1842 = vlaneseq
        %v1843 = vshrl.u32 %v1842, 7
        %v1844 = vsub.s32 %v1841, %v1843
        %v1845 = vrot.slane %v1837, %v1844
        %v1847 = vunpack.c.l.s4 1934713408
        %v1848 = vunpack.c.0.s8 %v1847
        %v1849 = vlaneseq
        %v1850 = vshrl.u32 %v1849, 7
        %v1851 = vsub.s32 %v1848, %v1850
        %v1852 = vrot.slane %v1838, %v1851
        %v1853 = vcombine.low %v1829, %v1845
        %v1854 = vcombine.high %v1829, %v1845
        %v1855 = vcombine.low %v1836, %v1852
        %v1856 = vcombine.high %v1836, %v1852
        %1858 = vrot.lane.b32.xlu0 %v1854, 8
        %v1859 = vpop.permute.xlu0 %1858
        %1862 = vrot.lane.b32.xlu0 %v1855, 16
        %v1863 = vpop.permute.xlu0 %1862
        %1866 = vrot.lane.b32.xlu0 %v1856, 24
        %v1867 = vpop.permute.xlu0 %1866
        %v1869 = vsel %vm1129, %v1853, %v1859
        %vm1870 = vcmask 130048
        %v1871 = vsel %vm1870, %v1869, %v1863
        %vm1872 = vcmask 195584
        %v1873 = vsel %vm1872, %v1871, %v1867
        %v1874 = vpack.c.bf16 %v1873, %v1873
        %v1875 = vld [vmem:[%s5] sm:$0xf]
        %v1876 = vld [vmem:[%s5 + $0x4] sm:$0xf]
        %v1877 = vld [vmem:[%s5 + $0x8] sm:$0xf]
        %v1878 = vld [vmem:[%s5 + $0xc] sm:$0xf]
        %v1879 = vld [vmem:[%s6] sm:$0x1]
        %v1881 = vlaneseq
        %v1882 = vshrl.u32 %v1881, 7
        %v1883 = vsub.s32 0, %v1882
        %v1884 = vrot.slane %v1879, %v1883
        %v1890 = vunpack.c.l.b16 %v1875
        %v1891 = vunpack.c.l.b16 %v1876
        %v1892 = vunpack.c.l.b16 %v1877
        %v1893 = vunpack.c.l.b16 %v1878
        %v1894 = vpack.c.b16 %v1891, %v1890
        %v1895 = vpack.c.b16 %v1893, %v1892
        %vm1898 = vcmask 261120
        %v1900 = vsel %vm1898, %v1874, 0
        %1902 = vmatprep.subr.bf16.mxu0 0
        %1903 = vmatpush1.bf16.msra.mxu0 %v1894
        %1904 = vmatprep.subr.bf16.mxu0 0
        %1905 = vmatpush1.bf16.msra.mxu0 %v1895
        %1906 = vmatprep.subr.bf16.mxu0 0
        %1907 = vmatpush1.bf16.msra.mxu0 0
        %1908 = vmatprep.subr.bf16.mxu0 0
        %1909 = vmatpush1.bf16.msra.mxu0 0
        %1910 = vmatprep.subr.bf16.mxu0 0
        %1911 = vmatpush1.bf16.msra.mxu0 0
        %1912 = vmatprep.subr.bf16.mxu0 0
        %1913 = vmatpush1.bf16.msra.mxu0 0
        %1914 = vmatprep.subr.bf16.mxu0 0
        %1915 = vmatpush1.bf16.msra.mxu0 0
        %1916 = vmatprep.subr.bf16.mxu0 0
        %1917 = vmatpush1.bf16.msra.mxu0 0
        %1918 = vmatprep.subr.bf16.mxu0 0
        %1919 = vmatpush1.bf16.msra.mxu0 0
        %1920 = vmatprep.subr.bf16.mxu0 0
        %1921 = vmatpush1.bf16.msra.mxu0 0
        %1922 = vmatprep.subr.bf16.mxu0 0
        %1923 = vmatpush1.bf16.msra.mxu0 0
        %1924 = vmatprep.subr.bf16.mxu0 0
        %1925 = vmatpush1.bf16.msra.mxu0 0
        %1926 = vmatprep.subr.bf16.mxu0 0
        %1927 = vmatpush1.bf16.msra.mxu0 0
        %1928 = vmatprep.subr.bf16.mxu0 0
        %1929 = vmatpush1.bf16.msra.mxu0 0
        %1930 = vmatprep.subr.bf16.mxu0 0
        %1931 = vmatpush1.bf16.msra.mxu0 0
        %1932 = vmatprep.subr.bf16.mxu0 0
        %1933 = vmatpush1.bf16.msra.mxu0 0
        %1934 = vmatprep.mubr.bf16.mxu0 0
        %1935 = vmatmul.mubr.bf16.gmra.mrb[0].mxu0 %v1900
        %v1936 = vpop.f32.mrb[0].mxu0
        %v1937 = vadd.f32 %v1884, %v1936
        %v1938 = vpop.f32.mrb[0].mxu0
        %v1939 = vpop.f32.mrb[0].mxu0
        %v1940 = vpop.f32.mrb[0].mxu0
        %1941 = vdwg.mxu0
        %s1942 = scalar_lea.vmem %s537, %s1134
        %v1943 = vld [vmem:[%s1942] sm:$0xff]
        %v1944 = vadd.f32 %v1943, %v1937
        %v1945 = vld [vmem:[%s7] sm:$0x1]
        %v1946 = vld [vmem:[%s8] sm:$0x1]
        %v1947 = vsel %vm1898, %v1944, 0.0
        %1948 = vadd.xlane.f32.xlu0 %v1947
        %v1949 = vpop.xlane.xlu0 %1948
        %v1950 = vrcp.pop 32.0
        %v1951 = vmul.f32 %v1949, %v1950
        %v1952 = vsub.f32 %v1944, %v1951
        %v1953 = vmul.f32 %v1952, %v1952
        %v1954 = vsel %vm1898, %v1953, 0.0
        %1955 = vadd.xlane.f32.xlu0 %v1954
        %v1956 = vpop.xlane.xlu0 %1955
        %v1957 = vmul.f32 %v1956, %v1950
        %v1958 = vadd.f32 %v1957, 1e-05
        %v1959 = vrsqrt.pop %v1958
        %v1960 = vmul.f32 %v1952, %v1959
        %v1962 = vlaneseq
        %v1963 = vshrl.u32 %v1962, 7
        %v1964 = vsub.s32 0, %v1963
        %v1965 = vrot.slane %v1945, %v1964
        %v1967 = vmul.f32 %v1960, %v1965
        %v1969 = vlaneseq
        %v1970 = vshrl.u32 %v1969, 7
        %v1971 = vsub.s32 0, %v1970
        %v1972 = vrot.slane %v1946, %v1971
        %v1974 = vadd.f32 %v1967, %v1972
        %v1975 = vpack.c.bf16 %v1974, %v1974
        %v1976 = vld [vmem:[%s9] sm:$0xf]
        %v1977 = vld [vmem:[%s9 + $0x4] sm:$0xf]
        %v1978 = vld [vmem:[%s9 + $0x8] sm:$0xf]
        %v1979 = vld [vmem:[%s9 + $0xc] sm:$0xf]
        %v1980 = vld [vmem:[%s10] sm:$0x1]
        %v1982 = vlaneseq
        %v1983 = vshrl.u32 %v1982, 7
        %v1984 = vsub.s32 0, %v1983
        %v1985 = vrot.slane %v1980, %v1984
        %v1991 = vunpack.c.l.b16 %v1976
        %v1992 = vunpack.c.l.b16 %v1977
        %v1993 = vunpack.c.l.b16 %v1978
        %v1994 = vunpack.c.l.b16 %v1979
        %v1995 = vpack.c.b16 %v1992, %v1991
        %v1996 = vpack.c.b16 %v1994, %v1993
        %v2000 = vsel %vm1898, %v1975, 0
        %2002 = vmatprep.subr.bf16.mxu0 0
        %2003 = vmatpush1.bf16.msra.mxu0 %v1995
        %2004 = vmatprep.subr.bf16.mxu0 0
        %2005 = vmatpush1.bf16.msra.mxu0 %v1996
        %2006 = vmatprep.subr.bf16.mxu0 0
        %2007 = vmatpush1.bf16.msra.mxu0 0
        %2008 = vmatprep.subr.bf16.mxu0 0
        %2009 = vmatpush1.bf16.msra.mxu0 0
        %2010 = vmatprep.subr.bf16.mxu0 0
        %2011 = vmatpush1.bf16.msra.mxu0 0
        %2012 = vmatprep.subr.bf16.mxu0 0
        %2013 = vmatpush1.bf16.msra.mxu0 0
        %2014 = vmatprep.subr.bf16.mxu0 0
        %2015 = vmatpush1.bf16.msra.mxu0 0
        %2016 = vmatprep.subr.bf16.mxu0 0
        %2017 = vmatpush1.bf16.msra.mxu0 0
        %2018 = vmatprep.subr.bf16.mxu0 0
        %2019 = vmatpush1.bf16.msra.mxu0 0
        %2020 = vmatprep.subr.bf16.mxu0 0
        %2021 = vmatpush1.bf16.msra.mxu0 0
        %2022 = vmatprep.subr.bf16.mxu0 0
        %2023 = vmatpush1.bf16.msra.mxu0 0
        %2024 = vmatprep.subr.bf16.mxu0 0
        %2025 = vmatpush1.bf16.msra.mxu0 0
        %2026 = vmatprep.subr.bf16.mxu0 0
        %2027 = vmatpush1.bf16.msra.mxu0 0
        %2028 = vmatprep.subr.bf16.mxu0 0
        %2029 = vmatpush1.bf16.msra.mxu0 0
        %2030 = vmatprep.subr.bf16.mxu0 0
        %2031 = vmatpush1.bf16.msra.mxu0 0
        %2032 = vmatprep.subr.bf16.mxu0 0
        %2033 = vmatpush1.bf16.msra.mxu0 0
        %2034 = vmatprep.mubr.bf16.mxu0 0
        %2035 = vmatmul.mubr.bf16.gmra.mrb[0].mxu0 %v2000
        %v2036 = vpop.f32.mrb[0].mxu0
        %v2037 = vadd.f32 %v1985, %v2036
        %v2038 = vpop.f32.mrb[0].mxu0
        %v2039 = vpop.f32.mrb[0].mxu0
        %v2040 = vpop.f32.mrb[0].mxu0
        %2041 = vdwg.mxu0
        %v2042 = vmul.f32 %v2037, 0.5
        %v2043 = vmul.f32 %v2037, 0.044715
        %v2044 = vmul.f32 %v2043, %v2037
        %v2045 = vmul.f32 %v2044, %v2037
        %v2046 = vadd.f32 %v2037, %v2045
        %v2047 = vmul.f32 %v2046, 0.7978846
        %v2048 = vtanh.pop %v2047
        %v2049 = vadd.f32 %v2048, 1.0
        %v2050 = vmul.f32 %v2042, %v2049
        %v2051 = vpack.c.bf16 %v2050, %v2050
        %v2052 = vld [vmem:[%s11] sm:$0xf]
        %v2053 = vld [vmem:[%s11 + $0x4] sm:$0xf]
        %v2054 = vld [vmem:[%s11 + $0x8] sm:$0xf]
        %v2055 = vld [vmem:[%s11 + $0xc] sm:$0xf]
        %v2056 = vld [vmem:[%s11 + $0x10] sm:$0xf]
        %v2057 = vld [vmem:[%s11 + $0x14] sm:$0xf]
        %v2058 = vld [vmem:[%s11 + $0x18] sm:$0xf]
        %v2059 = vld [vmem:[%s11 + $0x1c] sm:$0xf]
        %v2060 = vld [vmem:[%s11 + $0x20] sm:$0xf]
        %v2061 = vld [vmem:[%s11 + $0x24] sm:$0xf]
        %v2062 = vld [vmem:[%s11 + $0x28] sm:$0xf]
        %v2063 = vld [vmem:[%s11 + $0x2c] sm:$0xf]
        %v2064 = vld [vmem:[%s11 + $0x30] sm:$0xf]
        %v2065 = vld [vmem:[%s11 + $0x34] sm:$0xf]
        %v2066 = vld [vmem:[%s11 + $0x38] sm:$0xf]
        %v2067 = vld [vmem:[%s11 + $0x3c] sm:$0xf]
        %v2084 = vunpack.c.l.b16 %v2052
        %v2085 = vunpack.c.l.b16 %v2053
        %v2086 = vunpack.c.l.b16 %v2054
        %v2087 = vunpack.c.l.b16 %v2055
        %v2088 = vunpack.c.l.b16 %v2056
        %v2089 = vunpack.c.l.b16 %v2057
        %v2090 = vunpack.c.l.b16 %v2058
        %v2091 = vunpack.c.l.b16 %v2059
        %v2092 = vunpack.c.l.b16 %v2060
        %v2093 = vunpack.c.l.b16 %v2061
        %v2094 = vunpack.c.l.b16 %v2062
        %v2095 = vunpack.c.l.b16 %v2063
        %v2096 = vunpack.c.l.b16 %v2064
        %v2097 = vunpack.c.l.b16 %v2065
        %v2098 = vunpack.c.l.b16 %v2066
        %v2099 = vunpack.c.l.b16 %v2067
        %v2100 = vpack.c.b16 %v2085, %v2084
        %v2101 = vpack.c.b16 %v2087, %v2086
        %v2102 = vpack.c.b16 %v2089, %v2088
        %v2103 = vpack.c.b16 %v2091, %v2090
        %v2104 = vpack.c.b16 %v2093, %v2092
        %v2105 = vpack.c.b16 %v2095, %v2094
        %v2106 = vpack.c.b16 %v2097, %v2096
        %v2107 = vpack.c.b16 %v2099, %v2098
        %2116 = vmatprep.subr.bf16.mxu0 0
        %2117 = vmatpush1.bf16.msra.mxu0 %v2100
        %2118 = vmatprep.subr.bf16.mxu0 0
        %2119 = vmatpush1.bf16.msra.mxu0 %v2101
        %2120 = vmatprep.subr.bf16.mxu0 0
        %2121 = vmatpush1.bf16.msra.mxu0 %v2102
        %2122 = vmatprep.subr.bf16.mxu0 0
        %2123 = vmatpush1.bf16.msra.mxu0 %v2103
        %2124 = vmatprep.subr.bf16.mxu0 0
        %2125 = vmatpush1.bf16.msra.mxu0 %v2104
        %2126 = vmatprep.subr.bf16.mxu0 0
        %2127 = vmatpush1.bf16.msra.mxu0 %v2105
        %2128 = vmatprep.subr.bf16.mxu0 0
        %2129 = vmatpush1.bf16.msra.mxu0 %v2106
        %2130 = vmatprep.subr.bf16.mxu0 0
        %2131 = vmatpush1.bf16.msra.mxu0 %v2107
        %2132 = vmatprep.subr.bf16.mxu0 0
        %2133 = vmatpush1.bf16.msra.mxu0 0
        %2134 = vmatprep.subr.bf16.mxu0 0
        %2135 = vmatpush1.bf16.msra.mxu0 0
        %2136 = vmatprep.subr.bf16.mxu0 0
        %2137 = vmatpush1.bf16.msra.mxu0 0
        %2138 = vmatprep.subr.bf16.mxu0 0
        %2139 = vmatpush1.bf16.msra.mxu0 0
        %2140 = vmatprep.subr.bf16.mxu0 0
        %2141 = vmatpush1.bf16.msra.mxu0 0
        %2142 = vmatprep.subr.bf16.mxu0 0
        %2143 = vmatpush1.bf16.msra.mxu0 0
        %2144 = vmatprep.subr.bf16.mxu0 0
        %2145 = vmatpush1.bf16.msra.mxu0 0
        %2146 = vmatprep.subr.bf16.mxu0 0
        %2147 = vmatpush1.bf16.msra.mxu0 0
        %2148 = vmatprep.mubr.bf16.mxu0 0
        %2149 = vmatmul.mubr.bf16.gmra.mrb[0].mxu0 %v2051
        %v2150 = vpop.f32.mrb[0].mxu0
        %v2151 = vadd.f32 0.0, %v2150
        %v2152 = vpop.f32.mrb[0].mxu0
        %v2153 = vpop.f32.mrb[0].mxu0
        %v2154 = vpop.f32.mrb[0].mxu0
        %2155 = vdwg.mxu0
        %v2156 = vadd.f32 %v1944, %v2151
        %v2157 = vld [vmem:[%s12] sm:$0x1]
        %v2159 = vlaneseq
        %v2160 = vshrl.u32 %v2159, 7
        %v2161 = vsub.s32 0, %v2160
        %v2162 = vrot.slane %v2157, %v2161
        %v2164 = vadd.f32 %v2156, %v2162
        %v2165 = vld [vmem:[%s13] sm:$0x1]
        %v2166 = vld [vmem:[%s14] sm:$0x1]
        %v2167 = vsel %vm1898, %v2164, 0.0
        %2168 = vadd.xlane.f32.xlu0 %v2167
        %v2169 = vpop.xlane.xlu0 %2168
        %v2170 = vmul.f32 %v2169, %v1950
        %v2171 = vsub.f32 %v2164, %v2170
        %v2172 = vmul.f32 %v2171, %v2171
        %v2173 = vsel %vm1898, %v2172, 0.0
        %2174 = vadd.xlane.f32.xlu0 %v2173
        %v2175 = vpop.xlane.xlu0 %2174
        %v2176 = vmul.f32 %v2175, %v1950
        %v2177 = vadd.f32 %v2176, 1e-05
        %v2178 = vrsqrt.pop %v2177
        %v2179 = vmul.f32 %v2171, %v2178
        %v2181 = vlaneseq
        %v2182 = vshrl.u32 %v2181, 7
        %v2183 = vsub.s32 0, %v2182
        %v2184 = vrot.slane %v2165, %v2183
        %v2186 = vmul.f32 %v2179, %v2184
        %v2188 = vlaneseq
        %v2189 = vshrl.u32 %v2188, 7
        %v2190 = vsub.s32 0, %v2189
        %v2191 = vrot.slane %v2166, %v2190
        %v2193 = vadd.f32 %v2186, %v2191
        %2194 = vst.msk [vmem:[%s527] sm:$0xff] %vm1898, %v2193
        %s2195 = sand.u32 %s373, 1
        %s2196 = scalar_lea.sflag [#allocation9], %s2195
        %s2197 = sand.u32 %s373, 1
        %s2198 = smul.addr %s2197, 8
        %s2199 = scalar_lea.vmem [#allocation8], %s2198
        %s2200 = sand.u32 %s399, 1
        %s2201 = sand.u32 %s399, 1
        %s2202 = smul.addr %s2201, 16
        %s2203 = scalar_lea.vmem [#allocation10], %s2202
        // Predicated region
        $region92: #{gpt2_forward.3} parent=79 // pred_check
          %p2204 = pneg %p383
        $region93: #{gpt2_forward.3} parent=79 // pred_check_branch
          %2206 = sbr.rel (%p2204) target = $region95
        $region94: #{gpt2_forward.3} parent=79 // pred_region
          %s2208 = ssub.s32 128, 128
          %2209 = vsyncadd %s2196, %s2208
          %s2210 = sadd.s32 %s36, %s35
          %s2211 = smul.addr %s2210, 128
          %s2212 = scalar_lea.hbm %s15, %s2211
          %s2214 = sshll.u32 %s2199, 4
          %s2215 = int_to_ptr.vmem [resolvable:$true] %s2214
          %2217 = dma.vmem_to_hbm [thread:$0]  %s2215, 128, %s2212, %s2196
        $region95: #{gpt2_forward.3} parent=79 // pred_fallthru
          _
        // Predicated region
        $region96: #{gpt2_forward.3} parent=79 // pred_check
          %p2218 = pneg %p409
        $region97: #{gpt2_forward.3} parent=79 // pred_check_branch
          %2220 = sbr.rel (%p2218) target = $region99
        $region98: #{gpt2_forward.3} parent=79 // pred_region
          %s2221 = smul.addr %s35, 8
          %s2222 = scalar_lea.vmem %s16, %s2221
          // Predicated region
          $region100: #{gpt2_forward.3} parent=98 // pred_check
            _
          $region101: #{gpt2_forward.3} parent=98 // pred_check_branch
            %2224 = sbr.rel (0) target = $region103
          $region102: #{gpt2_forward.3} parent=98 // pred_region
            // Predicated region
            $region104: #{gpt2_forward.3} parent=102 // pred_check
              _
            $region105: #{gpt2_forward.3} parent=102 // pred_check_branch
              %2226 = sbr.rel (0) target = $region107
            $region106: #{gpt2_forward.3} parent=102 // pred_region
              // Predicated region
              $region119: #{gpt2_forward.3} parent=106 // pred_check
                _
              $region120: #{gpt2_forward.3} parent=106 // pred_check_branch
                %2243 = sbr.rel (0) target = $region122
              $region121: #{gpt2_forward.3} parent=106 // pred_region
                loop: start=0, step=1, limit=1
                $region123: #{gpt2_forward.3} parent=121 // loop_pre_header
                  _
                $region124: #{gpt2_forward.3} parent=121 // loop_header
                  %s2245 = sphi 0, %s2249
                  %p2246 = scmp.ge.s32.totalorder %s2245, 1
                  %s2250 = sphi %s2203, %s2203
                  %s2251 = sphi %s2222, %s2222
                $region125: #{gpt2_forward.3} parent=121 // loop_header_branch
                  %2248 = sbr.rel (%p2246) target = $region129
                $region126: #{gpt2_forward.3} parent=121 // loop_body
                  %v2252 = vld [vmem:[%s2250] sm:$0xff]
                  %2253 = vst [vmem:[%s2251] sm:$0xff] %v2252
                  %v2254 = vld [vmem:[%s2250 + $0x8] sm:$0xff]
                  %2255 = vst [vmem:[%s2251 + $0x10] sm:$0xff] %v2254
                $region127: #{gpt2_forward.3} parent=121 // loop_footer
                  %s2249 = sadd.s32 1, %s2245
                $region128: #{gpt2_forward.3} parent=121 // loop_footer_branch
                  %2244 = sbr.rel target = $region124
                $region129: #{gpt2_forward.3} parent=121 // loop_exit
                  _
              $region122: #{gpt2_forward.3} parent=106 // pred_fallthru
                _
              // Predicated region
              $region130: #{gpt2_forward.3} parent=106 // pred_check
                _
              $region131: #{gpt2_forward.3} parent=106 // pred_check_branch
                %2257 = sbr.rel target = $region133
              $region132: #{gpt2_forward.3} parent=106 // pred_region
                _
              $region133: #{gpt2_forward.3} parent=106 // pred_fallthru
                _
            $region107: #{gpt2_forward.3} parent=102 // pred_fallthru
              _
            // Predicated region
            $region108: #{gpt2_forward.3} parent=102 // pred_check
              _
            $region109: #{gpt2_forward.3} parent=102 // pred_check_branch
              %2228 = sbr.rel target = $region111
            $region110: #{gpt2_forward.3} parent=102 // pred_region
              loop: start=0, step=1, limit=1
              $region112: #{gpt2_forward.3} parent=110 // loop_pre_header
                _
              $region113: #{gpt2_forward.3} parent=110 // loop_header
                %s2231 = sphi 0, %s2235
                %p2232 = scmp.ge.s32.totalorder %s2231, 1
                %s2236 = sphi %s2203, %s2203
                %s2237 = sphi %s2222, %s2222
              $region114: #{gpt2_forward.3} parent=110 // loop_header_branch
                %2234 = sbr.rel (%p2232) target = $region118
              $region115: #{gpt2_forward.3} parent=110 // loop_body
                %v2238 = vld [vmem:[%s2236] sm:$0xff]
                %2239 = vst [vmem:[%s2237] sm:$0xff] %v2238
                %v2240 = vld [vmem:[%s2236 + $0x8] sm:$0xff]
                %2241 = vst [vmem:[%s2237 + $0x10] sm:$0xff] %v2240
              $region116: #{gpt2_forward.3} parent=110 // loop_footer
                %s2235 = sadd.s32 1, %s2231
              $region117: #{gpt2_forward.3} parent=110 // loop_footer_branch
                %2230 = sbr.rel target = $region113
              $region118: #{gpt2_forward.3} parent=110 // loop_exit
                _
            $region111: #{gpt2_forward.3} parent=102 // pred_fallthru
              _
          $region103: #{gpt2_forward.3} parent=98 // pred_fallthru
            _
          %2258 = vnop
        $region99: #{gpt2_forward.3} parent=79 // pred_fallthru
          _
      $region80: #{gpt2_forward.3} parent=5 // pred_fallthru
        _
      %p2259 = scmp.le.s32.totalorder 2, %s26
      // Predicated region
      $region134: #{gpt2_forward.3} parent=5 // pred_check
        %p2260 = pneg %p2259
      $region135: #{gpt2_forward.3} parent=5 // pred_check_branch
        %2262 = sbr.rel (%p2260) target = $region137
      $region136: #{gpt2_forward.3} parent=5 // pred_region
        %s2263 = ssub.s32 %s26, 2
        // Predicated region
        $region138: #{gpt2_forward.3} parent=136 // pred_check
          %p2264 = pneg %p389
        $region139: #{gpt2_forward.3} parent=136 // pred_check_branch
          %2266 = sbr.rel (%p2264) target = $region141
        $region140: #{gpt2_forward.3} parent=136 // pred_region
          %s2267 = sand.u32 %s374, 1
          %s2268 = scalar_lea.sflag [#allocation9], %s2267
          %s2269 = sand.u32 %s374, 1
          %s2270 = smul.addr %s2269, 8
          %s2271 = scalar_lea.vmem [#allocation8], %s2270
          %2272 = dma.done %s2268, 128
        $region141: #{gpt2_forward.3} parent=136 // pred_fallthru
          _
        // Predicated region
        $region142: #{gpt2_forward.3} parent=136 // pred_check
          %p2273 = pneg %p415
        $region143: #{gpt2_forward.3} parent=136 // pred_check_branch
          %2275 = sbr.rel (%p2273) target = $region145
        $region144: #{gpt2_forward.3} parent=136 // pred_region
          %s2276 = sand.u32 %s400, 1
          %s2277 = sand.u32 %s400, 1
          %s2278 = smul.addr %s2277, 16
          %s2279 = scalar_lea.vmem [#allocation10], %s2278
        $region145: #{gpt2_forward.3} parent=136 // pred_fallthru
          _
      $region137: #{gpt2_forward.3} parent=5 // pred_fallthru
        _
    $region6: #{gpt2_forward.3} parent=1 // loop_footer
      %s30 = sadd.s32 1, %s26
    $region7: #{gpt2_forward.3} parent=1 // loop_footer_branch
      %25 = sbr.rel target = $region3
    $region8: #{gpt2_forward.3} parent=1 // loop_exit
      _
    %2280 = vsyncpa [#allocation9], 1
    %s2281 = scalar_lea.sflag [#allocation9], 1
    %2282 = vsyncpa %s2281, 1

</llo_original>
